<compile_context>
chip_gen: v7x
topology: tpu7x:2x2x1
jax: 0.10.0
libtpu: 0.0.40
codegen_flags: <defaults>
</compile_context>

<pallas_src>
import math
import jax
import jax.numpy as jnp
from jax.experimental import pallas as pl
from jax.experimental.pallas import tpu as pltpu

# ---- module hyper-parameters (match KANLinear defaults) ----
GRID_SIZE = 5
SPLINE_ORDER = 3
GRID_RANGE = (-1.0, 1.0)
DROPOUT_RATE = 0.1
BASIS = GRID_SIZE + SPLINE_ORDER                 # 8
GRID_PTS = GRID_SIZE + 2 * SPLINE_ORDER + 1      # 12


def _round_up(n, m):
    return ((n + m - 1) // m) * m


# ---------------------------------------------------------------------------
# Shared in-kernel basis construction
# ---------------------------------------------------------------------------
def _silu_and_basis_slabs(x, grid_ref, rd_ref, mask_row):
    """Return (SiLU(x), [basis_0 .. basis_{BASIS-1}]), all f32 (block_b, INP).

    Cox-de Boor recursion with precomputed reciprocal knot spacings.  The
    (x - knot) terms are recomputed inline and the rd*basis product is fused
    into the update so only the current `bases` list stays live (minimises
    vreg pressure / VMEM spill vs. hoisting all knot-difference slabs)."""
    silu_x = jax.nn.silu(x)

    # order-0 indicator bases (same comparisons as the PyTorch code)
    bases = []
    g_lo = grid_ref[pl.ds(0, 1), :]
    for j in range(GRID_PTS - 1):
        g_hi = grid_ref[pl.ds(j + 1, 1), :]
        bases.append(jnp.logical_and(x >= g_lo, x < g_hi).astype(jnp.float32))
        g_lo = g_hi

    # orders 1..SPLINE_ORDER:
    #   new[j] = (x - g[j])     * rd[k-1, j]   * old[j]
    #          + (g[j+k+1] - x) * rd[k-1, j+1] * old[j+1]
    for k in range(1, SPLINE_ORDER + 1):
        row0 = (k - 1) * GRID_PTS
        nxt = []
        for j in range(len(bases) - 1):
            left = (x - grid_ref[pl.ds(j, 1), :]) * (
                rd_ref[pl.ds(row0 + j, 1), :] * bases[j])
            right = (grid_ref[pl.ds(j + k + 1, 1), :] - x) * (
                rd_ref[pl.ds(row0 + j + 1, 1), :] * bases[j + 1])
            nxt.append(left + right)
        bases = nxt

    # per-in-feature dropout mask (same for every basis index)
    bases = [b * mask_row for b in bases]
    return silu_x, bases


# ---------------------------------------------------------------------------
# Kernel A: weight fully resident (no OUT tiling) -> per-slab accumulation
# ---------------------------------------------------------------------------
def kan_kernel_resident(x_ref, grid_ref, rd_ref, mask_ref, w_ref, o_ref):
    inp = x_ref.shape[1]
    wdt = w_ref.dtype
    x = x_ref[...]
    silu_x, bases = _silu_and_basis_slabs(x, grid_ref, rd_ref, mask_ref[...])

    acc = jnp.dot(silu_x.astype(wdt), w_ref[pl.ds(0, inp), :],
                  preferred_element_type=jnp.float32)
    for j in range(BASIS):
        acc = acc + jnp.dot(bases[j].astype(wdt),
                            w_ref[pl.ds((j + 1) * inp, inp), :],
                            preferred_element_type=jnp.float32)
    o_ref[...] = acc.astype(o_ref.dtype)


# ---------------------------------------------------------------------------
# Kernel B: OUT tiled -> stage activations once, one wide dot per OUT tile
# ---------------------------------------------------------------------------
def kan_kernel_staged(x_ref, grid_ref, rd_ref, mask_ref, w_ref, o_ref,
                      staged_ref):
    inp = x_ref.shape[1]

    # NOTE: this guard is only correct because axis 1 (OUT tiles) is the
    # innermost, "arbitrary" grid axis and the staged scratch persists across
    # grid steps.  Do not reorder the grid or mark axis 1 "parallel".
    @pl.when(pl.program_id(1) == 0)
    def _stage():
        x = x_ref[...]
        silu_x, bases = _silu_and_basis_slabs(x, grid_ref, rd_ref,
                                              mask_ref[...])
        staged_ref[:, 0:inp] = silu_x.astype(staged_ref.dtype)
        for j in range(BASIS):
            staged_ref[:, (j + 1) * inp:(j + 2) * inp] = (
                bases[j].astype(staged_ref.dtype))

    # single MXU contraction over K = (BASIS + 1) * INP
    o_ref[...] = jnp.dot(staged_ref[...], w_ref[...],
                         preferred_element_type=jnp.float32).astype(o_ref.dtype)


# ---------------------------------------------------------------------------
# One-time parameter preparation (all transposes / folds / padding live here)
# ---------------------------------------------------------------------------
def prepare_kan_params(grid, base_w, spline_w, spline_scaler,
                       compute_dtype=jnp.bfloat16):
    """bf16 (default) is MXU-native on v5e/v6e/v7x and halves weight DMA/VMEM;
    accumulation inside the kernel stays f32."""
    OUT, IN = base_w.shape
    # TODO(synk): for IN < 128 each slab is padded to 128 lanes (up to 4x
    #             wasted K at IN=32); dense K-packing would need
    #             non-lane-aligned masked stores and is not implemented.
    INP = _round_up(IN, 128)          # lane-dense elementwise math
    OUTP = _round_up(OUT, 128)        # lane-dense (unmasked) output stores

    # knots, transposed to (GRID_PTS, IN_pad); padded lanes edge-replicate a
    # valid knot row (their weight columns are zero, so no contribution).
    grid_p = jnp.pad(grid.astype(jnp.float32), ((0, INP - IN), (0, 0)),
                     mode="edge")
    grid_t = grid_p.T                                   # (GRID_PTS, INP)

    # reciprocal knot spacings 1/(g[j+k]-g[j]), row (k-1)*GRID_PTS + j,
    # zero-guarded for repeated knots (standard Cox-de Boor convention).
    rows = []
    for k in range(1, SPLINE_ORDER + 1):
        for j in range(GRID_PTS):
            if j + k < GRID_PTS:
                diff = grid_t[j + k] - grid_t[j]
                rows.append(jnp.where(jnp.abs(diff) > 0.0, 1.0 / diff, 0.0))
            else:
                rows.append(jnp.zeros((INP,), jnp.float32))
    rdenom = jnp.stack(rows, axis=0)                    # (3*GRID_PTS, INP)

    # fused weight: rows [0,INP) = base branch; rows [(1+j)*INP, (2+j)*INP) =
    # spline basis j.  spline_scaler folded in once here.
    scaled = spline_w * spline_scaler[:, :, None]
    scaled = jnp.pad(scaled, ((0, OUTP - OUT), (0, INP - IN), (0, 0)))
    w_spline = jnp.transpose(scaled, (2, 1, 0)).reshape(BASIS * INP, OUTP)
    w_base = jnp.pad(base_w, ((0, OUTP - OUT), (0, INP - IN))).T   # (INP, OUTP)
    w_fused = jnp.concatenate([w_base, w_spline], axis=0).astype(compute_dtype)

    return {
        "grid_t": grid_t, "rdenom": rdenom, "w": w_fused,
        "in_features": IN, "out_features": OUT,
        "in_pad": INP, "out_pad": OUTP,
    }


# ---------------------------------------------------------------------------
# Wrapper
# ---------------------------------------------------------------------------
def _vmem_capacity_bytes():
    try:
        return int(pltpu.get_tpu_info().vmem_capacity_bytes)
    except Exception:
        return 64 * 2 ** 20          # conservative (v7x per-TensorCore)


def _vmem_estimate(bb, inp, ktot, bo, itemsize, staged):
    est = (2 * bb * inp * 4              # x blocks (double-buffered)
           + 2 * bb * bo * 4             # f32 output blocks
           + 2 * ktot * bo * itemsize    # fused weight blocks
           + 2 * (GRID_PTS + SPLINE_ORDER * GRID_PTS + 1) * inp * 4
           + 28 * bb * inp * 4)          # Cox-de Boor live slabs / spill space
    if staged:
        est += bb * ktot * itemsize      # staged activation scratch
    return est


def kan_linear_pallas(x, params, mask_in=None, *, block_b=256, block_out=None):
    B, IN = x.shape
    assert IN == params["in_features"]
    INP, OUTP = params["in_pad"], params["out_pad"]
    OUT = params["out_features"]
    KTOT = (BASIS + 1) * INP
    w = params["w"]
    itemsize = jnp.dtype(w.dtype).itemsize

    cap = _vmem_capacity_bytes()
    budget = int(cap * 0.72)
    vmem_limit = int(cap * 0.75)

    # batch tile: biggest that fits, but keep >= 2 tiles so both of v7x's
    # TensorCores get work on the (parallel) batch axis.
    B8 = _round_up(B, 8)
    bb = min(block_b, B8)
    if B8 >= 16:
        bb = min(bb, _round_up((B8 + 1) // 2, 8))
    bb = _round_up(max(bb, 8), 8)

    # out tile: prefer full weight residency (block_out == OUTP -> fused
    # weight DMA'd once, resident across all batch tiles).
    def pick_bo(bb_):
        if block_out is not None:
            return block_out
        c = OUTP
        while c > 128:
            if OUTP % c == 0 and _vmem_estimate(
                    bb_, INP, KTOT, c, itemsize, staged=(c < OUTP)) <= budget:
                return c
            c -= 128
        return 128

    bo = pick_bo(bb)
    while (bb > 8 and
           _vmem_estimate(bb, INP, KTOT, bo, itemsize,
                          staged=(bo < OUTP)) > budget):
        bb = _round_up(max(8, bb // 2), 8)
        bo = pick_bo(bb)

    assert bo % 128 == 0 and OUTP % bo == 0

    B_pad = _round_up(B, bb)
    nb, no = B_pad // bb, OUTP // bo

    x_p = jnp.pad(x.astype(jnp.float32), ((0, B_pad - B), (0, INP - IN)))
    if mask_in is None:
        mask_in = jnp.ones((IN,), jnp.float32)
    mask_p = jnp.pad(mask_in.astype(jnp.float32), (0, INP - IN),
                     constant_values=1.0).reshape(1, INP)

    cost = pl.CostEstimate(
        flops=2 * B_pad * OUTP * KTOT,
        transcendentals=B_pad * INP,                       # sigmoid in SiLU
        bytes_accessed=int(x_p.size * 4 + w.size * itemsize
                           + params["grid_t"].size * 4
                           + params["rdenom"].size * 4
                           + mask_p.size * 4 + B_pad * OUTP * 4))

    if no == 1:
        out_p = pl.pallas_call(
            kan_kernel_resident,
            out_shape=jax.ShapeDtypeStruct((B_pad, OUTP), jnp.float32),
            grid=(nb,),
            in_specs=[
                pl.BlockSpec((bb, INP), lambda i: (i, 0)),                # x
                pl.BlockSpec((GRID_PTS, INP), lambda i: (0, 0)),          # knots
                pl.BlockSpec((SPLINE_ORDER * GRID_PTS, INP),
                             lambda i: (0, 0)),                           # 1/dg
                pl.BlockSpec((1, INP), lambda i: (0, 0)),                 # mask
                pl.BlockSpec((KTOT, OUTP), lambda i: (0, 0)),             # W
            ],
            out_specs=pl.BlockSpec((bb, OUTP), lambda i: (i, 0)),
            compiler_params=pltpu.CompilerParams(
                dimension_semantics=("parallel",),
                vmem_limit_bytes=vmem_limit),
            cost_estimate=cost,
        )(x_p, params["grid_t"], params["rdenom"], mask_p, w)
    else:
        out_p = pl.pallas_call(
            kan_kernel_staged,
            out_shape=jax.ShapeDtypeStruct((B_pad, OUTP), jnp.float32),
            grid=(nb, no),
            in_specs=[
                pl.BlockSpec((bb, INP), lambda i, j: (i, 0)),             # x
                pl.BlockSpec((GRID_PTS, INP), lambda i, j: (0, 0)),       # knots
                pl.BlockSpec((SPLINE_ORDER * GRID_PTS, INP),
                             lambda i, j: (0, 0)),                        # 1/dg
                pl.BlockSpec((1, INP), lambda i, j: (0, 0)),              # mask
                pl.BlockSpec((KTOT, bo), lambda i, j: (0, j)),            # W
            ],
            out_specs=pl.BlockSpec((bb, bo), lambda i, j: (i, j)),
            scratch_shapes=[pltpu.VMEM((bb, KTOT), w.dtype)],
            compiler_params=pltpu.CompilerParams(
                dimension_semantics=("parallel", "arbitrary"),
                vmem_limit_bytes=vmem_limit),
            cost_estimate=cost,
        )(x_p, params["grid_t"], params["rdenom"], mask_p, w)

    return out_p[:B, :OUT]


# ---------------------------------------------------------------------------
# Pure-JAX reference (mirrors the PyTorch forward)
# ---------------------------------------------------------------------------
def kan_linear_ref(x, grid, base_w, spline_w, spline_scaler, mask_in):
    hp = jax.lax.Precision.HIGHEST
    base_out = jnp.dot(jax.nn.silu(x), base_w.T, precision=hp)
    xe = x[:, :, None]
    g = grid[None, :, :]
    bases = jnp.logical_and(xe >= g[:, :, :-1], xe < g[:, :, 1:]).astype(x.dtype)
    for k in range(1, SPLINE_ORDER + 1):
        bases = ((xe - g[:, :, :-(k + 1)]) / (g[:, :, k:-1] - g[:, :, :-(k + 1)])
                 * bases[:, :, :-1]
                 + (g[:, :, k + 1:] - xe) / (g[:, :, k + 1:] - g[:, :, 1:-k])
                 * bases[:, :, 1:])
    flat = bases.reshape(x.shape[0], -1)
    flat = flat * jnp.repeat(mask_in, BASIS)[None, :]        # repeat_interleave
    scaled = (spline_w * spline_scaler[:, :, None]).reshape(base_w.shape[0], -1)
    return base_out + jnp.dot(flat, scaled.T, precision=hp)


def _make_inputs(key, B, IN, OUT):
    k_x, k_bw, k_sw, k_sc, k_drop = jax.random.split(key, 5)
    x = jax.random.uniform(k_x, (B, IN), jnp.float32, -1.0, 1.0)
    h = (GRID_RANGE[1] - GRID_RANGE[0]) / GRID_SIZE
    grid_1d = (jnp.arange(-SPLINE_ORDER, GRID_SIZE + SPLINE_ORDER + 1,
                          dtype=jnp.float32) * h + GRID_RANGE[0])
    grid = jnp.broadcast_to(grid_1d, (IN, GRID_PTS))
    bound = 1.0 / math.sqrt(IN)
    base_w = jax.random.uniform(k_bw, (OUT, IN), jnp.float32, -bound, bound)
    spline_scaler = jax.random.uniform(k_sc, (OUT, IN), jnp.float32, -bound, bound)
    # TODO(synk): exact curve2coeff (lstsq-based) spline_weight init omitted;
    #             deterministic small-uniform coefficients of the right shape.
    spline_w = jax.random.uniform(k_sw, (OUT, IN, BASIS), jnp.float32, -0.02, 0.02)
    # dropout mask over in-features (the PyTorch forward always applies it)
    keep = 1.0 - DROPOUT_RATE
    mask_in = jax.random.bernoulli(k_drop, keep, (IN,)).astype(jnp.float32) / keep
    return x, grid, base_w, spline_w, spline_scaler, mask_in


if __name__ == "__main__":
    key = jax.random.PRNGKey(0)
    k1, k2 = jax.random.split(key)

    # Case 1: default bf16 weights, weight-resident (no OUT tiling) path.
    B, IN, OUT = 256, 32, 32
    x, grid, base_w, spline_w, spline_scaler, mask_in = _make_inputs(k1, B, IN, OUT)
    params = prepare_kan_params(grid, base_w, spline_w, spline_scaler)
    out = jax.block_until_ready(kan_linear_pallas(x, params, mask_in))
    ref = kan_linear_ref(x, grid, base_w, spline_w, spline_scaler, mask_in)
    assert out.shape == (B, OUT)
    assert jnp.allclose(out, ref, atol=3e-2, rtol=3e-2), "bf16 resident-path mismatch"

    # Case 2: f32 weights, forced OUT tiling -> staged-scratch path (tight tol).
    B2, IN2, OUT2 = 96, 48, 256
    x2, grid2, bw2, sw2, sc2, m2 = _make_inputs(k2, B2, IN2, OUT2)
    params2 = prepare_kan_params(grid2, bw2, sw2, sc2, compute_dtype=jnp.float32)
    out2 = jax.block_until_ready(kan_linear_pallas(x2, params2, m2, block_out=128))
    ref2 = kan_linear_ref(x2, grid2, bw2, sw2, sc2, m2)
    assert out2.shape == (B2, OUT2)
    assert jnp.allclose(out2, ref2, atol=2e-3, rtol=2e-3), "f32 staged-path mismatch"

    print("KERNEL_OK")
</pallas_src>

<mosaic_0001>
module attributes {stable_mosaic.version = 11 : i64} {
  func.func @kan_kernel_resident(%arg0: i32, %arg1: memref<128x128xf32, #tpu.memory_space<vmem>>, %arg2: memref<12x128xf32, #tpu.memory_space<vmem>>, %arg3: memref<36x128xf32, #tpu.memory_space<vmem>>, %arg4: memref<1x128xf32, #tpu.memory_space<vmem>>, %arg5: memref<1152x128xbf16, #tpu.memory_space<vmem>>, %arg6: memref<128x128xf32, #tpu.memory_space<vmem>>) attributes {dimension_semantics = [#tpu.dimension_semantics<parallel>], iteration_bounds = array<i64: 2>, scalar_prefetch = 0 : i64, scratch_operands = 0 : i64, tpu.core_type = #tpu.core_type<tc>, window_params = [{transform_indices = @transform_0, window_bounds = array<i64: 128, 128>}, {pipeline_mode = #tpu.pipeline_mode<synchronous>, transform_indices = @transform_1, window_bounds = array<i64: 12, 128>}, {pipeline_mode = #tpu.pipeline_mode<synchronous>, transform_indices = @transform_2, window_bounds = array<i64: 36, 128>}, {pipeline_mode = #tpu.pipeline_mode<synchronous>, transform_indices = @transform_3, window_bounds = array<i64: 1, 128>}, {pipeline_mode = #tpu.pipeline_mode<synchronous>, transform_indices = @transform_4, window_bounds = array<i64: 1152, 128>}, {transform_indices = @transform_5, window_bounds = array<i64: 128, 128>}]} {
    %c0 = arith.constant 0 : index
    %c0_0 = arith.constant 0 : index
    %0 = vector.load %arg1[%c0, %c0_0] : memref<128x128xf32, #tpu.memory_space<vmem>>, vector<128x128xf32>
    %c0_1 = arith.constant 0 : index
    %c0_2 = arith.constant 0 : index
    %1 = vector.load %arg4[%c0_1, %c0_2] : memref<1x128xf32, #tpu.memory_space<vmem>>, vector<1x128xf32>
    %2 = arith.negf %0 : vector<128x128xf32>
    %3 = math.exp %2 : vector<128x128xf32>
    %cst = arith.constant 1.000000e+00 : f32
    %4 = vector.broadcast %cst : f32 to vector<128x128xf32>
    %5 = arith.addf %4, %3 : vector<128x128xf32>
    %6 = arith.divf %4, %5 : vector<128x128xf32>
    %7 = arith.mulf %0, %6 : vector<128x128xf32>
    %c0_3 = arith.constant 0 : index
    %c0_4 = arith.constant 0 : index
    %8 = vector.load %arg2[%c0_3, %c0_4] : memref<12x128xf32, #tpu.memory_space<vmem>>, vector<1x128xf32>
    %c1 = arith.constant 1 : index
    %c0_5 = arith.constant 0 : index
    %9 = vector.load %arg2[%c1, %c0_5] : memref<12x128xf32, #tpu.memory_space<vmem>>, vector<1x128xf32>
    %10 = vector.broadcast %8 : vector<1x128xf32> to vector<128x128xf32>
    %11 = arith.cmpf oge, %0, %10 : vector<128x128xf32>
    %12 = vector.broadcast %9 : vector<1x128xf32> to vector<128x128xf32>
    %13 = arith.cmpf olt, %0, %12 : vector<128x128xf32>
    %14 = arith.andi %11, %13 : vector<128x128xi1>
    %15 = arith.extui %14 : vector<128x128xi1> to vector<128x128xi32>
    %16 = arith.sitofp %15 : vector<128x128xi32> to vector<128x128xf32>
    %c2 = arith.constant 2 : index
    %c0_6 = arith.constant 0 : index
    %17 = vector.load %arg2[%c2, %c0_6] : memref<12x128xf32, #tpu.memory_space<vmem>>, vector<1x128xf32>
    %18 = vector.broadcast %9 : vector<1x128xf32> to vector<128x128xf32>
    %19 = arith.cmpf oge, %0, %18 : vector<128x128xf32>
    %20 = vector.broadcast %17 : vector<1x128xf32> to vector<128x128xf32>
    %21 = arith.cmpf olt, %0, %20 : vector<128x128xf32>
    %22 = arith.andi %19, %21 : vector<128x128xi1>
    %23 = arith.extui %22 : vector<128x128xi1> to vector<128x128xi32>
    %24 = arith.sitofp %23 : vector<128x128xi32> to vector<128x128xf32>
    %c3 = arith.constant 3 : index
    %c0_7 = arith.constant 0 : index
    %25 = vector.load %arg2[%c3, %c0_7] : memref<12x128xf32, #tpu.memory_space<vmem>>, vector<1x128xf32>
    %26 = vector.broadcast %17 : vector<1x128xf32> to vector<128x128xf32>
    %27 = arith.cmpf oge, %0, %26 : vector<128x128xf32>
    %28 = vector.broadcast %25 : vector<1x128xf32> to vector<128x128xf32>
    %29 = arith.cmpf olt, %0, %28 : vector<128x128xf32>
    %30 = arith.andi %27, %29 : vector<128x128xi1>
    %31 = arith.extui %30 : vector<128x128xi1> to vector<128x128xi32>
    %32 = arith.sitofp %31 : vector<128x128xi32> to vector<128x128xf32>
    %c4 = arith.constant 4 : index
    %c0_8 = arith.constant 0 : index
    %33 = vector.load %arg2[%c4, %c0_8] : memref<12x128xf32, #tpu.memory_space<vmem>>, vector<1x128xf32>
    %34 = vector.broadcast %25 : vector<1x128xf32> to vector<128x128xf32>
    %35 = arith.cmpf oge, %0, %34 : vector<128x128xf32>
    %36 = vector.broadcast %33 : vector<1x128xf32> to vector<128x128xf32>
    %37 = arith.cmpf olt, %0, %36 : vector<128x128xf32>
    %38 = arith.andi %35, %37 : vector<128x128xi1>
    %39 = arith.extui %38 : vector<128x128xi1> to vector<128x128xi32>
    %40 = arith.sitofp %39 : vector<128x128xi32> to vector<128x128xf32>
    %c5 = arith.constant 5 : index
    %c0_9 = arith.constant 0 : index
    %41 = vector.load %arg2[%c5, %c0_9] : memref<12x128xf32, #tpu.memory_space<vmem>>, vector<1x128xf32>
    %42 = vector.broadcast %33 : vector<1x128xf32> to vector<128x128xf32>
    %43 = arith.cmpf oge, %0, %42 : vector<128x128xf32>
    %44 = vector.broadcast %41 : vector<1x128xf32> to vector<128x128xf32>
    %45 = arith.cmpf olt, %0, %44 : vector<128x128xf32>
    %46 = arith.andi %43, %45 : vector<128x128xi1>
    %47 = arith.extui %46 : vector<128x128xi1> to vector<128x128xi32>
    %48 = arith.sitofp %47 : vector<128x128xi32> to vector<128x128xf32>
    %c6 = arith.constant 6 : index
    %c0_10 = arith.constant 0 : index
    %49 = vector.load %arg2[%c6, %c0_10] : memref<12x128xf32, #tpu.memory_space<vmem>>, vector<1x128xf32>
    %50 = vector.broadcast %41 : vector<1x128xf32> to vector<128x128xf32>
    %51 = arith.cmpf oge, %0, %50 : vector<128x128xf32>
    %52 = vector.broadcast %49 : vector<1x128xf32> to vector<128x128xf32>
    %53 = arith.cmpf olt, %0, %52 : vector<128x128xf32>
    %54 = arith.andi %51, %53 : vector<128x128xi1>
    %55 = arith.extui %54 : vector<128x128xi1> to vector<128x128xi32>
    %56 = arith.sitofp %55 : vector<128x128xi32> to vector<128x128xf32>
    %c7 = arith.constant 7 : index
    %c0_11 = arith.constant 0 : index
    %57 = vector.load %arg2[%c7, %c0_11] : memref<12x128xf32, #tpu.memory_space<vmem>>, vector<1x128xf32>
    %58 = vector.broadcast %49 : vector<1x128xf32> to vector<128x128xf32>
    %59 = arith.cmpf oge, %0, %58 : vector<128x128xf32>
    %60 = vector.broadcast %57 : vector<1x128xf32> to vector<128x128xf32>
    %61 = arith.cmpf olt, %0, %60 : vector<128x128xf32>
    %62 = arith.andi %59, %61 : vector<128x128xi1>
    %63 = arith.extui %62 : vector<128x128xi1> to vector<128x128xi32>
    %64 = arith.sitofp %63 : vector<128x128xi32> to vector<128x128xf32>
    %c8 = arith.constant 8 : index
    %c0_12 = arith.constant 0 : index
    %65 = vector.load %arg2[%c8, %c0_12] : memref<12x128xf32, #tpu.memory_space<vmem>>, vector<1x128xf32>
    %66 = vector.broadcast %57 : vector<1x128xf32> to vector<128x128xf32>
    %67 = arith.cmpf oge, %0, %66 : vector<128x128xf32>
    %68 = vector.broadcast %65 : vector<1x128xf32> to vector<128x128xf32>
    %69 = arith.cmpf olt, %0, %68 : vector<128x128xf32>
    %70 = arith.andi %67, %69 : vector<128x128xi1>
    %71 = arith.extui %70 : vector<128x128xi1> to vector<128x128xi32>
    %72 = arith.sitofp %71 : vector<128x128xi32> to vector<128x128xf32>
    %c9 = arith.constant 9 : index
    %c0_13 = arith.constant 0 : index
    %73 = vector.load %arg2[%c9, %c0_13] : memref<12x128xf32, #tpu.memory_space<vmem>>, vector<1x128xf32>
    %74 = vector.broadcast %65 : vector<1x128xf32> to vector<128x128xf32>
    %75 = arith.cmpf oge, %0, %74 : vector<128x128xf32>
    %76 = vector.broadcast %73 : vector<1x128xf32> to vector<128x128xf32>
    %77 = arith.cmpf olt, %0, %76 : vector<128x128xf32>
    %78 = arith.andi %75, %77 : vector<128x128xi1>
    %79 = arith.extui %78 : vector<128x128xi1> to vector<128x128xi32>
    %80 = arith.sitofp %79 : vector<128x128xi32> to vector<128x128xf32>
    %c10 = arith.constant 10 : index
    %c0_14 = arith.constant 0 : index
    %81 = vector.load %arg2[%c10, %c0_14] : memref<12x128xf32, #tpu.memory_space<vmem>>, vector<1x128xf32>
    %82 = vector.broadcast %73 : vector<1x128xf32> to vector<128x128xf32>
    %83 = arith.cmpf oge, %0, %82 : vector<128x128xf32>
    %84 = vector.broadcast %81 : vector<1x128xf32> to vector<128x128xf32>
    %85 = arith.cmpf olt, %0, %84 : vector<128x128xf32>
    %86 = arith.andi %83, %85 : vector<128x128xi1>
    %87 = arith.extui %86 : vector<128x128xi1> to vector<128x128xi32>
    %88 = arith.sitofp %87 : vector<128x128xi32> to vector<128x128xf32>
    %c11 = arith.constant 11 : index
    %c0_15 = arith.constant 0 : index
    %89 = vector.load %arg2[%c11, %c0_15] : memref<12x128xf32, #tpu.memory_space<vmem>>, vector<1x128xf32>
    %90 = vector.broadcast %81 : vector<1x128xf32> to vector<128x128xf32>
    %91 = arith.cmpf oge, %0, %90 : vector<128x128xf32>
    %92 = vector.broadcast %89 : vector<1x128xf32> to vector<128x128xf32>
    %93 = arith.cmpf olt, %0, %92 : vector<128x128xf32>
    %94 = arith.andi %91, %93 : vector<128x128xi1>
    %95 = arith.extui %94 : vector<128x128xi1> to vector<128x128xi32>
    %96 = arith.sitofp %95 : vector<128x128xi32> to vector<128x128xf32>
    %c0_16 = arith.constant 0 : index
    %c0_17 = arith.constant 0 : index
    %97 = vector.load %arg2[%c0_16, %c0_17] : memref<12x128xf32, #tpu.memory_space<vmem>>, vector<1x128xf32>
    %98 = vector.broadcast %97 : vector<1x128xf32> to vector<128x128xf32>
    %99 = arith.subf %0, %98 : vector<128x128xf32>
    %c0_18 = arith.constant 0 : index
    %c0_19 = arith.constant 0 : index
    %100 = vector.load %arg3[%c0_18, %c0_19] : memref<36x128xf32, #tpu.memory_space<vmem>>, vector<1x128xf32>
    %101 = vector.broadcast %100 : vector<1x128xf32> to vector<128x128xf32>
    %102 = arith.mulf %101, %16 : vector<128x128xf32>
    %103 = arith.mulf %99, %102 : vector<128x128xf32>
    %c2_20 = arith.constant 2 : index
    %c0_21 = arith.constant 0 : index
    %104 = vector.load %arg2[%c2_20, %c0_21] : memref<12x128xf32, #tpu.memory_space<vmem>>, vector<1x128xf32>
    %105 = vector.broadcast %104 : vector<1x128xf32> to vector<128x128xf32>
    %106 = arith.subf %105, %0 : vector<128x128xf32>
    %c1_22 = arith.constant 1 : index
    %c0_23 = arith.constant 0 : index
    %107 = vector.load %arg3[%c1_22, %c0_23] : memref<36x128xf32, #tpu.memory_space<vmem>>, vector<1x128xf32>
    %108 = vector.broadcast %107 : vector<1x128xf32> to vector<128x128xf32>
    %109 = arith.mulf %108, %24 : vector<128x128xf32>
    %110 = arith.mulf %106, %109 : vector<128x128xf32>
    %111 = arith.addf %103, %110 : vector<128x128xf32>
    %c1_24 = arith.constant 1 : index
    %c0_25 = arith.constant 0 : index
    %112 = vector.load %arg2[%c1_24, %c0_25] : memref<12x128xf32, #tpu.memory_space<vmem>>, vector<1x128xf32>
    %113 = vector.broadcast %112 : vector<1x128xf32> to vector<128x128xf32>
    %114 = arith.subf %0, %113 : vector<128x128xf32>
    %c1_26 = arith.constant 1 : index
    %c0_27 = arith.constant 0 : index
    %115 = vector.load %arg3[%c1_26, %c0_27] : memref<36x128xf32, #tpu.memory_space<vmem>>, vector<1x128xf32>
    %116 = vector.broadcast %115 : vector<1x128xf32> to vector<128x128xf32>
    %117 = arith.mulf %116, %24 : vector<128x128xf32>
    %118 = arith.mulf %114, %117 : vector<128x128xf32>
    %c3_28 = arith.constant 3 : index
    %c0_29 = arith.constant 0 : index
    %119 = vector.load %arg2[%c3_28, %c0_29] : memref<12x128xf32, #tpu.memory_space<vmem>>, vector<1x128xf32>
    %120 = vector.broadcast %119 : vector<1x128xf32> to vector<128x128xf32>
    %121 = arith.subf %120, %0 : vector<128x128xf32>
    %c2_30 = arith.constant 2 : index
    %c0_31 = arith.constant 0 : index
    %122 = vector.load %arg3[%c2_30, %c0_31] : memref<36x128xf32, #tpu.memory_space<vmem>>, vector<1x128xf32>
    %123 = vector.broadcast %122 : vector<1x128xf32> to vector<128x128xf32>
    %124 = arith.mulf %123, %32 : vector<128x128xf32>
    %125 = arith.mulf %121, %124 : vector<128x128xf32>
    %126 = arith.addf %118, %125 : vector<128x128xf32>
    %c2_32 = arith.constant 2 : index
    %c0_33 = arith.constant 0 : index
    %127 = vector.load %arg2[%c2_32, %c0_33] : memref<12x128xf32, #tpu.memory_space<vmem>>, vector<1x128xf32>
    %128 = vector.broadcast %127 : vector<1x128xf32> to vector<128x128xf32>
    %129 = arith.subf %0, %128 : vector<128x128xf32>
    %c2_34 = arith.constant 2 : index
    %c0_35 = arith.constant 0 : index
    %130 = vector.load %arg3[%c2_34, %c0_35] : memref<36x128xf32, #tpu.memory_space<vmem>>, vector<1x128xf32>
    %131 = vector.broadcast %130 : vector<1x128xf32> to vector<128x128xf32>
    %132 = arith.mulf %131, %32 : vector<128x128xf32>
    %133 = arith.mulf %129, %132 : vector<128x128xf32>
    %c4_36 = arith.constant 4 : index
    %c0_37 = arith.constant 0 : index
    %134 = vector.load %arg2[%c4_36, %c0_37] : memref<12x128xf32, #tpu.memory_space<vmem>>, vector<1x128xf32>
    %135 = vector.broadcast %134 : vector<1x128xf32> to vector<128x128xf32>
    %136 = arith.subf %135, %0 : vector<128x128xf32>
    %c3_38 = arith.constant 3 : index
    %c0_39 = arith.constant 0 : index
    %137 = vector.load %arg3[%c3_38, %c0_39] : memref<36x128xf32, #tpu.memory_space<vmem>>, vector<1x128xf32>
    %138 = vector.broadcast %137 : vector<1x128xf32> to vector<128x128xf32>
    %139 = arith.mulf %138, %40 : vector<128x128xf32>
    %140 = arith.mulf %136, %139 : vector<128x128xf32>
    %141 = arith.addf %133, %140 : vector<128x128xf32>
    %c3_40 = arith.constant 3 : index
    %c0_41 = arith.constant 0 : index
    %142 = vector.load %arg2[%c3_40, %c0_41] : memref<12x128xf32, #tpu.memory_space<vmem>>, vector<1x128xf32>
    %143 = vector.broadcast %142 : vector<1x128xf32> to vector<128x128xf32>
    %144 = arith.subf %0, %143 : vector<128x128xf32>
    %c3_42 = arith.constant 3 : index
    %c0_43 = arith.constant 0 : index
    %145 = vector.load %arg3[%c3_42, %c0_43] : memref<36x128xf32, #tpu.memory_space<vmem>>, vector<1x128xf32>
    %146 = vector.broadcast %145 : vector<1x128xf32> to vector<128x128xf32>
    %147 = arith.mulf %146, %40 : vector<128x128xf32>
    %148 = arith.mulf %144, %147 : vector<128x128xf32>
    %c5_44 = arith.constant 5 : index
    %c0_45 = arith.constant 0 : index
    %149 = vector.load %arg2[%c5_44, %c0_45] : memref<12x128xf32, #tpu.memory_space<vmem>>, vector<1x128xf32>
    %150 = vector.broadcast %149 : vector<1x128xf32> to vector<128x128xf32>
    %151 = arith.subf %150, %0 : vector<128x128xf32>
    %c4_46 = arith.constant 4 : index
    %c0_47 = arith.constant 0 : index
    %152 = vector.load %arg3[%c4_46, %c0_47] : memref<36x128xf32, #tpu.memory_space<vmem>>, vector<1x128xf32>
    %153 = vector.broadcast %152 : vector<1x128xf32> to vector<128x128xf32>
    %154 = arith.mulf %153, %48 : vector<128x128xf32>
    %155 = arith.mulf %151, %154 : vector<128x128xf32>
    %156 = arith.addf %148, %155 : vector<128x128xf32>
    %c4_48 = arith.constant 4 : index
    %c0_49 = arith.constant 0 : index
    %157 = vector.load %arg2[%c4_48, %c0_49] : memref<12x128xf32, #tpu.memory_space<vmem>>, vector<1x128xf32>
    %158 = vector.broadcast %157 : vector<1x128xf32> to vector<128x128xf32>
    %159 = arith.subf %0, %158 : vector<128x128xf32>
    %c4_50 = arith.constant 4 : index
    %c0_51 = arith.constant 0 : index
    %160 = vector.load %arg3[%c4_50, %c0_51] : memref<36x128xf32, #tpu.memory_space<vmem>>, vector<1x128xf32>
    %161 = vector.broadcast %160 : vector<1x128xf32> to vector<128x128xf32>
    %162 = arith.mulf %161, %48 : vector<128x128xf32>
    %163 = arith.mulf %159, %162 : vector<128x128xf32>
    %c6_52 = arith.constant 6 : index
    %c0_53 = arith.constant 0 : index
    %164 = vector.load %arg2[%c6_52, %c0_53] : memref<12x128xf32, #tpu.memory_space<vmem>>, vector<1x128xf32>
    %165 = vector.broadcast %164 : vector<1x128xf32> to vector<128x128xf32>
    %166 = arith.subf %165, %0 : vector<128x128xf32>
    %c5_54 = arith.constant 5 : index
    %c0_55 = arith.constant 0 : index
    %167 = vector.load %arg3[%c5_54, %c0_55] : memref<36x128xf32, #tpu.memory_space<vmem>>, vector<1x128xf32>
    %168 = vector.broadcast %167 : vector<1x128xf32> to vector<128x128xf32>
    %169 = arith.mulf %168, %56 : vector<128x128xf32>
    %170 = arith.mulf %166, %169 : vector<128x128xf32>
    %171 = arith.addf %163, %170 : vector<128x128xf32>
    %c5_56 = arith.constant 5 : index
    %c0_57 = arith.constant 0 : index
    %172 = vector.load %arg2[%c5_56, %c0_57] : memref<12x128xf32, #tpu.memory_space<vmem>>, vector<1x128xf32>
    %173 = vector.broadcast %172 : vector<1x128xf32> to vector<128x128xf32>
    %174 = arith.subf %0, %173 : vector<128x128xf32>
    %c5_58 = arith.constant 5 : index
    %c0_59 = arith.constant 0 : index
    %175 = vector.load %arg3[%c5_58, %c0_59] : memref<36x128xf32, #tpu.memory_space<vmem>>, vector<1x128xf32>
    %176 = vector.broadcast %175 : vector<1x128xf32> to vector<128x128xf32>
    %177 = arith.mulf %176, %56 : vector<128x128xf32>
    %178 = arith.mulf %174, %177 : vector<128x128xf32>
    %c7_60 = arith.constant 7 : index
    %c0_61 = arith.constant 0 : index
    %179 = vector.load %arg2[%c7_60, %c0_61] : memref<12x128xf32, #tpu.memory_space<vmem>>, vector<1x128xf32>
    %180 = vector.broadcast %179 : vector<1x128xf32> to vector<128x128xf32>
    %181 = arith.subf %180, %0 : vector<128x128xf32>
    %c6_62 = arith.constant 6 : index
    %c0_63 = arith.constant 0 : index
    %182 = vector.load %arg3[%c6_62, %c0_63] : memref<36x128xf32, #tpu.memory_space<vmem>>, vector<1x128xf32>
    %183 = vector.broadcast %182 : vector<1x128xf32> to vector<128x128xf32>
    %184 = arith.mulf %183, %64 : vector<128x128xf32>
    %185 = arith.mulf %181, %184 : vector<128x128xf32>
    %186 = arith.addf %178, %185 : vector<128x128xf32>
    %c6_64 = arith.constant 6 : index
    %c0_65 = arith.constant 0 : index
    %187 = vector.load %arg2[%c6_64, %c0_65] : memref<12x128xf32, #tpu.memory_space<vmem>>, vector<1x128xf32>
    %188 = vector.broadcast %187 : vector<1x128xf32> to vector<128x128xf32>
    %189 = arith.subf %0, %188 : vector<128x128xf32>
    %c6_66 = arith.constant 6 : index
    %c0_67 = arith.constant 0 : index
    %190 = vector.load %arg3[%c6_66, %c0_67] : memref<36x128xf32, #tpu.memory_space<vmem>>, vector<1x128xf32>
    %191 = vector.broadcast %190 : vector<1x128xf32> to vector<128x128xf32>
    %192 = arith.mulf %191, %64 : vector<128x128xf32>
    %193 = arith.mulf %189, %192 : vector<128x128xf32>
    %c8_68 = arith.constant 8 : index
    %c0_69 = arith.constant 0 : index
    %194 = vector.load %arg2[%c8_68, %c0_69] : memref<12x128xf32, #tpu.memory_space<vmem>>, vector<1x128xf32>
    %195 = vector.broadcast %194 : vector<1x128xf32> to vector<128x128xf32>
    %196 = arith.subf %195, %0 : vector<128x128xf32>
    %c7_70 = arith.constant 7 : index
    %c0_71 = arith.constant 0 : index
    %197 = vector.load %arg3[%c7_70, %c0_71] : memref<36x128xf32, #tpu.memory_space<vmem>>, vector<1x128xf32>
    %198 = vector.broadcast %197 : vector<1x128xf32> to vector<128x128xf32>
    %199 = arith.mulf %198, %72 : vector<128x128xf32>
    %200 = arith.mulf %196, %199 : vector<128x128xf32>
    %201 = arith.addf %193, %200 : vector<128x128xf32>
    %c7_72 = arith.constant 7 : index
    %c0_73 = arith.constant 0 : index
    %202 = vector.load %arg2[%c7_72, %c0_73] : memref<12x128xf32, #tpu.memory_space<vmem>>, vector<1x128xf32>
    %203 = vector.broadcast %202 : vector<1x128xf32> to vector<128x128xf32>
    %204 = arith.subf %0, %203 : vector<128x128xf32>
    %c7_74 = arith.constant 7 : index
    %c0_75 = arith.constant 0 : index
    %205 = vector.load %arg3[%c7_74, %c0_75] : memref<36x128xf32, #tpu.memory_space<vmem>>, vector<1x128xf32>
    %206 = vector.broadcast %205 : vector<1x128xf32> to vector<128x128xf32>
    %207 = arith.mulf %206, %72 : vector<128x128xf32>
    %208 = arith.mulf %204, %207 : vector<128x128xf32>
    %c9_76 = arith.constant 9 : index
    %c0_77 = arith.constant 0 : index
    %209 = vector.load %arg2[%c9_76, %c0_77] : memref<12x128xf32, #tpu.memory_space<vmem>>, vector<1x128xf32>
    %210 = vector.broadcast %209 : vector<1x128xf32> to vector<128x128xf32>
    %211 = arith.subf %210, %0 : vector<128x128xf32>
    %c8_78 = arith.constant 8 : index
    %c0_79 = arith.constant 0 : index
    %212 = vector.load %arg3[%c8_78, %c0_79] : memref<36x128xf32, #tpu.memory_space<vmem>>, vector<1x128xf32>
    %213 = vector.broadcast %212 : vector<1x128xf32> to vector<128x128xf32>
    %214 = arith.mulf %213, %80 : vector<128x128xf32>
    %215 = arith.mulf %211, %214 : vector<128x128xf32>
    %216 = arith.addf %208, %215 : vector<128x128xf32>
    %c8_80 = arith.constant 8 : index
    %c0_81 = arith.constant 0 : index
    %217 = vector.load %arg2[%c8_80, %c0_81] : memref<12x128xf32, #tpu.memory_space<vmem>>, vector<1x128xf32>
    %218 = vector.broadcast %217 : vector<1x128xf32> to vector<128x128xf32>
    %219 = arith.subf %0, %218 : vector<128x128xf32>
    %c8_82 = arith.constant 8 : index
    %c0_83 = arith.constant 0 : index
    %220 = vector.load %arg3[%c8_82, %c0_83] : memref<36x128xf32, #tpu.memory_space<vmem>>, vector<1x128xf32>
    %221 = vector.broadcast %220 : vector<1x128xf32> to vector<128x128xf32>
    %222 = arith.mulf %221, %80 : vector<128x128xf32>
    %223 = arith.mulf %219, %222 : vector<128x128xf32>
    %c10_84 = arith.constant 10 : index
    %c0_85 = arith.constant 0 : index
    %224 = vector.load %arg2[%c10_84, %c0_85] : memref<12x128xf32, #tpu.memory_space<vmem>>, vector<1x128xf32>
    %225 = vector.broadcast %224 : vector<1x128xf32> to vector<128x128xf32>
    %226 = arith.subf %225, %0 : vector<128x128xf32>
    %c9_86 = arith.constant 9 : index
    %c0_87 = arith.constant 0 : index
    %227 = vector.load %arg3[%c9_86, %c0_87] : memref<36x128xf32, #tpu.memory_space<vmem>>, vector<1x128xf32>
    %228 = vector.broadcast %227 : vector<1x128xf32> to vector<128x128xf32>
    %229 = arith.mulf %228, %88 : vector<128x128xf32>
    %230 = arith.mulf %226, %229 : vector<128x128xf32>
    %231 = arith.addf %223, %230 : vector<128x128xf32>
    %c9_88 = arith.constant 9 : index
    %c0_89 = arith.constant 0 : index
    %232 = vector.load %arg2[%c9_88, %c0_89] : memref<12x128xf32, #tpu.memory_space<vmem>>, vector<1x128xf32>
    %233 = vector.broadcast %232 : vector<1x128xf32> to vector<128x128xf32>
    %234 = arith.subf %0, %233 : vector<128x128xf32>
    %c9_90 = arith.constant 9 : index
    %c0_91 = arith.constant 0 : index
    %235 = vector.load %arg3[%c9_90, %c0_91] : memref<36x128xf32, #tpu.memory_space<vmem>>, vector<1x128xf32>
    %236 = vector.broadcast %235 : vector<1x128xf32> to vector<128x128xf32>
    %237 = arith.mulf %236, %88 : vector<128x128xf32>
    %238 = arith.mulf %234, %237 : vector<128x128xf32>
    %c11_92 = arith.constant 11 : index
    %c0_93 = arith.constant 0 : index
    %239 = vector.load %arg2[%c11_92, %c0_93] : memref<12x128xf32, #tpu.memory_space<vmem>>, vector<1x128xf32>
    %240 = vector.broadcast %239 : vector<1x128xf32> to vector<128x128xf32>
    %241 = arith.subf %240, %0 : vector<128x128xf32>
    %c10_94 = arith.constant 10 : index
    %c0_95 = arith.constant 0 : index
    %242 = vector.load %arg3[%c10_94, %c0_95] : memref<36x128xf32, #tpu.memory_space<vmem>>, vector<1x128xf32>
    %243 = vector.broadcast %242 : vector<1x128xf32> to vector<128x128xf32>
    %244 = arith.mulf %243, %96 : vector<128x128xf32>
    %245 = arith.mulf %241, %244 : vector<128x128xf32>
    %246 = arith.addf %238, %245 : vector<128x128xf32>
    %c0_96 = arith.constant 0 : index
    %c0_97 = arith.constant 0 : index
    %247 = vector.load %arg2[%c0_96, %c0_97] : memref<12x128xf32, #tpu.memory_space<vmem>>, vector<1x128xf32>
    %248 = vector.broadcast %247 : vector<1x128xf32> to vector<128x128xf32>
    %249 = arith.subf %0, %248 : vector<128x128xf32>
    %c12 = arith.constant 12 : index
    %c0_98 = arith.constant 0 : index
    %250 = vector.load %arg3[%c12, %c0_98] : memref<36x128xf32, #tpu.memory_space<vmem>>, vector<1x128xf32>
    %251 = vector.broadcast %250 : vector<1x128xf32> to vector<128x128xf32>
    %252 = arith.mulf %251, %111 : vector<128x128xf32>
    %253 = arith.mulf %249, %252 : vector<128x128xf32>
    %c3_99 = arith.constant 3 : index
    %c0_100 = arith.constant 0 : index
    %254 = vector.load %arg2[%c3_99, %c0_100] : memref<12x128xf32, #tpu.memory_space<vmem>>, vector<1x128xf32>
    %255 = vector.broadcast %254 : vector<1x128xf32> to vector<128x128xf32>
    %256 = arith.subf %255, %0 : vector<128x128xf32>
    %c13 = arith.constant 13 : index
    %c0_101 = arith.constant 0 : index
    %257 = vector.load %arg3[%c13, %c0_101] : memref<36x128xf32, #tpu.memory_space<vmem>>, vector<1x128xf32>
    %258 = vector.broadcast %257 : vector<1x128xf32> to vector<128x128xf32>
    %259 = arith.mulf %258, %126 : vector<128x128xf32>
    %260 = arith.mulf %256, %259 : vector<128x128xf32>
    %261 = arith.addf %253, %260 : vector<128x128xf32>
    %c1_102 = arith.constant 1 : index
    %c0_103 = arith.constant 0 : index
    %262 = vector.load %arg2[%c1_102, %c0_103] : memref<12x128xf32, #tpu.memory_space<vmem>>, vector<1x128xf32>
    %263 = vector.broadcast %262 : vector<1x128xf32> to vector<128x128xf32>
    %264 = arith.subf %0, %263 : vector<128x128xf32>
    %c13_104 = arith.constant 13 : index
    %c0_105 = arith.constant 0 : index
    %265 = vector.load %arg3[%c13_104, %c0_105] : memref<36x128xf32, #tpu.memory_space<vmem>>, vector<1x128xf32>
    %266 = vector.broadcast %265 : vector<1x128xf32> to vector<128x128xf32>
    %267 = arith.mulf %266, %126 : vector<128x128xf32>
    %268 = arith.mulf %264, %267 : vector<128x128xf32>
    %c4_106 = arith.constant 4 : index
    %c0_107 = arith.constant 0 : index
    %269 = vector.load %arg2[%c4_106, %c0_107] : memref<12x128xf32, #tpu.memory_space<vmem>>, vector<1x128xf32>
    %270 = vector.broadcast %269 : vector<1x128xf32> to vector<128x128xf32>
    %271 = arith.subf %270, %0 : vector<128x128xf32>
    %c14 = arith.constant 14 : index
    %c0_108 = arith.constant 0 : index
    %272 = vector.load %arg3[%c14, %c0_108] : memref<36x128xf32, #tpu.memory_space<vmem>>, vector<1x128xf32>
    %273 = vector.broadcast %272 : vector<1x128xf32> to vector<128x128xf32>
    %274 = arith.mulf %273, %141 : vector<128x128xf32>
    %275 = arith.mulf %271, %274 : vector<128x128xf32>
    %276 = arith.addf %268, %275 : vector<128x128xf32>
    %c2_109 = arith.constant 2 : index
    %c0_110 = arith.constant 0 : index
    %277 = vector.load %arg2[%c2_109, %c0_110] : memref<12x128xf32, #tpu.memory_space<vmem>>, vector<1x128xf32>
    %278 = vector.broadcast %277 : vector<1x128xf32> to vector<128x128xf32>
    %279 = arith.subf %0, %278 : vector<128x128xf32>
    %c14_111 = arith.constant 14 : index
    %c0_112 = arith.constant 0 : index
    %280 = vector.load %arg3[%c14_111, %c0_112] : memref<36x128xf32, #tpu.memory_space<vmem>>, vector<1x128xf32>
    %281 = vector.broadcast %280 : vector<1x128xf32> to vector<128x128xf32>
    %282 = arith.mulf %281, %141 : vector<128x128xf32>
    %283 = arith.mulf %279, %282 : vector<128x128xf32>
    %c5_113 = arith.constant 5 : index
    %c0_114 = arith.constant 0 : index
    %284 = vector.load %arg2[%c5_113, %c0_114] : memref<12x128xf32, #tpu.memory_space<vmem>>, vector<1x128xf32>
    %285 = vector.broadcast %284 : vector<1x128xf32> to vector<128x128xf32>
    %286 = arith.subf %285, %0 : vector<128x128xf32>
    %c15 = arith.constant 15 : index
    %c0_115 = arith.constant 0 : index
    %287 = vector.load %arg3[%c15, %c0_115] : memref<36x128xf32, #tpu.memory_space<vmem>>, vector<1x128xf32>
    %288 = vector.broadcast %287 : vector<1x128xf32> to vector<128x128xf32>
    %289 = arith.mulf %288, %156 : vector<128x128xf32>
    %290 = arith.mulf %286, %289 : vector<128x128xf32>
    %291 = arith.addf %283, %290 : vector<128x128xf32>
    %c3_116 = arith.constant 3 : index
    %c0_117 = arith.constant 0 : index
    %292 = vector.load %arg2[%c3_116, %c0_117] : memref<12x128xf32, #tpu.memory_space<vmem>>, vector<1x128xf32>
    %293 = vector.broadcast %292 : vector<1x128xf32> to vector<128x128xf32>
    %294 = arith.subf %0, %293 : vector<128x128xf32>
    %c15_118 = arith.constant 15 : index
    %c0_119 = arith.constant 0 : index
    %295 = vector.load %arg3[%c15_118, %c0_119] : memref<36x128xf32, #tpu.memory_space<vmem>>, vector<1x128xf32>
    %296 = vector.broadcast %295 : vector<1x128xf32> to vector<128x128xf32>
    %297 = arith.mulf %296, %156 : vector<128x128xf32>
    %298 = arith.mulf %294, %297 : vector<128x128xf32>
    %c6_120 = arith.constant 6 : index
    %c0_121 = arith.constant 0 : index
    %299 = vector.load %arg2[%c6_120, %c0_121] : memref<12x128xf32, #tpu.memory_space<vmem>>, vector<1x128xf32>
    %300 = vector.broadcast %299 : vector<1x128xf32> to vector<128x128xf32>
    %301 = arith.subf %300, %0 : vector<128x128xf32>
    %c16 = arith.constant 16 : index
    %c0_122 = arith.constant 0 : index
    %302 = vector.load %arg3[%c16, %c0_122] : memref<36x128xf32, #tpu.memory_space<vmem>>, vector<1x128xf32>
    %303 = vector.broadcast %302 : vector<1x128xf32> to vector<128x128xf32>
    %304 = arith.mulf %303, %171 : vector<128x128xf32>
    %305 = arith.mulf %301, %304 : vector<128x128xf32>
    %306 = arith.addf %298, %305 : vector<128x128xf32>
    %c4_123 = arith.constant 4 : index
    %c0_124 = arith.constant 0 : index
    %307 = vector.load %arg2[%c4_123, %c0_124] : memref<12x128xf32, #tpu.memory_space<vmem>>, vector<1x128xf32>
    %308 = vector.broadcast %307 : vector<1x128xf32> to vector<128x128xf32>
    %309 = arith.subf %0, %308 : vector<128x128xf32>
    %c16_125 = arith.constant 16 : index
    %c0_126 = arith.constant 0 : index
    %310 = vector.load %arg3[%c16_125, %c0_126] : memref<36x128xf32, #tpu.memory_space<vmem>>, vector<1x128xf32>
    %311 = vector.broadcast %310 : vector<1x128xf32> to vector<128x128xf32>
    %312 = arith.mulf %311, %171 : vector<128x128xf32>
    %313 = arith.mulf %309, %312 : vector<128x128xf32>
    %c7_127 = arith.constant 7 : index
    %c0_128 = arith.constant 0 : index
    %314 = vector.load %arg2[%c7_127, %c0_128] : memref<12x128xf32, #tpu.memory_space<vmem>>, vector<1x128xf32>
    %315 = vector.broadcast %314 : vector<1x128xf32> to vector<128x128xf32>
    %316 = arith.subf %315, %0 : vector<128x128xf32>
    %c17 = arith.constant 17 : index
    %c0_129 = arith.constant 0 : index
    %317 = vector.load %arg3[%c17, %c0_129] : memref<36x128xf32, #tpu.memory_space<vmem>>, vector<1x128xf32>
    %318 = vector.broadcast %317 : vector<1x128xf32> to vector<128x128xf32>
    %319 = arith.mulf %318, %186 : vector<128x128xf32>
    %320 = arith.mulf %316, %319 : vector<128x128xf32>
    %321 = arith.addf %313, %320 : vector<128x128xf32>
    %c5_130 = arith.constant 5 : index
    %c0_131 = arith.constant 0 : index
    %322 = vector.load %arg2[%c5_130, %c0_131] : memref<12x128xf32, #tpu.memory_space<vmem>>, vector<1x128xf32>
    %323 = vector.broadcast %322 : vector<1x128xf32> to vector<128x128xf32>
    %324 = arith.subf %0, %323 : vector<128x128xf32>
    %c17_132 = arith.constant 17 : index
    %c0_133 = arith.constant 0 : index
    %325 = vector.load %arg3[%c17_132, %c0_133] : memref<36x128xf32, #tpu.memory_space<vmem>>, vector<1x128xf32>
    %326 = vector.broadcast %325 : vector<1x128xf32> to vector<128x128xf32>
    %327 = arith.mulf %326, %186 : vector<128x128xf32>
    %328 = arith.mulf %324, %327 : vector<128x128xf32>
    %c8_134 = arith.constant 8 : index
    %c0_135 = arith.constant 0 : index
    %329 = vector.load %arg2[%c8_134, %c0_135] : memref<12x128xf32, #tpu.memory_space<vmem>>, vector<1x128xf32>
    %330 = vector.broadcast %329 : vector<1x128xf32> to vector<128x128xf32>
    %331 = arith.subf %330, %0 : vector<128x128xf32>
    %c18 = arith.constant 18 : index
    %c0_136 = arith.constant 0 : index
    %332 = vector.load %arg3[%c18, %c0_136] : memref<36x128xf32, #tpu.memory_space<vmem>>, vector<1x128xf32>
    %333 = vector.broadcast %332 : vector<1x128xf32> to vector<128x128xf32>
    %334 = arith.mulf %333, %201 : vector<128x128xf32>
    %335 = arith.mulf %331, %334 : vector<128x128xf32>
    %336 = arith.addf %328, %335 : vector<128x128xf32>
    %c6_137 = arith.constant 6 : index
    %c0_138 = arith.constant 0 : index
    %337 = vector.load %arg2[%c6_137, %c0_138] : memref<12x128xf32, #tpu.memory_space<vmem>>, vector<1x128xf32>
    %338 = vector.broadcast %337 : vector<1x128xf32> to vector<128x128xf32>
    %339 = arith.subf %0, %338 : vector<128x128xf32>
    %c18_139 = arith.constant 18 : index
    %c0_140 = arith.constant 0 : index
    %340 = vector.load %arg3[%c18_139, %c0_140] : memref<36x128xf32, #tpu.memory_space<vmem>>, vector<1x128xf32>
    %341 = vector.broadcast %340 : vector<1x128xf32> to vector<128x128xf32>
    %342 = arith.mulf %341, %201 : vector<128x128xf32>
    %343 = arith.mulf %339, %342 : vector<128x128xf32>
    %c9_141 = arith.constant 9 : index
    %c0_142 = arith.constant 0 : index
    %344 = vector.load %arg2[%c9_141, %c0_142] : memref<12x128xf32, #tpu.memory_space<vmem>>, vector<1x128xf32>
    %345 = vector.broadcast %344 : vector<1x128xf32> to vector<128x128xf32>
    %346 = arith.subf %345, %0 : vector<128x128xf32>
    %c19 = arith.constant 19 : index
    %c0_143 = arith.constant 0 : index
    %347 = vector.load %arg3[%c19, %c0_143] : memref<36x128xf32, #tpu.memory_space<vmem>>, vector<1x128xf32>
    %348 = vector.broadcast %347 : vector<1x128xf32> to vector<128x128xf32>
    %349 = arith.mulf %348, %216 : vector<128x128xf32>
    %350 = arith.mulf %346, %349 : vector<128x128xf32>
    %351 = arith.addf %343, %350 : vector<128x128xf32>
    %c7_144 = arith.constant 7 : index
    %c0_145 = arith.constant 0 : index
    %352 = vector.load %arg2[%c7_144, %c0_145] : memref<12x128xf32, #tpu.memory_space<vmem>>, vector<1x128xf32>
    %353 = vector.broadcast %352 : vector<1x128xf32> to vector<128x128xf32>
    %354 = arith.subf %0, %353 : vector<128x128xf32>
    %c19_146 = arith.constant 19 : index
    %c0_147 = arith.constant 0 : index
    %355 = vector.load %arg3[%c19_146, %c0_147] : memref<36x128xf32, #tpu.memory_space<vmem>>, vector<1x128xf32>
    %356 = vector.broadcast %355 : vector<1x128xf32> to vector<128x128xf32>
    %357 = arith.mulf %356, %216 : vector<128x128xf32>
    %358 = arith.mulf %354, %357 : vector<128x128xf32>
    %c10_148 = arith.constant 10 : index
    %c0_149 = arith.constant 0 : index
    %359 = vector.load %arg2[%c10_148, %c0_149] : memref<12x128xf32, #tpu.memory_space<vmem>>, vector<1x128xf32>
    %360 = vector.broadcast %359 : vector<1x128xf32> to vector<128x128xf32>
    %361 = arith.subf %360, %0 : vector<128x128xf32>
    %c20 = arith.constant 20 : index
    %c0_150 = arith.constant 0 : index
    %362 = vector.load %arg3[%c20, %c0_150] : memref<36x128xf32, #tpu.memory_space<vmem>>, vector<1x128xf32>
    %363 = vector.broadcast %362 : vector<1x128xf32> to vector<128x128xf32>
    %364 = arith.mulf %363, %231 : vector<128x128xf32>
    %365 = arith.mulf %361, %364 : vector<128x128xf32>
    %366 = arith.addf %358, %365 : vector<128x128xf32>
    %c8_151 = arith.constant 8 : index
    %c0_152 = arith.constant 0 : index
    %367 = vector.load %arg2[%c8_151, %c0_152] : memref<12x128xf32, #tpu.memory_space<vmem>>, vector<1x128xf32>
    %368 = vector.broadcast %367 : vector<1x128xf32> to vector<128x128xf32>
    %369 = arith.subf %0, %368 : vector<128x128xf32>
    %c20_153 = arith.constant 20 : index
    %c0_154 = arith.constant 0 : index
    %370 = vector.load %arg3[%c20_153, %c0_154] : memref<36x128xf32, #tpu.memory_space<vmem>>, vector<1x128xf32>
    %371 = vector.broadcast %370 : vector<1x128xf32> to vector<128x128xf32>
    %372 = arith.mulf %371, %231 : vector<128x128xf32>
    %373 = arith.mulf %369, %372 : vector<128x128xf32>
    %c11_155 = arith.constant 11 : index
    %c0_156 = arith.constant 0 : index
    %374 = vector.load %arg2[%c11_155, %c0_156] : memref<12x128xf32, #tpu.memory_space<vmem>>, vector<1x128xf32>
    %375 = vector.broadcast %374 : vector<1x128xf32> to vector<128x128xf32>
    %376 = arith.subf %375, %0 : vector<128x128xf32>
    %c21 = arith.constant 21 : index
    %c0_157 = arith.constant 0 : index
    %377 = vector.load %arg3[%c21, %c0_157] : memref<36x128xf32, #tpu.memory_space<vmem>>, vector<1x128xf32>
    %378 = vector.broadcast %377 : vector<1x128xf32> to vector<128x128xf32>
    %379 = arith.mulf %378, %246 : vector<128x128xf32>
    %380 = arith.mulf %376, %379 : vector<128x128xf32>
    %381 = arith.addf %373, %380 : vector<128x128xf32>
    %c0_158 = arith.constant 0 : index
    %c0_159 = arith.constant 0 : index
    %382 = vector.load %arg2[%c0_158, %c0_159] : memref<12x128xf32, #tpu.memory_space<vmem>>, vector<1x128xf32>
    %383 = vector.broadcast %382 : vector<1x128xf32> to vector<128x128xf32>
    %384 = arith.subf %0, %383 : vector<128x128xf32>
    %c24 = arith.constant 24 : index
    %c0_160 = arith.constant 0 : index
    %385 = vector.load %arg3[%c24, %c0_160] : memref<36x128xf32, #tpu.memory_space<vmem>>, vector<1x128xf32>
    %386 = vector.broadcast %385 : vector<1x128xf32> to vector<128x128xf32>
    %387 = arith.mulf %386, %261 : vector<128x128xf32>
    %388 = arith.mulf %384, %387 : vector<128x128xf32>
    %c4_161 = arith.constant 4 : index
    %c0_162 = arith.constant 0 : index
    %389 = vector.load %arg2[%c4_161, %c0_162] : memref<12x128xf32, #tpu.memory_space<vmem>>, vector<1x128xf32>
    %390 = vector.broadcast %389 : vector<1x128xf32> to vector<128x128xf32>
    %391 = arith.subf %390, %0 : vector<128x128xf32>
    %c25 = arith.constant 25 : index
    %c0_163 = arith.constant 0 : index
    %392 = vector.load %arg3[%c25, %c0_163] : memref<36x128xf32, #tpu.memory_space<vmem>>, vector<1x128xf32>
    %393 = vector.broadcast %392 : vector<1x128xf32> to vector<128x128xf32>
    %394 = arith.mulf %393, %276 : vector<128x128xf32>
    %395 = arith.mulf %391, %394 : vector<128x128xf32>
    %396 = arith.addf %388, %395 : vector<128x128xf32>
    %c1_164 = arith.constant 1 : index
    %c0_165 = arith.constant 0 : index
    %397 = vector.load %arg2[%c1_164, %c0_165] : memref<12x128xf32, #tpu.memory_space<vmem>>, vector<1x128xf32>
    %398 = vector.broadcast %397 : vector<1x128xf32> to vector<128x128xf32>
    %399 = arith.subf %0, %398 : vector<128x128xf32>
    %c25_166 = arith.constant 25 : index
    %c0_167 = arith.constant 0 : index
    %400 = vector.load %arg3[%c25_166, %c0_167] : memref<36x128xf32, #tpu.memory_space<vmem>>, vector<1x128xf32>
    %401 = vector.broadcast %400 : vector<1x128xf32> to vector<128x128xf32>
    %402 = arith.mulf %401, %276 : vector<128x128xf32>
    %403 = arith.mulf %399, %402 : vector<128x128xf32>
    %c5_168 = arith.constant 5 : index
    %c0_169 = arith.constant 0 : index
    %404 = vector.load %arg2[%c5_168, %c0_169] : memref<12x128xf32, #tpu.memory_space<vmem>>, vector<1x128xf32>
    %405 = vector.broadcast %404 : vector<1x128xf32> to vector<128x128xf32>
    %406 = arith.subf %405, %0 : vector<128x128xf32>
    %c26 = arith.constant 26 : index
    %c0_170 = arith.constant 0 : index
    %407 = vector.load %arg3[%c26, %c0_170] : memref<36x128xf32, #tpu.memory_space<vmem>>, vector<1x128xf32>
    %408 = vector.broadcast %407 : vector<1x128xf32> to vector<128x128xf32>
    %409 = arith.mulf %408, %291 : vector<128x128xf32>
    %410 = arith.mulf %406, %409 : vector<128x128xf32>
    %411 = arith.addf %403, %410 : vector<128x128xf32>
    %c2_171 = arith.constant 2 : index
    %c0_172 = arith.constant 0 : index
    %412 = vector.load %arg2[%c2_171, %c0_172] : memref<12x128xf32, #tpu.memory_space<vmem>>, vector<1x128xf32>
    %413 = vector.broadcast %412 : vector<1x128xf32> to vector<128x128xf32>
    %414 = arith.subf %0, %413 : vector<128x128xf32>
    %c26_173 = arith.constant 26 : index
    %c0_174 = arith.constant 0 : index
    %415 = vector.load %arg3[%c26_173, %c0_174] : memref<36x128xf32, #tpu.memory_space<vmem>>, vector<1x128xf32>
    %416 = vector.broadcast %415 : vector<1x128xf32> to vector<128x128xf32>
    %417 = arith.mulf %416, %291 : vector<128x128xf32>
    %418 = arith.mulf %414, %417 : vector<128x128xf32>
    %c6_175 = arith.constant 6 : index
    %c0_176 = arith.constant 0 : index
    %419 = vector.load %arg2[%c6_175, %c0_176] : memref<12x128xf32, #tpu.memory_space<vmem>>, vector<1x128xf32>
    %420 = vector.broadcast %419 : vector<1x128xf32> to vector<128x128xf32>
    %421 = arith.subf %420, %0 : vector<128x128xf32>
    %c27 = arith.constant 27 : index
    %c0_177 = arith.constant 0 : index
    %422 = vector.load %arg3[%c27, %c0_177] : memref<36x128xf32, #tpu.memory_space<vmem>>, vector<1x128xf32>
    %423 = vector.broadcast %422 : vector<1x128xf32> to vector<128x128xf32>
    %424 = arith.mulf %423, %306 : vector<128x128xf32>
    %425 = arith.mulf %421, %424 : vector<128x128xf32>
    %426 = arith.addf %418, %425 : vector<128x128xf32>
    %c3_178 = arith.constant 3 : index
    %c0_179 = arith.constant 0 : index
    %427 = vector.load %arg2[%c3_178, %c0_179] : memref<12x128xf32, #tpu.memory_space<vmem>>, vector<1x128xf32>
    %428 = vector.broadcast %427 : vector<1x128xf32> to vector<128x128xf32>
    %429 = arith.subf %0, %428 : vector<128x128xf32>
    %c27_180 = arith.constant 27 : index
    %c0_181 = arith.constant 0 : index
    %430 = vector.load %arg3[%c27_180, %c0_181] : memref<36x128xf32, #tpu.memory_space<vmem>>, vector<1x128xf32>
    %431 = vector.broadcast %430 : vector<1x128xf32> to vector<128x128xf32>
    %432 = arith.mulf %431, %306 : vector<128x128xf32>
    %433 = arith.mulf %429, %432 : vector<128x128xf32>
    %c7_182 = arith.constant 7 : index
    %c0_183 = arith.constant 0 : index
    %434 = vector.load %arg2[%c7_182, %c0_183] : memref<12x128xf32, #tpu.memory_space<vmem>>, vector<1x128xf32>
    %435 = vector.broadcast %434 : vector<1x128xf32> to vector<128x128xf32>
    %436 = arith.subf %435, %0 : vector<128x128xf32>
    %c28 = arith.constant 28 : index
    %c0_184 = arith.constant 0 : index
    %437 = vector.load %arg3[%c28, %c0_184] : memref<36x128xf32, #tpu.memory_space<vmem>>, vector<1x128xf32>
    %438 = vector.broadcast %437 : vector<1x128xf32> to vector<128x128xf32>
    %439 = arith.mulf %438, %321 : vector<128x128xf32>
    %440 = arith.mulf %436, %439 : vector<128x128xf32>
    %441 = arith.addf %433, %440 : vector<128x128xf32>
    %c4_185 = arith.constant 4 : index
    %c0_186 = arith.constant 0 : index
    %442 = vector.load %arg2[%c4_185, %c0_186] : memref<12x128xf32, #tpu.memory_space<vmem>>, vector<1x128xf32>
    %443 = vector.broadcast %442 : vector<1x128xf32> to vector<128x128xf32>
    %444 = arith.subf %0, %443 : vector<128x128xf32>
    %c28_187 = arith.constant 28 : index
    %c0_188 = arith.constant 0 : index
    %445 = vector.load %arg3[%c28_187, %c0_188] : memref<36x128xf32, #tpu.memory_space<vmem>>, vector<1x128xf32>
    %446 = vector.broadcast %445 : vector<1x128xf32> to vector<128x128xf32>
    %447 = arith.mulf %446, %321 : vector<128x128xf32>
    %448 = arith.mulf %444, %447 : vector<128x128xf32>
    %c8_189 = arith.constant 8 : index
    %c0_190 = arith.constant 0 : index
    %449 = vector.load %arg2[%c8_189, %c0_190] : memref<12x128xf32, #tpu.memory_space<vmem>>, vector<1x128xf32>
    %450 = vector.broadcast %449 : vector<1x128xf32> to vector<128x128xf32>
    %451 = arith.subf %450, %0 : vector<128x128xf32>
    %c29 = arith.constant 29 : index
    %c0_191 = arith.constant 0 : index
    %452 = vector.load %arg3[%c29, %c0_191] : memref<36x128xf32, #tpu.memory_space<vmem>>, vector<1x128xf32>
    %453 = vector.broadcast %452 : vector<1x128xf32> to vector<128x128xf32>
    %454 = arith.mulf %453, %336 : vector<128x128xf32>
    %455 = arith.mulf %451, %454 : vector<128x128xf32>
    %456 = arith.addf %448, %455 : vector<128x128xf32>
    %c5_192 = arith.constant 5 : index
    %c0_193 = arith.constant 0 : index
    %457 = vector.load %arg2[%c5_192, %c0_193] : memref<12x128xf32, #tpu.memory_space<vmem>>, vector<1x128xf32>
    %458 = vector.broadcast %457 : vector<1x128xf32> to vector<128x128xf32>
    %459 = arith.subf %0, %458 : vector<128x128xf32>
    %c29_194 = arith.constant 29 : index
    %c0_195 = arith.constant 0 : index
    %460 = vector.load %arg3[%c29_194, %c0_195] : memref<36x128xf32, #tpu.memory_space<vmem>>, vector<1x128xf32>
    %461 = vector.broadcast %460 : vector<1x128xf32> to vector<128x128xf32>
    %462 = arith.mulf %461, %336 : vector<128x128xf32>
    %463 = arith.mulf %459, %462 : vector<128x128xf32>
    %c9_196 = arith.constant 9 : index
    %c0_197 = arith.constant 0 : index
    %464 = vector.load %arg2[%c9_196, %c0_197] : memref<12x128xf32, #tpu.memory_space<vmem>>, vector<1x128xf32>
    %465 = vector.broadcast %464 : vector<1x128xf32> to vector<128x128xf32>
    %466 = arith.subf %465, %0 : vector<128x128xf32>
    %c30 = arith.constant 30 : index
    %c0_198 = arith.constant 0 : index
    %467 = vector.load %arg3[%c30, %c0_198] : memref<36x128xf32, #tpu.memory_space<vmem>>, vector<1x128xf32>
    %468 = vector.broadcast %467 : vector<1x128xf32> to vector<128x128xf32>
    %469 = arith.mulf %468, %351 : vector<128x128xf32>
    %470 = arith.mulf %466, %469 : vector<128x128xf32>
    %471 = arith.addf %463, %470 : vector<128x128xf32>
    %c6_199 = arith.constant 6 : index
    %c0_200 = arith.constant 0 : index
    %472 = vector.load %arg2[%c6_199, %c0_200] : memref<12x128xf32, #tpu.memory_space<vmem>>, vector<1x128xf32>
    %473 = vector.broadcast %472 : vector<1x128xf32> to vector<128x128xf32>
    %474 = arith.subf %0, %473 : vector<128x128xf32>
    %c30_201 = arith.constant 30 : index
    %c0_202 = arith.constant 0 : index
    %475 = vector.load %arg3[%c30_201, %c0_202] : memref<36x128xf32, #tpu.memory_space<vmem>>, vector<1x128xf32>
    %476 = vector.broadcast %475 : vector<1x128xf32> to vector<128x128xf32>
    %477 = arith.mulf %476, %351 : vector<128x128xf32>
    %478 = arith.mulf %474, %477 : vector<128x128xf32>
    %c10_203 = arith.constant 10 : index
    %c0_204 = arith.constant 0 : index
    %479 = vector.load %arg2[%c10_203, %c0_204] : memref<12x128xf32, #tpu.memory_space<vmem>>, vector<1x128xf32>
    %480 = vector.broadcast %479 : vector<1x128xf32> to vector<128x128xf32>
    %481 = arith.subf %480, %0 : vector<128x128xf32>
    %c31 = arith.constant 31 : index
    %c0_205 = arith.constant 0 : index
    %482 = vector.load %arg3[%c31, %c0_205] : memref<36x128xf32, #tpu.memory_space<vmem>>, vector<1x128xf32>
    %483 = vector.broadcast %482 : vector<1x128xf32> to vector<128x128xf32>
    %484 = arith.mulf %483, %366 : vector<128x128xf32>
    %485 = arith.mulf %481, %484 : vector<128x128xf32>
    %486 = arith.addf %478, %485 : vector<128x128xf32>
    %c7_206 = arith.constant 7 : index
    %c0_207 = arith.constant 0 : index
    %487 = vector.load %arg2[%c7_206, %c0_207] : memref<12x128xf32, #tpu.memory_space<vmem>>, vector<1x128xf32>
    %488 = vector.broadcast %487 : vector<1x128xf32> to vector<128x128xf32>
    %489 = arith.subf %0, %488 : vector<128x128xf32>
    %c31_208 = arith.constant 31 : index
    %c0_209 = arith.constant 0 : index
    %490 = vector.load %arg3[%c31_208, %c0_209] : memref<36x128xf32, #tpu.memory_space<vmem>>, vector<1x128xf32>
    %491 = vector.broadcast %490 : vector<1x128xf32> to vector<128x128xf32>
    %492 = arith.mulf %491, %366 : vector<128x128xf32>
    %493 = arith.mulf %489, %492 : vector<128x128xf32>
    %c11_210 = arith.constant 11 : index
    %c0_211 = arith.constant 0 : index
    %494 = vector.load %arg2[%c11_210, %c0_211] : memref<12x128xf32, #tpu.memory_space<vmem>>, vector<1x128xf32>
    %495 = vector.broadcast %494 : vector<1x128xf32> to vector<128x128xf32>
    %496 = arith.subf %495, %0 : vector<128x128xf32>
    %c32 = arith.constant 32 : index
    %c0_212 = arith.constant 0 : index
    %497 = vector.load %arg3[%c32, %c0_212] : memref<36x128xf32, #tpu.memory_space<vmem>>, vector<1x128xf32>
    %498 = vector.broadcast %497 : vector<1x128xf32> to vector<128x128xf32>
    %499 = arith.mulf %498, %381 : vector<128x128xf32>
    %500 = arith.mulf %496, %499 : vector<128x128xf32>
    %501 = arith.addf %493, %500 : vector<128x128xf32>
    %502 = vector.broadcast %1 : vector<1x128xf32> to vector<128x128xf32>
    %503 = arith.mulf %396, %502 : vector<128x128xf32>
    %504 = vector.broadcast %1 : vector<1x128xf32> to vector<128x128xf32>
    %505 = arith.mulf %411, %504 : vector<128x128xf32>
    %506 = vector.broadcast %1 : vector<1x128xf32> to vector<128x128xf32>
    %507 = arith.mulf %426, %506 : vector<128x128xf32>
    %508 = vector.broadcast %1 : vector<1x128xf32> to vector<128x128xf32>
    %509 = arith.mulf %441, %508 : vector<128x128xf32>
    %510 = vector.broadcast %1 : vector<1x128xf32> to vector<128x128xf32>
    %511 = arith.mulf %456, %510 : vector<128x128xf32>
    %512 = vector.broadcast %1 : vector<1x128xf32> to vector<128x128xf32>
    %513 = arith.mulf %471, %512 : vector<128x128xf32>
    %514 = vector.broadcast %1 : vector<1x128xf32> to vector<128x128xf32>
    %515 = arith.mulf %486, %514 : vector<128x128xf32>
    %516 = vector.broadcast %1 : vector<1x128xf32> to vector<128x128xf32>
    %517 = arith.mulf %501, %516 : vector<128x128xf32>
    %518 = arith.truncf %7 : vector<128x128xf32> to vector<128x128xbf16>
    %c0_213 = arith.constant 0 : index
    %c0_214 = arith.constant 0 : index
    %519 = vector.load %arg5[%c0_213, %c0_214] : memref<1152x128xbf16, #tpu.memory_space<vmem>>, vector<128x128xbf16>
    %cst_215 = arith.constant dense<0.000000e+00> : vector<128x128xf32>
    %520 = tpu.matmul %518, %519, %cst_215 {dimension_numbers = #tpu.dot_dimension_numbers<[1], [0], [0], [1], [0, 0, 1, 1], [], []>} : vector<128x128xbf16>, vector<128x128xbf16>, vector<128x128xf32> -> vector<128x128xf32>
    %521 = arith.truncf %503 : vector<128x128xf32> to vector<128x128xbf16>
    %c128 = arith.constant 128 : index
    %c0_216 = arith.constant 0 : index
    %522 = vector.load %arg5[%c128, %c0_216] : memref<1152x128xbf16, #tpu.memory_space<vmem>>, vector<128x128xbf16>
    %cst_217 = arith.constant dense<0.000000e+00> : vector<128x128xf32>
    %523 = tpu.matmul %521, %522, %cst_217 {dimension_numbers = #tpu.dot_dimension_numbers<[1], [0], [0], [1], [0, 0, 1, 1], [], []>} : vector<128x128xbf16>, vector<128x128xbf16>, vector<128x128xf32> -> vector<128x128xf32>
    %524 = arith.addf %520, %523 : vector<128x128xf32>
    %525 = arith.truncf %505 : vector<128x128xf32> to vector<128x128xbf16>
    %c256 = arith.constant 256 : index
    %c0_218 = arith.constant 0 : index
    %526 = vector.load %arg5[%c256, %c0_218] : memref<1152x128xbf16, #tpu.memory_space<vmem>>, vector<128x128xbf16>
    %cst_219 = arith.constant dense<0.000000e+00> : vector<128x128xf32>
    %527 = tpu.matmul %525, %526, %cst_219 {dimension_numbers = #tpu.dot_dimension_numbers<[1], [0], [0], [1], [0, 0, 1, 1], [], []>} : vector<128x128xbf16>, vector<128x128xbf16>, vector<128x128xf32> -> vector<128x128xf32>
    %528 = arith.addf %524, %527 : vector<128x128xf32>
    %529 = arith.truncf %507 : vector<128x128xf32> to vector<128x128xbf16>
    %c384 = arith.constant 384 : index
    %c0_220 = arith.constant 0 : index
    %530 = vector.load %arg5[%c384, %c0_220] : memref<1152x128xbf16, #tpu.memory_space<vmem>>, vector<128x128xbf16>
    %cst_221 = arith.constant dense<0.000000e+00> : vector<128x128xf32>
    %531 = tpu.matmul %529, %530, %cst_221 {dimension_numbers = #tpu.dot_dimension_numbers<[1], [0], [0], [1], [0, 0, 1, 1], [], []>} : vector<128x128xbf16>, vector<128x128xbf16>, vector<128x128xf32> -> vector<128x128xf32>
    %532 = arith.addf %528, %531 : vector<128x128xf32>
    %533 = arith.truncf %509 : vector<128x128xf32> to vector<128x128xbf16>
    %c512 = arith.constant 512 : index
    %c0_222 = arith.constant 0 : index
    %534 = vector.load %arg5[%c512, %c0_222] : memref<1152x128xbf16, #tpu.memory_space<vmem>>, vector<128x128xbf16>
    %cst_223 = arith.constant dense<0.000000e+00> : vector<128x128xf32>
    %535 = tpu.matmul %533, %534, %cst_223 {dimension_numbers = #tpu.dot_dimension_numbers<[1], [0], [0], [1], [0, 0, 1, 1], [], []>} : vector<128x128xbf16>, vector<128x128xbf16>, vector<128x128xf32> -> vector<128x128xf32>
    %536 = arith.addf %532, %535 : vector<128x128xf32>
    %537 = arith.truncf %511 : vector<128x128xf32> to vector<128x128xbf16>
    %c640 = arith.constant 640 : index
    %c0_224 = arith.constant 0 : index
    %538 = vector.load %arg5[%c640, %c0_224] : memref<1152x128xbf16, #tpu.memory_space<vmem>>, vector<128x128xbf16>
    %cst_225 = arith.constant dense<0.000000e+00> : vector<128x128xf32>
    %539 = tpu.matmul %537, %538, %cst_225 {dimension_numbers = #tpu.dot_dimension_numbers<[1], [0], [0], [1], [0, 0, 1, 1], [], []>} : vector<128x128xbf16>, vector<128x128xbf16>, vector<128x128xf32> -> vector<128x128xf32>
    %540 = arith.addf %536, %539 : vector<128x128xf32>
    %541 = arith.truncf %513 : vector<128x128xf32> to vector<128x128xbf16>
    %c768 = arith.constant 768 : index
    %c0_226 = arith.constant 0 : index
    %542 = vector.load %arg5[%c768, %c0_226] : memref<1152x128xbf16, #tpu.memory_space<vmem>>, vector<128x128xbf16>
    %cst_227 = arith.constant dense<0.000000e+00> : vector<128x128xf32>
    %543 = tpu.matmul %541, %542, %cst_227 {dimension_numbers = #tpu.dot_dimension_numbers<[1], [0], [0], [1], [0, 0, 1, 1], [], []>} : vector<128x128xbf16>, vector<128x128xbf16>, vector<128x128xf32> -> vector<128x128xf32>
    %544 = arith.addf %540, %543 : vector<128x128xf32>
    %545 = arith.truncf %515 : vector<128x128xf32> to vector<128x128xbf16>
    %c896 = arith.constant 896 : index
    %c0_228 = arith.constant 0 : index
    %546 = vector.load %arg5[%c896, %c0_228] : memref<1152x128xbf16, #tpu.memory_space<vmem>>, vector<128x128xbf16>
    %cst_229 = arith.constant dense<0.000000e+00> : vector<128x128xf32>
    %547 = tpu.matmul %545, %546, %cst_229 {dimension_numbers = #tpu.dot_dimension_numbers<[1], [0], [0], [1], [0, 0, 1, 1], [], []>} : vector<128x128xbf16>, vector<128x128xbf16>, vector<128x128xf32> -> vector<128x128xf32>
    %548 = arith.addf %544, %547 : vector<128x128xf32>
    %549 = arith.truncf %517 : vector<128x128xf32> to vector<128x128xbf16>
    %c1024 = arith.constant 1024 : index
    %c0_230 = arith.constant 0 : index
    %550 = vector.load %arg5[%c1024, %c0_230] : memref<1152x128xbf16, #tpu.memory_space<vmem>>, vector<128x128xbf16>
    %cst_231 = arith.constant dense<0.000000e+00> : vector<128x128xf32>
    %551 = tpu.matmul %549, %550, %cst_231 {dimension_numbers = #tpu.dot_dimension_numbers<[1], [0], [0], [1], [0, 0, 1, 1], [], []>} : vector<128x128xbf16>, vector<128x128xbf16>, vector<128x128xf32> -> vector<128x128xf32>
    %552 = arith.addf %548, %551 : vector<128x128xf32>
    %c0_232 = arith.constant 0 : index
    %c0_233 = arith.constant 0 : index
    %553 = vector.load %arg6[%c0_232, %c0_233] : memref<128x128xf32, #tpu.memory_space<vmem>>, vector<128x128xf32>
    tpu.vector_store %arg6[%c0_232, %c0_233], %552 {strides = array<i32>} : memref<128x128xf32, #tpu.memory_space<vmem>>, vector<128x128xf32>,
    return
  }
  func.func @transform_0(%arg0: i32) -> (i32, i32) {
    %c0_i32 = arith.constant 0 : i32
    %c0_i32_0 = arith.constant 0 : i32
    return %arg0, %c0_i32 : i32, i32
  }
  func.func @transform_1(%arg0: i32) -> (i32, i32) {
    %c0_i32 = arith.constant 0 : i32
    %c0_i32_0 = arith.constant 0 : i32
    %c0_i32_1 = arith.constant 0 : i32
    return %c0_i32, %c0_i32_0 : i32, i32
  }
  func.func @transform_2(%arg0: i32) -> (i32, i32) {
    %c0_i32 = arith.constant 0 : i32
    %c0_i32_0 = arith.constant 0 : i32
    %c0_i32_1 = arith.constant 0 : i32
    return %c0_i32, %c0_i32_0 : i32, i32
  }
  func.func @transform_3(%arg0: i32) -> (i32, i32) {
    %c0_i32 = arith.constant 0 : i32
    %c0_i32_0 = arith.constant 0 : i32
    %c0_i32_1 = arith.constant 0 : i32
    return %c0_i32, %c0_i32_0 : i32, i32
  }
  func.func @transform_4(%arg0: i32) -> (i32, i32) {
    %c0_i32 = arith.constant 0 : i32
    %c0_i32_0 = arith.constant 0 : i32
    %c0_i32_1 = arith.constant 0 : i32
    return %c0_i32, %c0_i32_0 : i32, i32
  }
  func.func @transform_5(%arg0: i32) -> (i32, i32) {
    %c0_i32 = arith.constant 0 : i32
    %c0_i32_0 = arith.constant 0 : i32
    return %arg0, %c0_i32 : i32, i32
  }
}

</mosaic_0001>

<llo_original>
// kernel: tpu_custom_call.1
$region0: #{tpu_custom_call.1}
  #allocation0 [shape = 'u32[]', space=smem, size = 0x4, offset = 0x4, fixed_abs, tag = 'smem constant byte address 0x4 - core index']
  #allocation1 [shape = 'u32[144,128]{1,0:T(1,128)}', space=vmem, size = 0x12000, scoped, tag = 'internal scratch']
  %s0 = inlined_call_operand.hbm [shape: f32[256,128], index: 0, kind: input, shape index: {}]
  %s1 = inlined_call_operand.hbm [shape: f32[12,128], index: 1, kind: input, shape index: {}]
  %s2 = inlined_call_operand.hbm [shape: f32[36,128], index: 2, kind: input, shape index: {}]
  %s3 = inlined_call_operand.vmem [shape: f32[1,128], index: 3, kind: input, shape index: {}]
  %s4 = inlined_call_operand.hbm [shape: bf16[1152,128], index: 4, kind: input, shape index: {}]
  %s5 = inlined_call_operand.hbm [shape: f32[256,128], index: 5, kind: output, shape index: {}]
  %s6 = sld [smem:[#allocation0]]
  $region69: #{tpu_custom_call.1} parent=0
    _
  %s8 = ssub.s32 1, %s6
  %s9 = scalar_select 0, %s8, %s6
  $region1: #{tpu_custom_call.1} parent=0
    #allocation2 [shape = 'u8[131072]{0}', space=vmem, size = 0x20000, scoped, tag = 'input window, operand 0']
    #allocation3 [shape = 's32[2]{0}', space=sflag, size = 0x8, scoped, tag = 'scoped memory for tpu_custom_call.1']
    #allocation4 [shape = 's32[2]{0}', space=sflag, size = 0x8, scoped, tag = 'scoped memory for tpu_custom_call.1']
    #allocation5 [shape = 'u8[8192]{0}', space=vmem, size = 0x2000, scoped, tag = 'input window, operand 1, single buffered']
    #allocation6 [shape = 's32[1]{0}', space=sflag, size = 0x4, scoped, tag = 'scoped memory for tpu_custom_call.1']
    #allocation7 [shape = 'u8[20480]{0}', space=vmem, size = 0x5000, scoped, tag = 'input window, operand 2, single buffered']
    #allocation8 [shape = 'u8[294912]{0}', space=vmem, size = 0x48000, scoped, tag = 'input window, operand 4, single buffered']
    #allocation9 [shape = 's32[1]{0}', space=sflag, size = 0x4, scoped, tag = 'scoped memory for tpu_custom_call.1']
    #allocation10 [shape = 'u8[131072]{0}', space=vmem, size = 0x20000, scoped, tag = 'output window, operand 0']
    %10 = vsyncpa [#allocation3], 0
    %s11 = scalar_lea.sflag [#allocation3], 1
    %12 = vsyncpa %s11, 0
    %13 = vsyncpa [#allocation6], 0
    %14 = vsyncpa [#allocation9], 0
    %15 = vsyncpa [#allocation4], 0
    %s16 = scalar_lea.sflag [#allocation4], 1
    %17 = vsyncpa %s16, 0
    loop: start=0, step=1, limit=4
    $region2: #{tpu_custom_call.1} parent=1 // loop_pre_header
      _
    $region3: #{tpu_custom_call.1} parent=1 // loop_header
      %s19 = sphi 0, %s23
      %p20 = scmp.ge.s32.totalorder %s19, 4
      %s29 = sphi 0, %s31
      %s32 = sphi 0, %s29
      %s33 = sphi 0, %s32
      %s49 = sphi 0, %s33
      %s53 = sphi 0, %s53
      %s55 = sphi 0, %s53
      %s56 = sphi 0, %s55
      %s70 = sphi 0, %s56
      %s74 = sphi 0, %s74
      %s76 = sphi 0, %s74
      %s77 = sphi 0, %s76
      %s91 = sphi 0, %s77
      %s95 = sphi 0, %s95
      %s97 = sphi 0, %s95
      %s98 = sphi 0, %s97
      %s112 = sphi 0, %s98
      %s116 = sphi 0, %s116
      %s118 = sphi 0, %s116
      %s119 = sphi 0, %s118
      %s133 = sphi 0, %s119
      %s139 = sphi 0, %s141
      %s142 = sphi 0, %s139
      %s143 = sphi 0, %s142
      %s159 = sphi 0, %s143
    $region4: #{tpu_custom_call.1} parent=1 // loop_header_branch
      %22 = sbr.rel (%p20) target = $region8
    $region5: #{tpu_custom_call.1} parent=1 // loop_body
      %s24 = ssub.s32 %s19, 1
      %s25 = ssub.s32 %s19, 2
      %s26 = sadd.s32 %s19, 1
      %s27 = ssub.s32 %s19, %s26
      %p28 = scmp.eq.s32.totalorder %s27, 0
      %s30 = sadd.s32 %s29, 1
      %s31 = scalar_select %p28, %s29, %s30
      %p34 = pneg %p28
      %p35 = scmp.eq.s32.totalorder %s19, 1
      %p36 = por %p34, %p35
      %p37 = scmp.ne.s32.totalorder %s29, %s32
      %p38 = scmp.eq.s32.totalorder %s19, 0
      %p39 = por %p37, %p38
      %p40 = scmp.ne.s32.totalorder %s29, %s32
      %p41 = scmp.eq.s32.totalorder %s24, 1
      %p42 = por %p40, %p41
      %p43 = scmp.ne.s32.totalorder %s32, %s33
      %p44 = scmp.eq.s32.totalorder %s24, 0
      %p45 = por %p43, %p44
      %p46 = scmp.ne.s32.totalorder %s32, %s33
      %p47 = scmp.eq.s32.totalorder %s25, 1
      %p48 = por %p46, %p47
      %p50 = scmp.ne.s32.totalorder %s33, %s49
      %p51 = scmp.eq.s32.totalorder %s25, 0
      %p52 = por %p50, %p51
      %s54 = sadd.s32 %s53, 1
      %p57 = scmp.eq.s32.totalorder %s19, 1
      %p58 = scmp.ne.s32.totalorder %s53, %s55
      %p59 = scmp.eq.s32.totalorder %s19, 0
      %p60 = por %p58, %p59
      %p61 = scmp.ne.s32.totalorder %s53, %s55
      %p62 = scmp.eq.s32.totalorder %s24, 1
      %p63 = por %p61, %p62
      %p64 = scmp.ne.s32.totalorder %s55, %s56
      %p65 = scmp.eq.s32.totalorder %s24, 0
      %p66 = por %p64, %p65
      %p67 = scmp.ne.s32.totalorder %s55, %s56
      %p68 = scmp.eq.s32.totalorder %s25, 1
      %p69 = por %p67, %p68
      %p71 = scmp.ne.s32.totalorder %s56, %s70
      %p72 = scmp.eq.s32.totalorder %s25, 0
      %p73 = por %p71, %p72
      %s75 = sadd.s32 %s74, 1
      %p78 = scmp.eq.s32.totalorder %s19, 1
      %p79 = scmp.ne.s32.totalorder %s74, %s76
      %p80 = scmp.eq.s32.totalorder %s19, 0
      %p81 = por %p79, %p80
      %p82 = scmp.ne.s32.totalorder %s74, %s76
      %p83 = scmp.eq.s32.totalorder %s24, 1
      %p84 = por %p82, %p83
      %p85 = scmp.ne.s32.totalorder %s76, %s77
      %p86 = scmp.eq.s32.totalorder %s24, 0
      %p87 = por %p85, %p86
      %p88 = scmp.ne.s32.totalorder %s76, %s77
      %p89 = scmp.eq.s32.totalorder %s25, 1
      %p90 = por %p88, %p89
      %p92 = scmp.ne.s32.totalorder %s77, %s91
      %p93 = scmp.eq.s32.totalorder %s25, 0
      %p94 = por %p92, %p93
      %s96 = sadd.s32 %s95, 1
      %p99 = scmp.eq.s32.totalorder %s19, 1
      %p100 = scmp.ne.s32.totalorder %s95, %s97
      %p101 = scmp.eq.s32.totalorder %s19, 0
      %p102 = por %p100, %p101
      %p103 = scmp.ne.s32.totalorder %s95, %s97
      %p104 = scmp.eq.s32.totalorder %s24, 1
      %p105 = por %p103, %p104
      %p106 = scmp.ne.s32.totalorder %s97, %s98
      %p107 = scmp.eq.s32.totalorder %s24, 0
      %p108 = por %p106, %p107
      %p109 = scmp.ne.s32.totalorder %s97, %s98
      %p110 = scmp.eq.s32.totalorder %s25, 1
      %p111 = por %p109, %p110
      %p113 = scmp.ne.s32.totalorder %s98, %s112
      %p114 = scmp.eq.s32.totalorder %s25, 0
      %p115 = por %p113, %p114
      %s117 = sadd.s32 %s116, 1
      %p120 = scmp.eq.s32.totalorder %s19, 1
      %p121 = scmp.ne.s32.totalorder %s116, %s118
      %p122 = scmp.eq.s32.totalorder %s19, 0
      %p123 = por %p121, %p122
      %p124 = scmp.ne.s32.totalorder %s116, %s118
      %p125 = scmp.eq.s32.totalorder %s24, 1
      %p126 = por %p124, %p125
      %p127 = scmp.ne.s32.totalorder %s118, %s119
      %p128 = scmp.eq.s32.totalorder %s24, 0
      %p129 = por %p127, %p128
      %p130 = scmp.ne.s32.totalorder %s118, %s119
      %p131 = scmp.eq.s32.totalorder %s25, 1
      %p132 = por %p130, %p131
      %p134 = scmp.ne.s32.totalorder %s119, %s133
      %p135 = scmp.eq.s32.totalorder %s25, 0
      %p136 = por %p134, %p135
      %s137 = ssub.s32 %s19, %s26
      %p138 = scmp.eq.s32.totalorder %s137, 0
      %s140 = sadd.s32 %s139, 1
      %s141 = scalar_select %p138, %s139, %s140
      %p144 = pneg %p138
      %p145 = scmp.eq.s32.totalorder %s19, 1
      %p146 = por %p144, %p145
      %p147 = scmp.ne.s32.totalorder %s139, %s142
      %p148 = scmp.eq.s32.totalorder %s19, 0
      %p149 = por %p147, %p148
      %p150 = scmp.ne.s32.totalorder %s139, %s142
      %p151 = scmp.eq.s32.totalorder %s24, 1
      %p152 = por %p150, %p151
      %p153 = scmp.ne.s32.totalorder %s142, %s143
      %p154 = scmp.eq.s32.totalorder %s24, 0
      %p155 = por %p153, %p154
      %p156 = scmp.ne.s32.totalorder %s142, %s143
      %p157 = scmp.eq.s32.totalorder %s25, 1
      %p158 = por %p156, %p157
      %p160 = scmp.ne.s32.totalorder %s143, %s159
      %p161 = scmp.eq.s32.totalorder %s25, 0
      %p162 = por %p160, %p161
      %p163 = scmp.le.s32.totalorder 1, %s19
      %p164 = scmp.lt.s32.totalorder %s19, 3
      %p165 = pnand %p163, %p164
      %p166 = pneg %p165
      // Predicated region
      $region9: #{tpu_custom_call.1} parent=5 // pred_check
        _
      $region10: #{tpu_custom_call.1} parent=5 // pred_check_branch
        %168 = sbr.rel (%p165) target = $region12
      $region11: #{tpu_custom_call.1} parent=5 // pred_region
        %s169 = ssub.s32 %s19, 1
        // Predicated region
        $region13: #{tpu_custom_call.1} parent=11 // pred_check
          %p170 = pneg %p66
        $region14: #{tpu_custom_call.1} parent=11 // pred_check_branch
          %172 = sbr.rel (%p170) target = $region16
        $region15: #{tpu_custom_call.1} parent=11 // pred_region
          %s174 = ssub.s32 256, 256
          %175 = vsyncadd [#allocation6], %s174
          %s176 = sshll.u32 [#allocation5], 4
          %s177 = int_to_ptr.vmem [resolvable:$true] %s176
          %182 = dma.hbm_to_vmem [thread:$0]  %s1, 256, %s177, [#allocation6], 128, 128, 8
        $region16: #{tpu_custom_call.1} parent=11 // pred_fallthru
          _
        // Predicated region
        $region17: #{tpu_custom_call.1} parent=11 // pred_check
          %p183 = pneg %p87
        $region18: #{tpu_custom_call.1} parent=11 // pred_check_branch
          %185 = sbr.rel (%p183) target = $region20
        $region19: #{tpu_custom_call.1} parent=11 // pred_region
          %s187 = ssub.s32 640, 640
          %188 = vsyncadd [#allocation6], %s187
          %s189 = sshll.u32 [#allocation7], 4
          %s190 = int_to_ptr.vmem [resolvable:$true] %s189
          %195 = dma.hbm_to_vmem [thread:$0]  %s2, 640, %s190, [#allocation6], 128, 128, 8
        $region20: #{tpu_custom_call.1} parent=11 // pred_fallthru
          _
        // Predicated region
        $region21: #{tpu_custom_call.1} parent=11 // pred_check
          %p196 = pneg %p108
        $region22: #{tpu_custom_call.1} parent=11 // pred_check_branch
          %198 = sbr.rel (%p196) target = $region24
        $region23: #{tpu_custom_call.1} parent=11 // pred_region
          _
        $region24: #{tpu_custom_call.1} parent=11 // pred_fallthru
          _
        // Predicated region
        $region25: #{tpu_custom_call.1} parent=11 // pred_check
          %p199 = pneg %p129
        $region26: #{tpu_custom_call.1} parent=11 // pred_check_branch
          %201 = sbr.rel (%p199) target = $region28
        $region27: #{tpu_custom_call.1} parent=11 // pred_region
          %s203 = ssub.s32 9216, 9216
          %204 = vsyncadd [#allocation9], %s203
          %s205 = sshll.u32 [#allocation8], 4
          %s206 = int_to_ptr.vmem [resolvable:$true] %s205
          %211 = dma.hbm_to_vmem [thread:$0]  %s4, 9216, %s206, [#allocation9], 64, 64, 4
        $region28: #{tpu_custom_call.1} parent=11 // pred_fallthru
          _
      $region12: #{tpu_custom_call.1} parent=5 // pred_fallthru
        _
      %p212 = scmp.lt.s32.totalorder %s19, 2
      // Predicated region
      $region29: #{tpu_custom_call.1} parent=5 // pred_check
        %p213 = pneg %p212
      $region30: #{tpu_custom_call.1} parent=5 // pred_check_branch
        %215 = sbr.rel (%p213) target = $region32
      $region31: #{tpu_custom_call.1} parent=5 // pred_region
        // Predicated region
        $region33: #{tpu_custom_call.1} parent=31 // pred_check
          %p216 = pneg %p39
        $region34: #{tpu_custom_call.1} parent=31 // pred_check_branch
          %218 = sbr.rel (%p216) target = $region36
        $region35: #{tpu_custom_call.1} parent=31 // pred_region
          %s219 = sand.u32 %s29, 1
          %s220 = scalar_lea.sflag [#allocation3], %s219
          %s221 = sand.u32 %s29, 1
          %s222 = smul.addr %s221, 128
          %s223 = scalar_lea.vmem [#allocation2], %s222
          %s224 = smul.u32 16, %s19
          %s226 = ssub.s32 2048, 2048
          %227 = vsyncadd %s220, %s226
          %s228 = smul.addr %s224, 128
          %s229 = scalar_lea.hbm %s0, %s228
          %s230 = sshll.u32 %s223, 4
          %s231 = int_to_ptr.vmem [resolvable:$true] %s230
          %236 = dma.hbm_to_vmem [thread:$0]  %s229, 2048, %s231, %s220, 128, 128, 8
        $region36: #{tpu_custom_call.1} parent=31 // pred_fallthru
          _
      $region32: #{tpu_custom_call.1} parent=5 // pred_fallthru
        _
      %p237 = scmp.le.s32.totalorder 1, %s19
      %p238 = scmp.lt.s32.totalorder %s19, 3
      %p239 = pnand %p237, %p238
      %p240 = pneg %p239
      // Predicated region
      $region37: #{tpu_custom_call.1} parent=5 // pred_check
        _
      $region38: #{tpu_custom_call.1} parent=5 // pred_check_branch
        %242 = sbr.rel (%p239) target = $region40
      $region39: #{tpu_custom_call.1} parent=5 // pred_region
        %s243 = ssub.s32 %s19, 1
        %s244 = sand.u32 %s32, 1
        %s245 = scalar_lea.sflag [#allocation3], %s244
        %s246 = sand.u32 %s32, 1
        %s247 = smul.addr %s246, 128
        %s248 = scalar_lea.vmem [#allocation2], %s247
        // Predicated region
        $region41: #{tpu_custom_call.1} parent=39 // pred_check
          %p249 = pneg %p45
        $region42: #{tpu_custom_call.1} parent=39 // pred_check_branch
          %251 = sbr.rel (%p249) target = $region44
        $region43: #{tpu_custom_call.1} parent=39 // pred_region
          %252 = dma.done %s245, 2048
        $region44: #{tpu_custom_call.1} parent=39 // pred_fallthru
          _
        // Predicated region
        $region45: #{tpu_custom_call.1} parent=39 // pred_check
          %p253 = pneg %p66
        $region46: #{tpu_custom_call.1} parent=39 // pred_check_branch
          %255 = sbr.rel (%p253) target = $region48
        $region47: #{tpu_custom_call.1} parent=39 // pred_region
          %256 = dma.done [#allocation6], 256
        $region48: #{tpu_custom_call.1} parent=39 // pred_fallthru
          _
        // Predicated region
        $region49: #{tpu_custom_call.1} parent=39 // pred_check
          %p257 = pneg %p87
        $region50: #{tpu_custom_call.1} parent=39 // pred_check_branch
          %259 = sbr.rel (%p257) target = $region52
        $region51: #{tpu_custom_call.1} parent=39 // pred_region
          %260 = dma.done [#allocation6], 640
        $region52: #{tpu_custom_call.1} parent=39 // pred_fallthru
          _
        // Predicated region
        $region53: #{tpu_custom_call.1} parent=39 // pred_check
          %p261 = pneg %p129
        $region54: #{tpu_custom_call.1} parent=39 // pred_check_branch
          %263 = sbr.rel (%p261) target = $region56
        $region55: #{tpu_custom_call.1} parent=39 // pred_region
          %264 = dma.done [#allocation9], 9216
        $region56: #{tpu_custom_call.1} parent=39 // pred_fallthru
          _
        %s265 = sand.u32 %s32, 1
        %s266 = scalar_lea.sflag [#allocation3], %s265
        %s267 = sand.u32 %s32, 1
        %s268 = smul.addr %s267, 128
        %s269 = scalar_lea.vmem [#allocation2], %s268
        %p270 = pneg %p45
        %p271 = pneg %p42
        %p272 = pneg %p66
        %p273 = pneg %p63
        %p274 = pneg %p87
        %p275 = pneg %p84
        %p276 = pneg %p108
        %p277 = pneg %p105
        %p278 = pneg %p129
        %p279 = pneg %p126
        %p280 = pneg %p155
        %p281 = pneg %p152
        %s282 = sand.u32 %s142, 1
        %s283 = scalar_lea.sflag [#allocation4], %s282
        %s284 = sand.u32 %s142, 1
        %s285 = smul.addr %s284, 128
        %s286 = scalar_lea.vmem [#allocation10], %s285
        %s287 = smul.u32 16, %s24
        %s288 = smul.u32 16, %s24
        %v290 = vld [vmem:[%s248] sm:$0xff]
        %v291 = vld [vmem:[%s248 + $0x8] sm:$0xff]
        %v292 = vld [vmem:[%s248 + $0x10] sm:$0xff]
        %v293 = vld [vmem:[%s248 + $0x18] sm:$0xff]
        %v294 = vld [vmem:[%s248 + $0x20] sm:$0xff]
        %v295 = vld [vmem:[%s248 + $0x28] sm:$0xff]
        %v296 = vld [vmem:[%s248 + $0x30] sm:$0xff]
        %v297 = vld [vmem:[%s248 + $0x38] sm:$0xff]
        %v298 = vld [vmem:[%s248 + $0x40] sm:$0xff]
        %v299 = vld [vmem:[%s248 + $0x48] sm:$0xff]
        %v300 = vld [vmem:[%s248 + $0x50] sm:$0xff]
        %v301 = vld [vmem:[%s248 + $0x58] sm:$0xff]
        %v302 = vld [vmem:[%s248 + $0x60] sm:$0xff]
        %v303 = vld [vmem:[%s248 + $0x68] sm:$0xff]
        %v304 = vld [vmem:[%s248 + $0x70] sm:$0xff]
        %v305 = vld [vmem:[%s248 + $0x78] sm:$0xff]
        %v306 = vld [vmem:[%s3] sm:$0x1]
        %v307 = vxor.u32 %v290, 2147483648
        %v308 = vxor.u32 %v291, 2147483648
        %v309 = vxor.u32 %v292, 2147483648
        %v310 = vxor.u32 %v293, 2147483648
        %v311 = vxor.u32 %v294, 2147483648
        %v312 = vxor.u32 %v295, 2147483648
        %v313 = vxor.u32 %v296, 2147483648
        %v314 = vxor.u32 %v297, 2147483648
        %v315 = vxor.u32 %v298, 2147483648
        %v316 = vxor.u32 %v299, 2147483648
        %v317 = vxor.u32 %v300, 2147483648
        %v318 = vxor.u32 %v301, 2147483648
        %v319 = vxor.u32 %v302, 2147483648
        %v320 = vxor.u32 %v303, 2147483648
        %v321 = vxor.u32 %v304, 2147483648
        %v322 = vxor.u32 %v305, 2147483648
        %v323 = vmul.f32 %v307, 1.442695
        %v324 = vpow.pop %v323
        %v325 = vmul.f32 %v308, 1.442695
        %v326 = vpow.pop %v325
        %v327 = vmul.f32 %v309, 1.442695
        %v328 = vpow.pop %v327
        %v329 = vmul.f32 %v310, 1.442695
        %v330 = vpow.pop %v329
        %v331 = vmul.f32 %v311, 1.442695
        %v332 = vpow.pop %v331
        %v333 = vmul.f32 %v312, 1.442695
        %v334 = vpow.pop %v333
        %v335 = vmul.f32 %v313, 1.442695
        %v336 = vpow.pop %v335
        %v337 = vmul.f32 %v314, 1.442695
        %v338 = vpow.pop %v337
        %v339 = vmul.f32 %v315, 1.442695
        %v340 = vpow.pop %v339
        %v341 = vmul.f32 %v316, 1.442695
        %v342 = vpow.pop %v341
        %v343 = vmul.f32 %v317, 1.442695
        %v344 = vpow.pop %v343
        %v345 = vmul.f32 %v318, 1.442695
        %v346 = vpow.pop %v345
        %v347 = vmul.f32 %v319, 1.442695
        %v348 = vpow.pop %v347
        %v349 = vmul.f32 %v320, 1.442695
        %v350 = vpow.pop %v349
        %v351 = vmul.f32 %v321, 1.442695
        %v352 = vpow.pop %v351
        %v353 = vmul.f32 %v322, 1.442695
        %v354 = vpow.pop %v353
        %v355 = vadd.f32 %v324, 1.0
        %v356 = vadd.f32 %v326, 1.0
        %v357 = vadd.f32 %v328, 1.0
        %v358 = vadd.f32 %v330, 1.0
        %v359 = vadd.f32 %v332, 1.0
        %v360 = vadd.f32 %v334, 1.0
        %v361 = vadd.f32 %v336, 1.0
        %v362 = vadd.f32 %v338, 1.0
        %v363 = vadd.f32 %v340, 1.0
        %v364 = vadd.f32 %v342, 1.0
        %v365 = vadd.f32 %v344, 1.0
        %v366 = vadd.f32 %v346, 1.0
        %v367 = vadd.f32 %v348, 1.0
        %v368 = vadd.f32 %v350, 1.0
        %v369 = vadd.f32 %v352, 1.0
        %v370 = vadd.f32 %v354, 1.0
        %v371 = vrcp.pop %v355
        %v372 = vmul.f32 1.0, %v371
        %v373 = vrcp.pop %v356
        %v374 = vmul.f32 1.0, %v373
        %v375 = vrcp.pop %v357
        %v376 = vmul.f32 1.0, %v375
        %v377 = vrcp.pop %v358
        %v378 = vmul.f32 1.0, %v377
        %v379 = vrcp.pop %v359
        %v380 = vmul.f32 1.0, %v379
        %v381 = vrcp.pop %v360
        %v382 = vmul.f32 1.0, %v381
        %v383 = vrcp.pop %v361
        %v384 = vmul.f32 1.0, %v383
        %v385 = vrcp.pop %v362
        %v386 = vmul.f32 1.0, %v385
        %v387 = vrcp.pop %v363
        %v388 = vmul.f32 1.0, %v387
        %v389 = vrcp.pop %v364
        %v390 = vmul.f32 1.0, %v389
        %v391 = vrcp.pop %v365
        %v392 = vmul.f32 1.0, %v391
        %v393 = vrcp.pop %v366
        %v394 = vmul.f32 1.0, %v393
        %v395 = vrcp.pop %v367
        %v396 = vmul.f32 1.0, %v395
        %v397 = vrcp.pop %v368
        %v398 = vmul.f32 1.0, %v397
        %v399 = vrcp.pop %v369
        %v400 = vmul.f32 1.0, %v399
        %v401 = vrcp.pop %v370
        %v402 = vmul.f32 1.0, %v401
        %v403 = vmul.f32 %v290, %v372
        %v404 = vmul.f32 %v291, %v374
        %v405 = vmul.f32 %v292, %v376
        %v406 = vmul.f32 %v293, %v378
        %v407 = vmul.f32 %v294, %v380
        %v408 = vmul.f32 %v295, %v382
        %v409 = vmul.f32 %v296, %v384
        %v410 = vmul.f32 %v297, %v386
        %v411 = vmul.f32 %v298, %v388
        %v412 = vmul.f32 %v299, %v390
        %v413 = vmul.f32 %v300, %v392
        %v414 = vmul.f32 %v301, %v394
        %v415 = vmul.f32 %v302, %v396
        %v416 = vmul.f32 %v303, %v398
        %v417 = vmul.f32 %v304, %v400
        %v418 = vmul.f32 %v305, %v402
        %v419 = vld [vmem:[#allocation5] sm:$0x1]
        %v420 = vld [vmem:[#allocation5 + $0x1] sm:$0x1]
        %v421 = vlaneseq
        %v422 = vshrl.u32 %v421, 7
        %v423 = vsub.s32 0, %v422
        %v424 = vrot.slane %v419, %v423
        %vm425 = vcmp.ge.f32.partialorder %v290, %v424
        %vm426 = vcmp.ge.f32.partialorder %v291, %v424
        %vm427 = vcmp.ge.f32.partialorder %v292, %v424
        %vm428 = vcmp.ge.f32.partialorder %v293, %v424
        %vm429 = vcmp.ge.f32.partialorder %v294, %v424
        %vm430 = vcmp.ge.f32.partialorder %v295, %v424
        %vm431 = vcmp.ge.f32.partialorder %v296, %v424
        %vm432 = vcmp.ge.f32.partialorder %v297, %v424
        %vm433 = vcmp.ge.f32.partialorder %v298, %v424
        %vm434 = vcmp.ge.f32.partialorder %v299, %v424
        %vm435 = vcmp.ge.f32.partialorder %v300, %v424
        %vm436 = vcmp.ge.f32.partialorder %v301, %v424
        %vm437 = vcmp.ge.f32.partialorder %v302, %v424
        %vm438 = vcmp.ge.f32.partialorder %v303, %v424
        %vm439 = vcmp.ge.f32.partialorder %v304, %v424
        %vm440 = vcmp.ge.f32.partialorder %v305, %v424
        %v441 = vlaneseq
        %v442 = vshrl.u32 %v441, 7
        %v443 = vsub.s32 0, %v442
        %v444 = vrot.slane %v420, %v443
        %vm445 = vcmp.lt.f32.partialorder %v290, %v444
        %vm446 = vcmp.lt.f32.partialorder %v291, %v444
        %vm447 = vcmp.lt.f32.partialorder %v292, %v444
        %vm448 = vcmp.lt.f32.partialorder %v293, %v444
        %vm449 = vcmp.lt.f32.partialorder %v294, %v444
        %vm450 = vcmp.lt.f32.partialorder %v295, %v444
        %vm451 = vcmp.lt.f32.partialorder %v296, %v444
        %vm452 = vcmp.lt.f32.partialorder %v297, %v444
        %vm453 = vcmp.lt.f32.partialorder %v298, %v444
        %vm454 = vcmp.lt.f32.partialorder %v299, %v444
        %vm455 = vcmp.lt.f32.partialorder %v300, %v444
        %vm456 = vcmp.lt.f32.partialorder %v301, %v444
        %vm457 = vcmp.lt.f32.partialorder %v302, %v444
        %vm458 = vcmp.lt.f32.partialorder %v303, %v444
        %vm459 = vcmp.lt.f32.partialorder %v304, %v444
        %vm460 = vcmp.lt.f32.partialorder %v305, %v444
        %vm461 = vmand %vm425, %vm445
        %vm462 = vmand %vm426, %vm446
        %vm463 = vmand %vm427, %vm447
        %vm464 = vmand %vm428, %vm448
        %vm465 = vmand %vm429, %vm449
        %vm466 = vmand %vm430, %vm450
        %vm467 = vmand %vm431, %vm451
        %vm468 = vmand %vm432, %vm452
        %vm469 = vmand %vm433, %vm453
        %vm470 = vmand %vm434, %vm454
        %vm471 = vmand %vm435, %vm455
        %vm472 = vmand %vm436, %vm456
        %vm473 = vmand %vm437, %vm457
        %vm474 = vmand %vm438, %vm458
        %vm475 = vmand %vm439, %vm459
        %vm476 = vmand %vm440, %vm460
        %v477 = vsel %vm461, 1, 0
        %v478 = vsel %vm462, 1, 0
        %v479 = vsel %vm463, 1, 0
        %v480 = vsel %vm464, 1, 0
        %v481 = vsel %vm465, 1, 0
        %v482 = vsel %vm466, 1, 0
        %v483 = vsel %vm467, 1, 0
        %v484 = vsel %vm468, 1, 0
        %v485 = vsel %vm469, 1, 0
        %v486 = vsel %vm470, 1, 0
        %v487 = vsel %vm471, 1, 0
        %v488 = vsel %vm472, 1, 0
        %v489 = vsel %vm473, 1, 0
        %v490 = vsel %vm474, 1, 0
        %v491 = vsel %vm475, 1, 0
        %v492 = vsel %vm476, 1, 0
        %v493 = vcvt.s32.f32 %v477
        %v494 = vcvt.s32.f32 %v478
        %v495 = vcvt.s32.f32 %v479
        %v496 = vcvt.s32.f32 %v480
        %v497 = vcvt.s32.f32 %v481
        %v498 = vcvt.s32.f32 %v482
        %v499 = vcvt.s32.f32 %v483
        %v500 = vcvt.s32.f32 %v484
        %v501 = vcvt.s32.f32 %v485
        %v502 = vcvt.s32.f32 %v486
        %v503 = vcvt.s32.f32 %v487
        %v504 = vcvt.s32.f32 %v488
        %v505 = vcvt.s32.f32 %v489
        %v506 = vcvt.s32.f32 %v490
        %v507 = vcvt.s32.f32 %v491
        %v508 = vcvt.s32.f32 %v492
        %v509 = vld [vmem:[#allocation5 + $0x2] sm:$0x1]
        %vm510 = vcmp.ge.f32.partialorder %v290, %v444
        %vm511 = vcmp.ge.f32.partialorder %v291, %v444
        %vm512 = vcmp.ge.f32.partialorder %v292, %v444
        %vm513 = vcmp.ge.f32.partialorder %v293, %v444
        %vm514 = vcmp.ge.f32.partialorder %v294, %v444
        %vm515 = vcmp.ge.f32.partialorder %v295, %v444
        %vm516 = vcmp.ge.f32.partialorder %v296, %v444
        %vm517 = vcmp.ge.f32.partialorder %v297, %v444
        %vm518 = vcmp.ge.f32.partialorder %v298, %v444
        %vm519 = vcmp.ge.f32.partialorder %v299, %v444
        %vm520 = vcmp.ge.f32.partialorder %v300, %v444
        %vm521 = vcmp.ge.f32.partialorder %v301, %v444
        %vm522 = vcmp.ge.f32.partialorder %v302, %v444
        %vm523 = vcmp.ge.f32.partialorder %v303, %v444
        %vm524 = vcmp.ge.f32.partialorder %v304, %v444
        %vm525 = vcmp.ge.f32.partialorder %v305, %v444
        %v526 = vlaneseq
        %v527 = vshrl.u32 %v526, 7
        %v528 = vsub.s32 0, %v527
        %v529 = vrot.slane %v509, %v528
        %vm530 = vcmp.lt.f32.partialorder %v290, %v529
        %vm531 = vcmp.lt.f32.partialorder %v291, %v529
        %vm532 = vcmp.lt.f32.partialorder %v292, %v529
        %vm533 = vcmp.lt.f32.partialorder %v293, %v529
        %vm534 = vcmp.lt.f32.partialorder %v294, %v529
        %vm535 = vcmp.lt.f32.partialorder %v295, %v529
        %vm536 = vcmp.lt.f32.partialorder %v296, %v529
        %vm537 = vcmp.lt.f32.partialorder %v297, %v529
        %vm538 = vcmp.lt.f32.partialorder %v298, %v529
        %vm539 = vcmp.lt.f32.partialorder %v299, %v529
        %vm540 = vcmp.lt.f32.partialorder %v300, %v529
        %vm541 = vcmp.lt.f32.partialorder %v301, %v529
        %vm542 = vcmp.lt.f32.partialorder %v302, %v529
        %vm543 = vcmp.lt.f32.partialorder %v303, %v529
        %vm544 = vcmp.lt.f32.partialorder %v304, %v529
        %vm545 = vcmp.lt.f32.partialorder %v305, %v529
        %vm546 = vmand %vm510, %vm530
        %vm547 = vmand %vm511, %vm531
        %vm548 = vmand %vm512, %vm532
        %vm549 = vmand %vm513, %vm533
        %vm550 = vmand %vm514, %vm534
        %vm551 = vmand %vm515, %vm535
        %vm552 = vmand %vm516, %vm536
        %vm553 = vmand %vm517, %vm537
        %vm554 = vmand %vm518, %vm538
        %vm555 = vmand %vm519, %vm539
        %vm556 = vmand %vm520, %vm540
        %vm557 = vmand %vm521, %vm541
        %vm558 = vmand %vm522, %vm542
        %vm559 = vmand %vm523, %vm543
        %vm560 = vmand %vm524, %vm544
        %vm561 = vmand %vm525, %vm545
        %v562 = vsel %vm546, 1, 0
        %v563 = vsel %vm547, 1, 0
        %v564 = vsel %vm548, 1, 0
        %v565 = vsel %vm549, 1, 0
        %v566 = vsel %vm550, 1, 0
        %v567 = vsel %vm551, 1, 0
        %v568 = vsel %vm552, 1, 0
        %v569 = vsel %vm553, 1, 0
        %v570 = vsel %vm554, 1, 0
        %v571 = vsel %vm555, 1, 0
        %v572 = vsel %vm556, 1, 0
        %v573 = vsel %vm557, 1, 0
        %v574 = vsel %vm558, 1, 0
        %v575 = vsel %vm559, 1, 0
        %v576 = vsel %vm560, 1, 0
        %v577 = vsel %vm561, 1, 0
        %v578 = vcvt.s32.f32 %v562
        %v579 = vcvt.s32.f32 %v563
        %v580 = vcvt.s32.f32 %v564
        %v581 = vcvt.s32.f32 %v565
        %v582 = vcvt.s32.f32 %v566
        %v583 = vcvt.s32.f32 %v567
        %v584 = vcvt.s32.f32 %v568
        %v585 = vcvt.s32.f32 %v569
        %v586 = vcvt.s32.f32 %v570
        %v587 = vcvt.s32.f32 %v571
        %v588 = vcvt.s32.f32 %v572
        %v589 = vcvt.s32.f32 %v573
        %v590 = vcvt.s32.f32 %v574
        %v591 = vcvt.s32.f32 %v575
        %v592 = vcvt.s32.f32 %v576
        %v593 = vcvt.s32.f32 %v577
        %v594 = vld [vmem:[#allocation5 + $0x3] sm:$0x1]
        %vm595 = vcmp.ge.f32.partialorder %v290, %v529
        %vm596 = vcmp.ge.f32.partialorder %v291, %v529
        %vm597 = vcmp.ge.f32.partialorder %v292, %v529
        %vm598 = vcmp.ge.f32.partialorder %v293, %v529
        %vm599 = vcmp.ge.f32.partialorder %v294, %v529
        %vm600 = vcmp.ge.f32.partialorder %v295, %v529
        %vm601 = vcmp.ge.f32.partialorder %v296, %v529
        %vm602 = vcmp.ge.f32.partialorder %v297, %v529
        %vm603 = vcmp.ge.f32.partialorder %v298, %v529
        %vm604 = vcmp.ge.f32.partialorder %v299, %v529
        %vm605 = vcmp.ge.f32.partialorder %v300, %v529
        %vm606 = vcmp.ge.f32.partialorder %v301, %v529
        %vm607 = vcmp.ge.f32.partialorder %v302, %v529
        %vm608 = vcmp.ge.f32.partialorder %v303, %v529
        %vm609 = vcmp.ge.f32.partialorder %v304, %v529
        %vm610 = vcmp.ge.f32.partialorder %v305, %v529
        %v611 = vlaneseq
        %v612 = vshrl.u32 %v611, 7
        %v613 = vsub.s32 0, %v612
        %v614 = vrot.slane %v594, %v613
        %vm615 = vcmp.lt.f32.partialorder %v290, %v614
        %vm616 = vcmp.lt.f32.partialorder %v291, %v614
        %vm617 = vcmp.lt.f32.partialorder %v292, %v614
        %vm618 = vcmp.lt.f32.partialorder %v293, %v614
        %vm619 = vcmp.lt.f32.partialorder %v294, %v614
        %vm620 = vcmp.lt.f32.partialorder %v295, %v614
        %vm621 = vcmp.lt.f32.partialorder %v296, %v614
        %vm622 = vcmp.lt.f32.partialorder %v297, %v614
        %vm623 = vcmp.lt.f32.partialorder %v298, %v614
        %vm624 = vcmp.lt.f32.partialorder %v299, %v614
        %vm625 = vcmp.lt.f32.partialorder %v300, %v614
        %vm626 = vcmp.lt.f32.partialorder %v301, %v614
        %vm627 = vcmp.lt.f32.partialorder %v302, %v614
        %vm628 = vcmp.lt.f32.partialorder %v303, %v614
        %vm629 = vcmp.lt.f32.partialorder %v304, %v614
        %vm630 = vcmp.lt.f32.partialorder %v305, %v614
        %vm631 = vmand %vm595, %vm615
        %vm632 = vmand %vm596, %vm616
        %vm633 = vmand %vm597, %vm617
        %vm634 = vmand %vm598, %vm618
        %vm635 = vmand %vm599, %vm619
        %vm636 = vmand %vm600, %vm620
        %vm637 = vmand %vm601, %vm621
        %vm638 = vmand %vm602, %vm622
        %vm639 = vmand %vm603, %vm623
        %vm640 = vmand %vm604, %vm624
        %vm641 = vmand %vm605, %vm625
        %vm642 = vmand %vm606, %vm626
        %vm643 = vmand %vm607, %vm627
        %vm644 = vmand %vm608, %vm628
        %vm645 = vmand %vm609, %vm629
        %vm646 = vmand %vm610, %vm630
        %v647 = vsel %vm631, 1, 0
        %v648 = vsel %vm632, 1, 0
        %v649 = vsel %vm633, 1, 0
        %v650 = vsel %vm634, 1, 0
        %v651 = vsel %vm635, 1, 0
        %v652 = vsel %vm636, 1, 0
        %v653 = vsel %vm637, 1, 0
        %v654 = vsel %vm638, 1, 0
        %v655 = vsel %vm639, 1, 0
        %v656 = vsel %vm640, 1, 0
        %v657 = vsel %vm641, 1, 0
        %v658 = vsel %vm642, 1, 0
        %v659 = vsel %vm643, 1, 0
        %v660 = vsel %vm644, 1, 0
        %v661 = vsel %vm645, 1, 0
        %v662 = vsel %vm646, 1, 0
        %v663 = vcvt.s32.f32 %v647
        %v664 = vcvt.s32.f32 %v648
        %v665 = vcvt.s32.f32 %v649
        %v666 = vcvt.s32.f32 %v650
        %v667 = vcvt.s32.f32 %v651
        %v668 = vcvt.s32.f32 %v652
        %v669 = vcvt.s32.f32 %v653
        %v670 = vcvt.s32.f32 %v654
        %v671 = vcvt.s32.f32 %v655
        %v672 = vcvt.s32.f32 %v656
        %v673 = vcvt.s32.f32 %v657
        %v674 = vcvt.s32.f32 %v658
        %v675 = vcvt.s32.f32 %v659
        %v676 = vcvt.s32.f32 %v660
        %v677 = vcvt.s32.f32 %v661
        %v678 = vcvt.s32.f32 %v662
        %v679 = vld [vmem:[#allocation5 + $0x4] sm:$0x1]
        %vm680 = vcmp.ge.f32.partialorder %v290, %v614
        %vm681 = vcmp.ge.f32.partialorder %v291, %v614
        %vm682 = vcmp.ge.f32.partialorder %v292, %v614
        %vm683 = vcmp.ge.f32.partialorder %v293, %v614
        %vm684 = vcmp.ge.f32.partialorder %v294, %v614
        %vm685 = vcmp.ge.f32.partialorder %v295, %v614
        %vm686 = vcmp.ge.f32.partialorder %v296, %v614
        %vm687 = vcmp.ge.f32.partialorder %v297, %v614
        %vm688 = vcmp.ge.f32.partialorder %v298, %v614
        %vm689 = vcmp.ge.f32.partialorder %v299, %v614
        %vm690 = vcmp.ge.f32.partialorder %v300, %v614
        %vm691 = vcmp.ge.f32.partialorder %v301, %v614
        %vm692 = vcmp.ge.f32.partialorder %v302, %v614
        %vm693 = vcmp.ge.f32.partialorder %v303, %v614
        %vm694 = vcmp.ge.f32.partialorder %v304, %v614
        %vm695 = vcmp.ge.f32.partialorder %v305, %v614
        %v696 = vlaneseq
        %v697 = vshrl.u32 %v696, 7
        %v698 = vsub.s32 0, %v697
        %v699 = vrot.slane %v679, %v698
        %vm700 = vcmp.lt.f32.partialorder %v290, %v699
        %vm701 = vcmp.lt.f32.partialorder %v291, %v699
        %vm702 = vcmp.lt.f32.partialorder %v292, %v699
        %vm703 = vcmp.lt.f32.partialorder %v293, %v699
        %vm704 = vcmp.lt.f32.partialorder %v294, %v699
        %vm705 = vcmp.lt.f32.partialorder %v295, %v699
        %vm706 = vcmp.lt.f32.partialorder %v296, %v699
        %vm707 = vcmp.lt.f32.partialorder %v297, %v699
        %vm708 = vcmp.lt.f32.partialorder %v298, %v699
        %vm709 = vcmp.lt.f32.partialorder %v299, %v699
        %vm710 = vcmp.lt.f32.partialorder %v300, %v699
        %vm711 = vcmp.lt.f32.partialorder %v301, %v699
        %vm712 = vcmp.lt.f32.partialorder %v302, %v699
        %vm713 = vcmp.lt.f32.partialorder %v303, %v699
        %vm714 = vcmp.lt.f32.partialorder %v304, %v699
        %vm715 = vcmp.lt.f32.partialorder %v305, %v699
        %vm716 = vmand %vm680, %vm700
        %vm717 = vmand %vm681, %vm701
        %vm718 = vmand %vm682, %vm702
        %vm719 = vmand %vm683, %vm703
        %vm720 = vmand %vm684, %vm704
        %vm721 = vmand %vm685, %vm705
        %vm722 = vmand %vm686, %vm706
        %vm723 = vmand %vm687, %vm707
        %vm724 = vmand %vm688, %vm708
        %vm725 = vmand %vm689, %vm709
        %vm726 = vmand %vm690, %vm710
        %vm727 = vmand %vm691, %vm711
        %vm728 = vmand %vm692, %vm712
        %vm729 = vmand %vm693, %vm713
        %vm730 = vmand %vm694, %vm714
        %vm731 = vmand %vm695, %vm715
        %v732 = vsel %vm716, 1, 0
        %v733 = vsel %vm717, 1, 0
        %v734 = vsel %vm718, 1, 0
        %v735 = vsel %vm719, 1, 0
        %v736 = vsel %vm720, 1, 0
        %v737 = vsel %vm721, 1, 0
        %v738 = vsel %vm722, 1, 0
        %v739 = vsel %vm723, 1, 0
        %v740 = vsel %vm724, 1, 0
        %v741 = vsel %vm725, 1, 0
        %v742 = vsel %vm726, 1, 0
        %v743 = vsel %vm727, 1, 0
        %v744 = vsel %vm728, 1, 0
        %v745 = vsel %vm729, 1, 0
        %v746 = vsel %vm730, 1, 0
        %v747 = vsel %vm731, 1, 0
        %v748 = vcvt.s32.f32 %v732
        %v749 = vcvt.s32.f32 %v733
        %v750 = vcvt.s32.f32 %v734
        %v751 = vcvt.s32.f32 %v735
        %v752 = vcvt.s32.f32 %v736
        %v753 = vcvt.s32.f32 %v737
        %v754 = vcvt.s32.f32 %v738
        %v755 = vcvt.s32.f32 %v739
        %v756 = vcvt.s32.f32 %v740
        %v757 = vcvt.s32.f32 %v741
        %v758 = vcvt.s32.f32 %v742
        %v759 = vcvt.s32.f32 %v743
        %v760 = vcvt.s32.f32 %v744
        %v761 = vcvt.s32.f32 %v745
        %v762 = vcvt.s32.f32 %v746
        %v763 = vcvt.s32.f32 %v747
        %v764 = vld [vmem:[#allocation5 + $0x5] sm:$0x1]
        %vm765 = vcmp.ge.f32.partialorder %v290, %v699
        %vm766 = vcmp.ge.f32.partialorder %v291, %v699
        %vm767 = vcmp.ge.f32.partialorder %v292, %v699
        %vm768 = vcmp.ge.f32.partialorder %v293, %v699
        %vm769 = vcmp.ge.f32.partialorder %v294, %v699
        %vm770 = vcmp.ge.f32.partialorder %v295, %v699
        %vm771 = vcmp.ge.f32.partialorder %v296, %v699
        %vm772 = vcmp.ge.f32.partialorder %v297, %v699
        %vm773 = vcmp.ge.f32.partialorder %v298, %v699
        %vm774 = vcmp.ge.f32.partialorder %v299, %v699
        %vm775 = vcmp.ge.f32.partialorder %v300, %v699
        %vm776 = vcmp.ge.f32.partialorder %v301, %v699
        %vm777 = vcmp.ge.f32.partialorder %v302, %v699
        %vm778 = vcmp.ge.f32.partialorder %v303, %v699
        %vm779 = vcmp.ge.f32.partialorder %v304, %v699
        %vm780 = vcmp.ge.f32.partialorder %v305, %v699
        %v781 = vlaneseq
        %v782 = vshrl.u32 %v781, 7
        %v783 = vsub.s32 0, %v782
        %v784 = vrot.slane %v764, %v783
        %vm785 = vcmp.lt.f32.partialorder %v290, %v784
        %vm786 = vcmp.lt.f32.partialorder %v291, %v784
        %vm787 = vcmp.lt.f32.partialorder %v292, %v784
        %vm788 = vcmp.lt.f32.partialorder %v293, %v784
        %vm789 = vcmp.lt.f32.partialorder %v294, %v784
        %vm790 = vcmp.lt.f32.partialorder %v295, %v784
        %vm791 = vcmp.lt.f32.partialorder %v296, %v784
        %vm792 = vcmp.lt.f32.partialorder %v297, %v784
        %vm793 = vcmp.lt.f32.partialorder %v298, %v784
        %vm794 = vcmp.lt.f32.partialorder %v299, %v784
        %vm795 = vcmp.lt.f32.partialorder %v300, %v784
        %vm796 = vcmp.lt.f32.partialorder %v301, %v784
        %vm797 = vcmp.lt.f32.partialorder %v302, %v784
        %vm798 = vcmp.lt.f32.partialorder %v303, %v784
        %vm799 = vcmp.lt.f32.partialorder %v304, %v784
        %vm800 = vcmp.lt.f32.partialorder %v305, %v784
        %vm801 = vmand %vm765, %vm785
        %vm802 = vmand %vm766, %vm786
        %vm803 = vmand %vm767, %vm787
        %vm804 = vmand %vm768, %vm788
        %vm805 = vmand %vm769, %vm789
        %vm806 = vmand %vm770, %vm790
        %vm807 = vmand %vm771, %vm791
        %vm808 = vmand %vm772, %vm792
        %vm809 = vmand %vm773, %vm793
        %vm810 = vmand %vm774, %vm794
        %vm811 = vmand %vm775, %vm795
        %vm812 = vmand %vm776, %vm796
        %vm813 = vmand %vm777, %vm797
        %vm814 = vmand %vm778, %vm798
        %vm815 = vmand %vm779, %vm799
        %vm816 = vmand %vm780, %vm800
        %v817 = vsel %vm801, 1, 0
        %v818 = vsel %vm802, 1, 0
        %v819 = vsel %vm803, 1, 0
        %v820 = vsel %vm804, 1, 0
        %v821 = vsel %vm805, 1, 0
        %v822 = vsel %vm806, 1, 0
        %v823 = vsel %vm807, 1, 0
        %v824 = vsel %vm808, 1, 0
        %v825 = vsel %vm809, 1, 0
        %v826 = vsel %vm810, 1, 0
        %v827 = vsel %vm811, 1, 0
        %v828 = vsel %vm812, 1, 0
        %v829 = vsel %vm813, 1, 0
        %v830 = vsel %vm814, 1, 0
        %v831 = vsel %vm815, 1, 0
        %v832 = vsel %vm816, 1, 0
        %v833 = vcvt.s32.f32 %v817
        %v834 = vcvt.s32.f32 %v818
        %v835 = vcvt.s32.f32 %v819
        %v836 = vcvt.s32.f32 %v820
        %v837 = vcvt.s32.f32 %v821
        %v838 = vcvt.s32.f32 %v822
        %v839 = vcvt.s32.f32 %v823
        %v840 = vcvt.s32.f32 %v824
        %v841 = vcvt.s32.f32 %v825
        %v842 = vcvt.s32.f32 %v826
        %v843 = vcvt.s32.f32 %v827
        %v844 = vcvt.s32.f32 %v828
        %v845 = vcvt.s32.f32 %v829
        %v846 = vcvt.s32.f32 %v830
        %v847 = vcvt.s32.f32 %v831
        %v848 = vcvt.s32.f32 %v832
        %v849 = vld [vmem:[#allocation5 + $0x6] sm:$0x1]
        %vm850 = vcmp.ge.f32.partialorder %v290, %v784
        %vm851 = vcmp.ge.f32.partialorder %v291, %v784
        %vm852 = vcmp.ge.f32.partialorder %v292, %v784
        %vm853 = vcmp.ge.f32.partialorder %v293, %v784
        %vm854 = vcmp.ge.f32.partialorder %v294, %v784
        %vm855 = vcmp.ge.f32.partialorder %v295, %v784
        %vm856 = vcmp.ge.f32.partialorder %v296, %v784
        %vm857 = vcmp.ge.f32.partialorder %v297, %v784
        %vm858 = vcmp.ge.f32.partialorder %v298, %v784
        %vm859 = vcmp.ge.f32.partialorder %v299, %v784
        %vm860 = vcmp.ge.f32.partialorder %v300, %v784
        %vm861 = vcmp.ge.f32.partialorder %v301, %v784
        %vm862 = vcmp.ge.f32.partialorder %v302, %v784
        %vm863 = vcmp.ge.f32.partialorder %v303, %v784
        %vm864 = vcmp.ge.f32.partialorder %v304, %v784
        %vm865 = vcmp.ge.f32.partialorder %v305, %v784
        %v866 = vlaneseq
        %v867 = vshrl.u32 %v866, 7
        %v868 = vsub.s32 0, %v867
        %v869 = vrot.slane %v849, %v868
        %vm870 = vcmp.lt.f32.partialorder %v290, %v869
        %vm871 = vcmp.lt.f32.partialorder %v291, %v869
        %vm872 = vcmp.lt.f32.partialorder %v292, %v869
        %vm873 = vcmp.lt.f32.partialorder %v293, %v869
        %vm874 = vcmp.lt.f32.partialorder %v294, %v869
        %vm875 = vcmp.lt.f32.partialorder %v295, %v869
        %vm876 = vcmp.lt.f32.partialorder %v296, %v869
        %vm877 = vcmp.lt.f32.partialorder %v297, %v869
        %vm878 = vcmp.lt.f32.partialorder %v298, %v869
        %vm879 = vcmp.lt.f32.partialorder %v299, %v869
        %vm880 = vcmp.lt.f32.partialorder %v300, %v869
        %vm881 = vcmp.lt.f32.partialorder %v301, %v869
        %vm882 = vcmp.lt.f32.partialorder %v302, %v869
        %vm883 = vcmp.lt.f32.partialorder %v303, %v869
        %vm884 = vcmp.lt.f32.partialorder %v304, %v869
        %vm885 = vcmp.lt.f32.partialorder %v305, %v869
        %vm886 = vmand %vm850, %vm870
        %vm887 = vmand %vm851, %vm871
        %vm888 = vmand %vm852, %vm872
        %vm889 = vmand %vm853, %vm873
        %vm890 = vmand %vm854, %vm874
        %vm891 = vmand %vm855, %vm875
        %vm892 = vmand %vm856, %vm876
        %vm893 = vmand %vm857, %vm877
        %vm894 = vmand %vm858, %vm878
        %vm895 = vmand %vm859, %vm879
        %vm896 = vmand %vm860, %vm880
        %vm897 = vmand %vm861, %vm881
        %vm898 = vmand %vm862, %vm882
        %vm899 = vmand %vm863, %vm883
        %vm900 = vmand %vm864, %vm884
        %vm901 = vmand %vm865, %vm885
        %v902 = vsel %vm886, 1, 0
        %v903 = vsel %vm887, 1, 0
        %v904 = vsel %vm888, 1, 0
        %v905 = vsel %vm889, 1, 0
        %v906 = vsel %vm890, 1, 0
        %v907 = vsel %vm891, 1, 0
        %v908 = vsel %vm892, 1, 0
        %v909 = vsel %vm893, 1, 0
        %v910 = vsel %vm894, 1, 0
        %v911 = vsel %vm895, 1, 0
        %v912 = vsel %vm896, 1, 0
        %v913 = vsel %vm897, 1, 0
        %v914 = vsel %vm898, 1, 0
        %v915 = vsel %vm899, 1, 0
        %v916 = vsel %vm900, 1, 0
        %v917 = vsel %vm901, 1, 0
        %v918 = vcvt.s32.f32 %v902
        %v919 = vcvt.s32.f32 %v903
        %v920 = vcvt.s32.f32 %v904
        %v921 = vcvt.s32.f32 %v905
        %v922 = vcvt.s32.f32 %v906
        %v923 = vcvt.s32.f32 %v907
        %v924 = vcvt.s32.f32 %v908
        %v925 = vcvt.s32.f32 %v909
        %v926 = vcvt.s32.f32 %v910
        %v927 = vcvt.s32.f32 %v911
        %v928 = vcvt.s32.f32 %v912
        %v929 = vcvt.s32.f32 %v913
        %v930 = vcvt.s32.f32 %v914
        %v931 = vcvt.s32.f32 %v915
        %v932 = vcvt.s32.f32 %v916
        %v933 = vcvt.s32.f32 %v917
        %v934 = vld [vmem:[#allocation5 + $0x7] sm:$0x1]
        %vm935 = vcmp.ge.f32.partialorder %v290, %v869
        %vm936 = vcmp.ge.f32.partialorder %v291, %v869
        %vm937 = vcmp.ge.f32.partialorder %v292, %v869
        %vm938 = vcmp.ge.f32.partialorder %v293, %v869
        %vm939 = vcmp.ge.f32.partialorder %v294, %v869
        %vm940 = vcmp.ge.f32.partialorder %v295, %v869
        %vm941 = vcmp.ge.f32.partialorder %v296, %v869
        %vm942 = vcmp.ge.f32.partialorder %v297, %v869
        %vm943 = vcmp.ge.f32.partialorder %v298, %v869
        %vm944 = vcmp.ge.f32.partialorder %v299, %v869
        %vm945 = vcmp.ge.f32.partialorder %v300, %v869
        %vm946 = vcmp.ge.f32.partialorder %v301, %v869
        %vm947 = vcmp.ge.f32.partialorder %v302, %v869
        %vm948 = vcmp.ge.f32.partialorder %v303, %v869
        %vm949 = vcmp.ge.f32.partialorder %v304, %v869
        %vm950 = vcmp.ge.f32.partialorder %v305, %v869
        %v951 = vlaneseq
        %v952 = vshrl.u32 %v951, 7
        %v953 = vsub.s32 0, %v952
        %v954 = vrot.slane %v934, %v953
        %vm955 = vcmp.lt.f32.partialorder %v290, %v954
        %vm956 = vcmp.lt.f32.partialorder %v291, %v954
        %vm957 = vcmp.lt.f32.partialorder %v292, %v954
        %vm958 = vcmp.lt.f32.partialorder %v293, %v954
        %vm959 = vcmp.lt.f32.partialorder %v294, %v954
        %vm960 = vcmp.lt.f32.partialorder %v295, %v954
        %vm961 = vcmp.lt.f32.partialorder %v296, %v954
        %vm962 = vcmp.lt.f32.partialorder %v297, %v954
        %vm963 = vcmp.lt.f32.partialorder %v298, %v954
        %vm964 = vcmp.lt.f32.partialorder %v299, %v954
        %vm965 = vcmp.lt.f32.partialorder %v300, %v954
        %vm966 = vcmp.lt.f32.partialorder %v301, %v954
        %vm967 = vcmp.lt.f32.partialorder %v302, %v954
        %vm968 = vcmp.lt.f32.partialorder %v303, %v954
        %vm969 = vcmp.lt.f32.partialorder %v304, %v954
        %vm970 = vcmp.lt.f32.partialorder %v305, %v954
        %vm971 = vmand %vm935, %vm955
        %vm972 = vmand %vm936, %vm956
        %vm973 = vmand %vm937, %vm957
        %vm974 = vmand %vm938, %vm958
        %vm975 = vmand %vm939, %vm959
        %vm976 = vmand %vm940, %vm960
        %vm977 = vmand %vm941, %vm961
        %vm978 = vmand %vm942, %vm962
        %vm979 = vmand %vm943, %vm963
        %vm980 = vmand %vm944, %vm964
        %vm981 = vmand %vm945, %vm965
        %vm982 = vmand %vm946, %vm966
        %vm983 = vmand %vm947, %vm967
        %vm984 = vmand %vm948, %vm968
        %vm985 = vmand %vm949, %vm969
        %vm986 = vmand %vm950, %vm970
        %v987 = vsel %vm971, 1, 0
        %v988 = vsel %vm972, 1, 0
        %v989 = vsel %vm973, 1, 0
        %v990 = vsel %vm974, 1, 0
        %v991 = vsel %vm975, 1, 0
        %v992 = vsel %vm976, 1, 0
        %v993 = vsel %vm977, 1, 0
        %v994 = vsel %vm978, 1, 0
        %v995 = vsel %vm979, 1, 0
        %v996 = vsel %vm980, 1, 0
        %v997 = vsel %vm981, 1, 0
        %v998 = vsel %vm982, 1, 0
        %v999 = vsel %vm983, 1, 0
        %v1000 = vsel %vm984, 1, 0
        %v1001 = vsel %vm985, 1, 0
        %v1002 = vsel %vm986, 1, 0
        %v1003 = vcvt.s32.f32 %v987
        %v1004 = vcvt.s32.f32 %v988
        %v1005 = vcvt.s32.f32 %v989
        %v1006 = vcvt.s32.f32 %v990
        %v1007 = vcvt.s32.f32 %v991
        %v1008 = vcvt.s32.f32 %v992
        %v1009 = vcvt.s32.f32 %v993
        %v1010 = vcvt.s32.f32 %v994
        %v1011 = vcvt.s32.f32 %v995
        %v1012 = vcvt.s32.f32 %v996
        %v1013 = vcvt.s32.f32 %v997
        %v1014 = vcvt.s32.f32 %v998
        %v1015 = vcvt.s32.f32 %v999
        %v1016 = vcvt.s32.f32 %v1000
        %v1017 = vcvt.s32.f32 %v1001
        %v1018 = vcvt.s32.f32 %v1002
        %v1019 = vld [vmem:[#allocation5 + $0x8] sm:$0x1]
        %vm1020 = vcmp.ge.f32.partialorder %v290, %v954
        %vm1021 = vcmp.ge.f32.partialorder %v291, %v954
        %vm1022 = vcmp.ge.f32.partialorder %v292, %v954
        %vm1023 = vcmp.ge.f32.partialorder %v293, %v954
        %vm1024 = vcmp.ge.f32.partialorder %v294, %v954
        %vm1025 = vcmp.ge.f32.partialorder %v295, %v954
        %vm1026 = vcmp.ge.f32.partialorder %v296, %v954
        %vm1027 = vcmp.ge.f32.partialorder %v297, %v954
        %vm1028 = vcmp.ge.f32.partialorder %v298, %v954
        %vm1029 = vcmp.ge.f32.partialorder %v299, %v954
        %vm1030 = vcmp.ge.f32.partialorder %v300, %v954
        %vm1031 = vcmp.ge.f32.partialorder %v301, %v954
        %vm1032 = vcmp.ge.f32.partialorder %v302, %v954
        %vm1033 = vcmp.ge.f32.partialorder %v303, %v954
        %vm1034 = vcmp.ge.f32.partialorder %v304, %v954
        %vm1035 = vcmp.ge.f32.partialorder %v305, %v954
        %v1036 = vlaneseq
        %v1037 = vshrl.u32 %v1036, 7
        %v1038 = vsub.s32 0, %v1037
        %v1039 = vrot.slane %v1019, %v1038
        %vm1040 = vcmp.lt.f32.partialorder %v290, %v1039
        %vm1041 = vcmp.lt.f32.partialorder %v291, %v1039
        %vm1042 = vcmp.lt.f32.partialorder %v292, %v1039
        %vm1043 = vcmp.lt.f32.partialorder %v293, %v1039
        %vm1044 = vcmp.lt.f32.partialorder %v294, %v1039
        %vm1045 = vcmp.lt.f32.partialorder %v295, %v1039
        %vm1046 = vcmp.lt.f32.partialorder %v296, %v1039
        %vm1047 = vcmp.lt.f32.partialorder %v297, %v1039
        %vm1048 = vcmp.lt.f32.partialorder %v298, %v1039
        %vm1049 = vcmp.lt.f32.partialorder %v299, %v1039
        %vm1050 = vcmp.lt.f32.partialorder %v300, %v1039
        %vm1051 = vcmp.lt.f32.partialorder %v301, %v1039
        %vm1052 = vcmp.lt.f32.partialorder %v302, %v1039
        %vm1053 = vcmp.lt.f32.partialorder %v303, %v1039
        %vm1054 = vcmp.lt.f32.partialorder %v304, %v1039
        %vm1055 = vcmp.lt.f32.partialorder %v305, %v1039
        %vm1056 = vmand %vm1020, %vm1040
        %vm1057 = vmand %vm1021, %vm1041
        %vm1058 = vmand %vm1022, %vm1042
        %vm1059 = vmand %vm1023, %vm1043
        %vm1060 = vmand %vm1024, %vm1044
        %vm1061 = vmand %vm1025, %vm1045
        %vm1062 = vmand %vm1026, %vm1046
        %vm1063 = vmand %vm1027, %vm1047
        %vm1064 = vmand %vm1028, %vm1048
        %vm1065 = vmand %vm1029, %vm1049
        %vm1066 = vmand %vm1030, %vm1050
        %vm1067 = vmand %vm1031, %vm1051
        %vm1068 = vmand %vm1032, %vm1052
        %vm1069 = vmand %vm1033, %vm1053
        %vm1070 = vmand %vm1034, %vm1054
        %vm1071 = vmand %vm1035, %vm1055
        %v1072 = vsel %vm1056, 1, 0
        %v1073 = vsel %vm1057, 1, 0
        %v1074 = vsel %vm1058, 1, 0
        %v1075 = vsel %vm1059, 1, 0
        %v1076 = vsel %vm1060, 1, 0
        %v1077 = vsel %vm1061, 1, 0
        %v1078 = vsel %vm1062, 1, 0
        %v1079 = vsel %vm1063, 1, 0
        %v1080 = vsel %vm1064, 1, 0
        %v1081 = vsel %vm1065, 1, 0
        %v1082 = vsel %vm1066, 1, 0
        %v1083 = vsel %vm1067, 1, 0
        %v1084 = vsel %vm1068, 1, 0
        %v1085 = vsel %vm1069, 1, 0
        %v1086 = vsel %vm1070, 1, 0
        %v1087 = vsel %vm1071, 1, 0
        %v1088 = vcvt.s32.f32 %v1072
        %v1089 = vcvt.s32.f32 %v1073
        %v1090 = vcvt.s32.f32 %v1074
        %v1091 = vcvt.s32.f32 %v1075
        %v1092 = vcvt.s32.f32 %v1076
        %v1093 = vcvt.s32.f32 %v1077
        %v1094 = vcvt.s32.f32 %v1078
        %v1095 = vcvt.s32.f32 %v1079
        %v1096 = vcvt.s32.f32 %v1080
        %v1097 = vcvt.s32.f32 %v1081
        %v1098 = vcvt.s32.f32 %v1082
        %v1099 = vcvt.s32.f32 %v1083
        %v1100 = vcvt.s32.f32 %v1084
        %v1101 = vcvt.s32.f32 %v1085
        %v1102 = vcvt.s32.f32 %v1086
        %v1103 = vcvt.s32.f32 %v1087
        %v1104 = vld [vmem:[#allocation5 + $0x9] sm:$0x1]
        %vm1105 = vcmp.ge.f32.partialorder %v290, %v1039
        %vm1106 = vcmp.ge.f32.partialorder %v291, %v1039
        %vm1107 = vcmp.ge.f32.partialorder %v292, %v1039
        %vm1108 = vcmp.ge.f32.partialorder %v293, %v1039
        %vm1109 = vcmp.ge.f32.partialorder %v294, %v1039
        %vm1110 = vcmp.ge.f32.partialorder %v295, %v1039
        %vm1111 = vcmp.ge.f32.partialorder %v296, %v1039
        %vm1112 = vcmp.ge.f32.partialorder %v297, %v1039
        %vm1113 = vcmp.ge.f32.partialorder %v298, %v1039
        %vm1114 = vcmp.ge.f32.partialorder %v299, %v1039
        %vm1115 = vcmp.ge.f32.partialorder %v300, %v1039
        %vm1116 = vcmp.ge.f32.partialorder %v301, %v1039
        %vm1117 = vcmp.ge.f32.partialorder %v302, %v1039
        %vm1118 = vcmp.ge.f32.partialorder %v303, %v1039
        %vm1119 = vcmp.ge.f32.partialorder %v304, %v1039
        %vm1120 = vcmp.ge.f32.partialorder %v305, %v1039
        %v1121 = vlaneseq
        %v1122 = vshrl.u32 %v1121, 7
        %v1123 = vsub.s32 0, %v1122
        %v1124 = vrot.slane %v1104, %v1123
        %vm1125 = vcmp.lt.f32.partialorder %v290, %v1124
        %vm1126 = vcmp.lt.f32.partialorder %v291, %v1124
        %vm1127 = vcmp.lt.f32.partialorder %v292, %v1124
        %vm1128 = vcmp.lt.f32.partialorder %v293, %v1124
        %vm1129 = vcmp.lt.f32.partialorder %v294, %v1124
        %vm1130 = vcmp.lt.f32.partialorder %v295, %v1124
        %vm1131 = vcmp.lt.f32.partialorder %v296, %v1124
        %vm1132 = vcmp.lt.f32.partialorder %v297, %v1124
        %vm1133 = vcmp.lt.f32.partialorder %v298, %v1124
        %vm1134 = vcmp.lt.f32.partialorder %v299, %v1124
        %vm1135 = vcmp.lt.f32.partialorder %v300, %v1124
        %vm1136 = vcmp.lt.f32.partialorder %v301, %v1124
        %vm1137 = vcmp.lt.f32.partialorder %v302, %v1124
        %vm1138 = vcmp.lt.f32.partialorder %v303, %v1124
        %vm1139 = vcmp.lt.f32.partialorder %v304, %v1124
        %vm1140 = vcmp.lt.f32.partialorder %v305, %v1124
        %vm1141 = vmand %vm1105, %vm1125
        %vm1142 = vmand %vm1106, %vm1126
        %vm1143 = vmand %vm1107, %vm1127
        %vm1144 = vmand %vm1108, %vm1128
        %vm1145 = vmand %vm1109, %vm1129
        %vm1146 = vmand %vm1110, %vm1130
        %vm1147 = vmand %vm1111, %vm1131
        %vm1148 = vmand %vm1112, %vm1132
        %vm1149 = vmand %vm1113, %vm1133
        %vm1150 = vmand %vm1114, %vm1134
        %vm1151 = vmand %vm1115, %vm1135
        %vm1152 = vmand %vm1116, %vm1136
        %vm1153 = vmand %vm1117, %vm1137
        %vm1154 = vmand %vm1118, %vm1138
        %vm1155 = vmand %vm1119, %vm1139
        %vm1156 = vmand %vm1120, %vm1140
        %v1157 = vsel %vm1141, 1, 0
        %v1158 = vsel %vm1142, 1, 0
        %v1159 = vsel %vm1143, 1, 0
        %v1160 = vsel %vm1144, 1, 0
        %v1161 = vsel %vm1145, 1, 0
        %v1162 = vsel %vm1146, 1, 0
        %v1163 = vsel %vm1147, 1, 0
        %v1164 = vsel %vm1148, 1, 0
        %v1165 = vsel %vm1149, 1, 0
        %v1166 = vsel %vm1150, 1, 0
        %v1167 = vsel %vm1151, 1, 0
        %v1168 = vsel %vm1152, 1, 0
        %v1169 = vsel %vm1153, 1, 0
        %v1170 = vsel %vm1154, 1, 0
        %v1171 = vsel %vm1155, 1, 0
        %v1172 = vsel %vm1156, 1, 0
        %v1173 = vcvt.s32.f32 %v1157
        %v1174 = vcvt.s32.f32 %v1158
        %v1175 = vcvt.s32.f32 %v1159
        %v1176 = vcvt.s32.f32 %v1160
        %v1177 = vcvt.s32.f32 %v1161
        %v1178 = vcvt.s32.f32 %v1162
        %v1179 = vcvt.s32.f32 %v1163
        %v1180 = vcvt.s32.f32 %v1164
        %v1181 = vcvt.s32.f32 %v1165
        %v1182 = vcvt.s32.f32 %v1166
        %v1183 = vcvt.s32.f32 %v1167
        %v1184 = vcvt.s32.f32 %v1168
        %v1185 = vcvt.s32.f32 %v1169
        %v1186 = vcvt.s32.f32 %v1170
        %v1187 = vcvt.s32.f32 %v1171
        %v1188 = vcvt.s32.f32 %v1172
        %v1189 = vld [vmem:[#allocation5 + $0xa] sm:$0x1]
        %vm1190 = vcmp.ge.f32.partialorder %v290, %v1124
        %vm1191 = vcmp.ge.f32.partialorder %v291, %v1124
        %vm1192 = vcmp.ge.f32.partialorder %v292, %v1124
        %vm1193 = vcmp.ge.f32.partialorder %v293, %v1124
        %vm1194 = vcmp.ge.f32.partialorder %v294, %v1124
        %vm1195 = vcmp.ge.f32.partialorder %v295, %v1124
        %vm1196 = vcmp.ge.f32.partialorder %v296, %v1124
        %vm1197 = vcmp.ge.f32.partialorder %v297, %v1124
        %vm1198 = vcmp.ge.f32.partialorder %v298, %v1124
        %vm1199 = vcmp.ge.f32.partialorder %v299, %v1124
        %vm1200 = vcmp.ge.f32.partialorder %v300, %v1124
        %vm1201 = vcmp.ge.f32.partialorder %v301, %v1124
        %vm1202 = vcmp.ge.f32.partialorder %v302, %v1124
        %vm1203 = vcmp.ge.f32.partialorder %v303, %v1124
        %vm1204 = vcmp.ge.f32.partialorder %v304, %v1124
        %vm1205 = vcmp.ge.f32.partialorder %v305, %v1124
        %v1206 = vlaneseq
        %v1207 = vshrl.u32 %v1206, 7
        %v1208 = vsub.s32 0, %v1207
        %v1209 = vrot.slane %v1189, %v1208
        %vm1210 = vcmp.lt.f32.partialorder %v290, %v1209
        %vm1211 = vcmp.lt.f32.partialorder %v291, %v1209
        %vm1212 = vcmp.lt.f32.partialorder %v292, %v1209
        %vm1213 = vcmp.lt.f32.partialorder %v293, %v1209
        %vm1214 = vcmp.lt.f32.partialorder %v294, %v1209
        %vm1215 = vcmp.lt.f32.partialorder %v295, %v1209
        %vm1216 = vcmp.lt.f32.partialorder %v296, %v1209
        %vm1217 = vcmp.lt.f32.partialorder %v297, %v1209
        %vm1218 = vcmp.lt.f32.partialorder %v298, %v1209
        %vm1219 = vcmp.lt.f32.partialorder %v299, %v1209
        %vm1220 = vcmp.lt.f32.partialorder %v300, %v1209
        %vm1221 = vcmp.lt.f32.partialorder %v301, %v1209
        %vm1222 = vcmp.lt.f32.partialorder %v302, %v1209
        %vm1223 = vcmp.lt.f32.partialorder %v303, %v1209
        %vm1224 = vcmp.lt.f32.partialorder %v304, %v1209
        %vm1225 = vcmp.lt.f32.partialorder %v305, %v1209
        %vm1226 = vmand %vm1190, %vm1210
        %vm1227 = vmand %vm1191, %vm1211
        %vm1228 = vmand %vm1192, %vm1212
        %vm1229 = vmand %vm1193, %vm1213
        %vm1230 = vmand %vm1194, %vm1214
        %vm1231 = vmand %vm1195, %vm1215
        %vm1232 = vmand %vm1196, %vm1216
        %vm1233 = vmand %vm1197, %vm1217
        %vm1234 = vmand %vm1198, %vm1218
        %vm1235 = vmand %vm1199, %vm1219
        %vm1236 = vmand %vm1200, %vm1220
        %vm1237 = vmand %vm1201, %vm1221
        %vm1238 = vmand %vm1202, %vm1222
        %vm1239 = vmand %vm1203, %vm1223
        %vm1240 = vmand %vm1204, %vm1224
        %vm1241 = vmand %vm1205, %vm1225
        %v1242 = vsel %vm1226, 1, 0
        %v1243 = vsel %vm1227, 1, 0
        %v1244 = vsel %vm1228, 1, 0
        %v1245 = vsel %vm1229, 1, 0
        %v1246 = vsel %vm1230, 1, 0
        %v1247 = vsel %vm1231, 1, 0
        %v1248 = vsel %vm1232, 1, 0
        %v1249 = vsel %vm1233, 1, 0
        %v1250 = vsel %vm1234, 1, 0
        %v1251 = vsel %vm1235, 1, 0
        %v1252 = vsel %vm1236, 1, 0
        %v1253 = vsel %vm1237, 1, 0
        %v1254 = vsel %vm1238, 1, 0
        %v1255 = vsel %vm1239, 1, 0
        %v1256 = vsel %vm1240, 1, 0
        %v1257 = vsel %vm1241, 1, 0
        %v1258 = vcvt.s32.f32 %v1242
        %v1259 = vcvt.s32.f32 %v1243
        %v1260 = vcvt.s32.f32 %v1244
        %v1261 = vcvt.s32.f32 %v1245
        %v1262 = vcvt.s32.f32 %v1246
        %v1263 = vcvt.s32.f32 %v1247
        %v1264 = vcvt.s32.f32 %v1248
        %v1265 = vcvt.s32.f32 %v1249
        %v1266 = vcvt.s32.f32 %v1250
        %v1267 = vcvt.s32.f32 %v1251
        %v1268 = vcvt.s32.f32 %v1252
        %v1269 = vcvt.s32.f32 %v1253
        %v1270 = vcvt.s32.f32 %v1254
        %v1271 = vcvt.s32.f32 %v1255
        %v1272 = vcvt.s32.f32 %v1256
        %v1273 = vcvt.s32.f32 %v1257
        %v1274 = vld [vmem:[#allocation5 + $0xb] sm:$0x1]
        %vm1275 = vcmp.ge.f32.partialorder %v290, %v1209
        %vm1276 = vcmp.ge.f32.partialorder %v291, %v1209
        %vm1277 = vcmp.ge.f32.partialorder %v292, %v1209
        %vm1278 = vcmp.ge.f32.partialorder %v293, %v1209
        %vm1279 = vcmp.ge.f32.partialorder %v294, %v1209
        %vm1280 = vcmp.ge.f32.partialorder %v295, %v1209
        %vm1281 = vcmp.ge.f32.partialorder %v296, %v1209
        %vm1282 = vcmp.ge.f32.partialorder %v297, %v1209
        %vm1283 = vcmp.ge.f32.partialorder %v298, %v1209
        %vm1284 = vcmp.ge.f32.partialorder %v299, %v1209
        %vm1285 = vcmp.ge.f32.partialorder %v300, %v1209
        %vm1286 = vcmp.ge.f32.partialorder %v301, %v1209
        %vm1287 = vcmp.ge.f32.partialorder %v302, %v1209
        %vm1288 = vcmp.ge.f32.partialorder %v303, %v1209
        %vm1289 = vcmp.ge.f32.partialorder %v304, %v1209
        %vm1290 = vcmp.ge.f32.partialorder %v305, %v1209
        %v1291 = vlaneseq
        %v1292 = vshrl.u32 %v1291, 7
        %v1293 = vsub.s32 0, %v1292
        %v1294 = vrot.slane %v1274, %v1293
        %vm1295 = vcmp.lt.f32.partialorder %v290, %v1294
        %vm1296 = vcmp.lt.f32.partialorder %v291, %v1294
        %vm1297 = vcmp.lt.f32.partialorder %v292, %v1294
        %vm1298 = vcmp.lt.f32.partialorder %v293, %v1294
        %vm1299 = vcmp.lt.f32.partialorder %v294, %v1294
        %vm1300 = vcmp.lt.f32.partialorder %v295, %v1294
        %vm1301 = vcmp.lt.f32.partialorder %v296, %v1294
        %vm1302 = vcmp.lt.f32.partialorder %v297, %v1294
        %vm1303 = vcmp.lt.f32.partialorder %v298, %v1294
        %vm1304 = vcmp.lt.f32.partialorder %v299, %v1294
        %vm1305 = vcmp.lt.f32.partialorder %v300, %v1294
        %vm1306 = vcmp.lt.f32.partialorder %v301, %v1294
        %vm1307 = vcmp.lt.f32.partialorder %v302, %v1294
        %vm1308 = vcmp.lt.f32.partialorder %v303, %v1294
        %vm1309 = vcmp.lt.f32.partialorder %v304, %v1294
        %vm1310 = vcmp.lt.f32.partialorder %v305, %v1294
        %vm1311 = vmand %vm1275, %vm1295
        %vm1312 = vmand %vm1276, %vm1296
        %vm1313 = vmand %vm1277, %vm1297
        %vm1314 = vmand %vm1278, %vm1298
        %vm1315 = vmand %vm1279, %vm1299
        %vm1316 = vmand %vm1280, %vm1300
        %vm1317 = vmand %vm1281, %vm1301
        %vm1318 = vmand %vm1282, %vm1302
        %vm1319 = vmand %vm1283, %vm1303
        %vm1320 = vmand %vm1284, %vm1304
        %vm1321 = vmand %vm1285, %vm1305
        %vm1322 = vmand %vm1286, %vm1306
        %vm1323 = vmand %vm1287, %vm1307
        %vm1324 = vmand %vm1288, %vm1308
        %vm1325 = vmand %vm1289, %vm1309
        %vm1326 = vmand %vm1290, %vm1310
        %v1327 = vsel %vm1311, 1, 0
        %v1328 = vsel %vm1312, 1, 0
        %v1329 = vsel %vm1313, 1, 0
        %v1330 = vsel %vm1314, 1, 0
        %v1331 = vsel %vm1315, 1, 0
        %v1332 = vsel %vm1316, 1, 0
        %v1333 = vsel %vm1317, 1, 0
        %v1334 = vsel %vm1318, 1, 0
        %v1335 = vsel %vm1319, 1, 0
        %v1336 = vsel %vm1320, 1, 0
        %v1337 = vsel %vm1321, 1, 0
        %v1338 = vsel %vm1322, 1, 0
        %v1339 = vsel %vm1323, 1, 0
        %v1340 = vsel %vm1324, 1, 0
        %v1341 = vsel %vm1325, 1, 0
        %v1342 = vsel %vm1326, 1, 0
        %v1343 = vcvt.s32.f32 %v1327
        %v1344 = vcvt.s32.f32 %v1328
        %v1345 = vcvt.s32.f32 %v1329
        %v1346 = vcvt.s32.f32 %v1330
        %v1347 = vcvt.s32.f32 %v1331
        %v1348 = vcvt.s32.f32 %v1332
        %v1349 = vcvt.s32.f32 %v1333
        %v1350 = vcvt.s32.f32 %v1334
        %v1351 = vcvt.s32.f32 %v1335
        %v1352 = vcvt.s32.f32 %v1336
        %v1353 = vcvt.s32.f32 %v1337
        %v1354 = vcvt.s32.f32 %v1338
        %v1355 = vcvt.s32.f32 %v1339
        %v1356 = vcvt.s32.f32 %v1340
        %v1357 = vcvt.s32.f32 %v1341
        %v1358 = vcvt.s32.f32 %v1342
        %v1359 = vsub.f32 %v290, %v424
        %v1360 = vsub.f32 %v291, %v424
        %v1361 = vsub.f32 %v292, %v424
        %v1362 = vsub.f32 %v293, %v424
        %v1363 = vsub.f32 %v294, %v424
        %v1364 = vsub.f32 %v295, %v424
        %v1365 = vsub.f32 %v296, %v424
        %v1366 = vsub.f32 %v297, %v424
        %v1367 = vsub.f32 %v298, %v424
        %v1368 = vsub.f32 %v299, %v424
        %v1369 = vsub.f32 %v300, %v424
        %v1370 = vsub.f32 %v301, %v424
        %v1371 = vsub.f32 %v302, %v424
        %v1372 = vsub.f32 %v303, %v424
        %v1373 = vsub.f32 %v304, %v424
        %v1374 = vsub.f32 %v305, %v424
        %v1375 = vld [vmem:[#allocation7] sm:$0x1]
        %v1376 = vlaneseq
        %v1377 = vshrl.u32 %v1376, 7
        %v1378 = vsub.s32 0, %v1377
        %v1379 = vrot.slane %v1375, %v1378
        %v1380 = vmul.f32 %v1379, %v493
        %v1381 = vmul.f32 %v1379, %v494
        %v1382 = vmul.f32 %v1379, %v495
        %v1383 = vmul.f32 %v1379, %v496
        %v1384 = vmul.f32 %v1379, %v497
        %v1385 = vmul.f32 %v1379, %v498
        %v1386 = vmul.f32 %v1379, %v499
        %v1387 = vmul.f32 %v1379, %v500
        %v1388 = vmul.f32 %v1379, %v501
        %v1389 = vmul.f32 %v1379, %v502
        %v1390 = vmul.f32 %v1379, %v503
        %v1391 = vmul.f32 %v1379, %v504
        %v1392 = vmul.f32 %v1379, %v505
        %v1393 = vmul.f32 %v1379, %v506
        %v1394 = vmul.f32 %v1379, %v507
        %v1395 = vmul.f32 %v1379, %v508
        %v1396 = vmul.f32 %v1359, %v1380
        %v1397 = vmul.f32 %v1360, %v1381
        %v1398 = vmul.f32 %v1361, %v1382
        %v1399 = vmul.f32 %v1362, %v1383
        %v1400 = vmul.f32 %v1363, %v1384
        %v1401 = vmul.f32 %v1364, %v1385
        %v1402 = vmul.f32 %v1365, %v1386
        %v1403 = vmul.f32 %v1366, %v1387
        %v1404 = vmul.f32 %v1367, %v1388
        %v1405 = vmul.f32 %v1368, %v1389
        %v1406 = vmul.f32 %v1369, %v1390
        %v1407 = vmul.f32 %v1370, %v1391
        %v1408 = vmul.f32 %v1371, %v1392
        %v1409 = vmul.f32 %v1372, %v1393
        %v1410 = vmul.f32 %v1373, %v1394
        %v1411 = vmul.f32 %v1374, %v1395
        %v1412 = vsub.f32 %v529, %v290
        %v1413 = vsub.f32 %v529, %v291
        %v1414 = vsub.f32 %v529, %v292
        %v1415 = vsub.f32 %v529, %v293
        %v1416 = vsub.f32 %v529, %v294
        %v1417 = vsub.f32 %v529, %v295
        %v1418 = vsub.f32 %v529, %v296
        %v1419 = vsub.f32 %v529, %v297
        %v1420 = vsub.f32 %v529, %v298
        %v1421 = vsub.f32 %v529, %v299
        %v1422 = vsub.f32 %v529, %v300
        %v1423 = vsub.f32 %v529, %v301
        %v1424 = vsub.f32 %v529, %v302
        %v1425 = vsub.f32 %v529, %v303
        %v1426 = vsub.f32 %v529, %v304
        %v1427 = vsub.f32 %v529, %v305
        %v1428 = vld [vmem:[#allocation7 + $0x1] sm:$0x1]
        %v1429 = vlaneseq
        %v1430 = vshrl.u32 %v1429, 7
        %v1431 = vsub.s32 0, %v1430
        %v1432 = vrot.slane %v1428, %v1431
        %v1433 = vmul.f32 %v1432, %v578
        %v1434 = vmul.f32 %v1432, %v579
        %v1435 = vmul.f32 %v1432, %v580
        %v1436 = vmul.f32 %v1432, %v581
        %v1437 = vmul.f32 %v1432, %v582
        %v1438 = vmul.f32 %v1432, %v583
        %v1439 = vmul.f32 %v1432, %v584
        %v1440 = vmul.f32 %v1432, %v585
        %v1441 = vmul.f32 %v1432, %v586
        %v1442 = vmul.f32 %v1432, %v587
        %v1443 = vmul.f32 %v1432, %v588
        %v1444 = vmul.f32 %v1432, %v589
        %v1445 = vmul.f32 %v1432, %v590
        %v1446 = vmul.f32 %v1432, %v591
        %v1447 = vmul.f32 %v1432, %v592
        %v1448 = vmul.f32 %v1432, %v593
        %v1449 = vmul.f32 %v1412, %v1433
        %v1450 = vmul.f32 %v1413, %v1434
        %v1451 = vmul.f32 %v1414, %v1435
        %v1452 = vmul.f32 %v1415, %v1436
        %v1453 = vmul.f32 %v1416, %v1437
        %v1454 = vmul.f32 %v1417, %v1438
        %v1455 = vmul.f32 %v1418, %v1439
        %v1456 = vmul.f32 %v1419, %v1440
        %v1457 = vmul.f32 %v1420, %v1441
        %v1458 = vmul.f32 %v1421, %v1442
        %v1459 = vmul.f32 %v1422, %v1443
        %v1460 = vmul.f32 %v1423, %v1444
        %v1461 = vmul.f32 %v1424, %v1445
        %v1462 = vmul.f32 %v1425, %v1446
        %v1463 = vmul.f32 %v1426, %v1447
        %v1464 = vmul.f32 %v1427, %v1448
        %v1465 = vadd.f32 %v1396, %v1449
        %v1466 = vadd.f32 %v1397, %v1450
        %v1467 = vadd.f32 %v1398, %v1451
        %v1468 = vadd.f32 %v1399, %v1452
        %v1469 = vadd.f32 %v1400, %v1453
        %v1470 = vadd.f32 %v1401, %v1454
        %v1471 = vadd.f32 %v1402, %v1455
        %v1472 = vadd.f32 %v1403, %v1456
        %v1473 = vadd.f32 %v1404, %v1457
        %v1474 = vadd.f32 %v1405, %v1458
        %v1475 = vadd.f32 %v1406, %v1459
        %v1476 = vadd.f32 %v1407, %v1460
        %v1477 = vadd.f32 %v1408, %v1461
        %v1478 = vadd.f32 %v1409, %v1462
        %v1479 = vadd.f32 %v1410, %v1463
        %v1480 = vadd.f32 %v1411, %v1464
        %v1481 = vsub.f32 %v290, %v444
        %v1482 = vsub.f32 %v291, %v444
        %v1483 = vsub.f32 %v292, %v444
        %v1484 = vsub.f32 %v293, %v444
        %v1485 = vsub.f32 %v294, %v444
        %v1486 = vsub.f32 %v295, %v444
        %v1487 = vsub.f32 %v296, %v444
        %v1488 = vsub.f32 %v297, %v444
        %v1489 = vsub.f32 %v298, %v444
        %v1490 = vsub.f32 %v299, %v444
        %v1491 = vsub.f32 %v300, %v444
        %v1492 = vsub.f32 %v301, %v444
        %v1493 = vsub.f32 %v302, %v444
        %v1494 = vsub.f32 %v303, %v444
        %v1495 = vsub.f32 %v304, %v444
        %v1496 = vsub.f32 %v305, %v444
        %v1497 = vmul.f32 %v1481, %v1433
        %v1498 = vmul.f32 %v1482, %v1434
        %v1499 = vmul.f32 %v1483, %v1435
        %v1500 = vmul.f32 %v1484, %v1436
        %v1501 = vmul.f32 %v1485, %v1437
        %v1502 = vmul.f32 %v1486, %v1438
        %v1503 = vmul.f32 %v1487, %v1439
        %v1504 = vmul.f32 %v1488, %v1440
        %v1505 = vmul.f32 %v1489, %v1441
        %v1506 = vmul.f32 %v1490, %v1442
        %v1507 = vmul.f32 %v1491, %v1443
        %v1508 = vmul.f32 %v1492, %v1444
        %v1509 = vmul.f32 %v1493, %v1445
        %v1510 = vmul.f32 %v1494, %v1446
        %v1511 = vmul.f32 %v1495, %v1447
        %v1512 = vmul.f32 %v1496, %v1448
        %v1513 = vsub.f32 %v614, %v290
        %v1514 = vsub.f32 %v614, %v291
        %v1515 = vsub.f32 %v614, %v292
        %v1516 = vsub.f32 %v614, %v293
        %v1517 = vsub.f32 %v614, %v294
        %v1518 = vsub.f32 %v614, %v295
        %v1519 = vsub.f32 %v614, %v296
        %v1520 = vsub.f32 %v614, %v297
        %v1521 = vsub.f32 %v614, %v298
        %v1522 = vsub.f32 %v614, %v299
        %v1523 = vsub.f32 %v614, %v300
        %v1524 = vsub.f32 %v614, %v301
        %v1525 = vsub.f32 %v614, %v302
        %v1526 = vsub.f32 %v614, %v303
        %v1527 = vsub.f32 %v614, %v304
        %v1528 = vsub.f32 %v614, %v305
        %v1529 = vld [vmem:[#allocation7 + $0x2] sm:$0x1]
        %v1530 = vlaneseq
        %v1531 = vshrl.u32 %v1530, 7
        %v1532 = vsub.s32 0, %v1531
        %v1533 = vrot.slane %v1529, %v1532
        %v1534 = vmul.f32 %v1533, %v663
        %v1535 = vmul.f32 %v1533, %v664
        %v1536 = vmul.f32 %v1533, %v665
        %v1537 = vmul.f32 %v1533, %v666
        %v1538 = vmul.f32 %v1533, %v667
        %v1539 = vmul.f32 %v1533, %v668
        %v1540 = vmul.f32 %v1533, %v669
        %v1541 = vmul.f32 %v1533, %v670
        %v1542 = vmul.f32 %v1533, %v671
        %v1543 = vmul.f32 %v1533, %v672
        %v1544 = vmul.f32 %v1533, %v673
        %v1545 = vmul.f32 %v1533, %v674
        %v1546 = vmul.f32 %v1533, %v675
        %v1547 = vmul.f32 %v1533, %v676
        %v1548 = vmul.f32 %v1533, %v677
        %v1549 = vmul.f32 %v1533, %v678
        %v1550 = vmul.f32 %v1513, %v1534
        %v1551 = vmul.f32 %v1514, %v1535
        %v1552 = vmul.f32 %v1515, %v1536
        %v1553 = vmul.f32 %v1516, %v1537
        %v1554 = vmul.f32 %v1517, %v1538
        %v1555 = vmul.f32 %v1518, %v1539
        %v1556 = vmul.f32 %v1519, %v1540
        %v1557 = vmul.f32 %v1520, %v1541
        %v1558 = vmul.f32 %v1521, %v1542
        %v1559 = vmul.f32 %v1522, %v1543
        %v1560 = vmul.f32 %v1523, %v1544
        %v1561 = vmul.f32 %v1524, %v1545
        %v1562 = vmul.f32 %v1525, %v1546
        %v1563 = vmul.f32 %v1526, %v1547
        %v1564 = vmul.f32 %v1527, %v1548
        %v1565 = vmul.f32 %v1528, %v1549
        %v1566 = vadd.f32 %v1497, %v1550
        %v1567 = vadd.f32 %v1498, %v1551
        %v1568 = vadd.f32 %v1499, %v1552
        %v1569 = vadd.f32 %v1500, %v1553
        %v1570 = vadd.f32 %v1501, %v1554
        %v1571 = vadd.f32 %v1502, %v1555
        %v1572 = vadd.f32 %v1503, %v1556
        %v1573 = vadd.f32 %v1504, %v1557
        %v1574 = vadd.f32 %v1505, %v1558
        %v1575 = vadd.f32 %v1506, %v1559
        %v1576 = vadd.f32 %v1507, %v1560
        %v1577 = vadd.f32 %v1508, %v1561
        %v1578 = vadd.f32 %v1509, %v1562
        %v1579 = vadd.f32 %v1510, %v1563
        %v1580 = vadd.f32 %v1511, %v1564
        %v1581 = vadd.f32 %v1512, %v1565
        %v1582 = vsub.f32 %v290, %v529
        %v1583 = vsub.f32 %v291, %v529
        %v1584 = vsub.f32 %v292, %v529
        %v1585 = vsub.f32 %v293, %v529
        %v1586 = vsub.f32 %v294, %v529
        %v1587 = vsub.f32 %v295, %v529
        %v1588 = vsub.f32 %v296, %v529
        %v1589 = vsub.f32 %v297, %v529
        %v1590 = vsub.f32 %v298, %v529
        %v1591 = vsub.f32 %v299, %v529
        %v1592 = vsub.f32 %v300, %v529
        %v1593 = vsub.f32 %v301, %v529
        %v1594 = vsub.f32 %v302, %v529
        %v1595 = vsub.f32 %v303, %v529
        %v1596 = vsub.f32 %v304, %v529
        %v1597 = vsub.f32 %v305, %v529
        %v1598 = vmul.f32 %v1582, %v1534
        %v1599 = vmul.f32 %v1583, %v1535
        %v1600 = vmul.f32 %v1584, %v1536
        %v1601 = vmul.f32 %v1585, %v1537
        %v1602 = vmul.f32 %v1586, %v1538
        %v1603 = vmul.f32 %v1587, %v1539
        %v1604 = vmul.f32 %v1588, %v1540
        %v1605 = vmul.f32 %v1589, %v1541
        %v1606 = vmul.f32 %v1590, %v1542
        %v1607 = vmul.f32 %v1591, %v1543
        %v1608 = vmul.f32 %v1592, %v1544
        %v1609 = vmul.f32 %v1593, %v1545
        %v1610 = vmul.f32 %v1594, %v1546
        %v1611 = vmul.f32 %v1595, %v1547
        %v1612 = vmul.f32 %v1596, %v1548
        %v1613 = vmul.f32 %v1597, %v1549
        %v1614 = vsub.f32 %v699, %v290
        %v1615 = vsub.f32 %v699, %v291
        %v1616 = vsub.f32 %v699, %v292
        %v1617 = vsub.f32 %v699, %v293
        %v1618 = vsub.f32 %v699, %v294
        %v1619 = vsub.f32 %v699, %v295
        %v1620 = vsub.f32 %v699, %v296
        %v1621 = vsub.f32 %v699, %v297
        %v1622 = vsub.f32 %v699, %v298
        %v1623 = vsub.f32 %v699, %v299
        %v1624 = vsub.f32 %v699, %v300
        %v1625 = vsub.f32 %v699, %v301
        %v1626 = vsub.f32 %v699, %v302
        %v1627 = vsub.f32 %v699, %v303
        %v1628 = vsub.f32 %v699, %v304
        %v1629 = vsub.f32 %v699, %v305
        %v1630 = vld [vmem:[#allocation7 + $0x3] sm:$0x1]
        %v1631 = vlaneseq
        %v1632 = vshrl.u32 %v1631, 7
        %v1633 = vsub.s32 0, %v1632
        %v1634 = vrot.slane %v1630, %v1633
        %v1635 = vmul.f32 %v1634, %v748
        %v1636 = vmul.f32 %v1634, %v749
        %v1637 = vmul.f32 %v1634, %v750
        %v1638 = vmul.f32 %v1634, %v751
        %v1639 = vmul.f32 %v1634, %v752
        %v1640 = vmul.f32 %v1634, %v753
        %v1641 = vmul.f32 %v1634, %v754
        %v1642 = vmul.f32 %v1634, %v755
        %v1643 = vmul.f32 %v1634, %v756
        %v1644 = vmul.f32 %v1634, %v757
        %v1645 = vmul.f32 %v1634, %v758
        %v1646 = vmul.f32 %v1634, %v759
        %v1647 = vmul.f32 %v1634, %v760
        %v1648 = vmul.f32 %v1634, %v761
        %v1649 = vmul.f32 %v1634, %v762
        %v1650 = vmul.f32 %v1634, %v763
        %v1651 = vmul.f32 %v1614, %v1635
        %v1652 = vmul.f32 %v1615, %v1636
        %v1653 = vmul.f32 %v1616, %v1637
        %v1654 = vmul.f32 %v1617, %v1638
        %v1655 = vmul.f32 %v1618, %v1639
        %v1656 = vmul.f32 %v1619, %v1640
        %v1657 = vmul.f32 %v1620, %v1641
        %v1658 = vmul.f32 %v1621, %v1642
        %v1659 = vmul.f32 %v1622, %v1643
        %v1660 = vmul.f32 %v1623, %v1644
        %v1661 = vmul.f32 %v1624, %v1645
        %v1662 = vmul.f32 %v1625, %v1646
        %v1663 = vmul.f32 %v1626, %v1647
        %v1664 = vmul.f32 %v1627, %v1648
        %v1665 = vmul.f32 %v1628, %v1649
        %v1666 = vmul.f32 %v1629, %v1650
        %v1667 = vadd.f32 %v1598, %v1651
        %v1668 = vadd.f32 %v1599, %v1652
        %v1669 = vadd.f32 %v1600, %v1653
        %v1670 = vadd.f32 %v1601, %v1654
        %v1671 = vadd.f32 %v1602, %v1655
        %v1672 = vadd.f32 %v1603, %v1656
        %v1673 = vadd.f32 %v1604, %v1657
        %v1674 = vadd.f32 %v1605, %v1658
        %v1675 = vadd.f32 %v1606, %v1659
        %v1676 = vadd.f32 %v1607, %v1660
        %v1677 = vadd.f32 %v1608, %v1661
        %v1678 = vadd.f32 %v1609, %v1662
        %v1679 = vadd.f32 %v1610, %v1663
        %v1680 = vadd.f32 %v1611, %v1664
        %v1681 = vadd.f32 %v1612, %v1665
        %v1682 = vadd.f32 %v1613, %v1666
        %v1683 = vsub.f32 %v290, %v614
        %v1684 = vsub.f32 %v291, %v614
        %v1685 = vsub.f32 %v292, %v614
        %v1686 = vsub.f32 %v293, %v614
        %v1687 = vsub.f32 %v294, %v614
        %v1688 = vsub.f32 %v295, %v614
        %v1689 = vsub.f32 %v296, %v614
        %v1690 = vsub.f32 %v297, %v614
        %v1691 = vsub.f32 %v298, %v614
        %v1692 = vsub.f32 %v299, %v614
        %v1693 = vsub.f32 %v300, %v614
        %v1694 = vsub.f32 %v301, %v614
        %v1695 = vsub.f32 %v302, %v614
        %v1696 = vsub.f32 %v303, %v614
        %v1697 = vsub.f32 %v304, %v614
        %v1698 = vsub.f32 %v305, %v614
        %v1699 = vmul.f32 %v1683, %v1635
        %v1700 = vmul.f32 %v1684, %v1636
        %v1701 = vmul.f32 %v1685, %v1637
        %v1702 = vmul.f32 %v1686, %v1638
        %v1703 = vmul.f32 %v1687, %v1639
        %v1704 = vmul.f32 %v1688, %v1640
        %v1705 = vmul.f32 %v1689, %v1641
        %v1706 = vmul.f32 %v1690, %v1642
        %v1707 = vmul.f32 %v1691, %v1643
        %v1708 = vmul.f32 %v1692, %v1644
        %v1709 = vmul.f32 %v1693, %v1645
        %v1710 = vmul.f32 %v1694, %v1646
        %v1711 = vmul.f32 %v1695, %v1647
        %v1712 = vmul.f32 %v1696, %v1648
        %v1713 = vmul.f32 %v1697, %v1649
        %v1714 = vmul.f32 %v1698, %v1650
        %v1715 = vsub.f32 %v784, %v290
        %v1716 = vsub.f32 %v784, %v291
        %v1717 = vsub.f32 %v784, %v292
        %v1718 = vsub.f32 %v784, %v293
        %v1719 = vsub.f32 %v784, %v294
        %v1720 = vsub.f32 %v784, %v295
        %v1721 = vsub.f32 %v784, %v296
        %v1722 = vsub.f32 %v784, %v297
        %v1723 = vsub.f32 %v784, %v298
        %v1724 = vsub.f32 %v784, %v299
        %v1725 = vsub.f32 %v784, %v300
        %v1726 = vsub.f32 %v784, %v301
        %v1727 = vsub.f32 %v784, %v302
        %v1728 = vsub.f32 %v784, %v303
        %v1729 = vsub.f32 %v784, %v304
        %v1730 = vsub.f32 %v784, %v305
        %v1731 = vld [vmem:[#allocation7 + $0x4] sm:$0x1]
        %v1732 = vlaneseq
        %v1733 = vshrl.u32 %v1732, 7
        %v1734 = vsub.s32 0, %v1733
        %v1735 = vrot.slane %v1731, %v1734
        %v1736 = vmul.f32 %v1735, %v833
        %v1737 = vmul.f32 %v1735, %v834
        %v1738 = vmul.f32 %v1735, %v835
        %v1739 = vmul.f32 %v1735, %v836
        %v1740 = vmul.f32 %v1735, %v837
        %v1741 = vmul.f32 %v1735, %v838
        %v1742 = vmul.f32 %v1735, %v839
        %v1743 = vmul.f32 %v1735, %v840
        %v1744 = vmul.f32 %v1735, %v841
        %v1745 = vmul.f32 %v1735, %v842
        %v1746 = vmul.f32 %v1735, %v843
        %v1747 = vmul.f32 %v1735, %v844
        %v1748 = vmul.f32 %v1735, %v845
        %v1749 = vmul.f32 %v1735, %v846
        %v1750 = vmul.f32 %v1735, %v847
        %v1751 = vmul.f32 %v1735, %v848
        %v1752 = vmul.f32 %v1715, %v1736
        %v1753 = vmul.f32 %v1716, %v1737
        %v1754 = vmul.f32 %v1717, %v1738
        %v1755 = vmul.f32 %v1718, %v1739
        %v1756 = vmul.f32 %v1719, %v1740
        %v1757 = vmul.f32 %v1720, %v1741
        %v1758 = vmul.f32 %v1721, %v1742
        %v1759 = vmul.f32 %v1722, %v1743
        %v1760 = vmul.f32 %v1723, %v1744
        %v1761 = vmul.f32 %v1724, %v1745
        %v1762 = vmul.f32 %v1725, %v1746
        %v1763 = vmul.f32 %v1726, %v1747
        %v1764 = vmul.f32 %v1727, %v1748
        %v1765 = vmul.f32 %v1728, %v1749
        %v1766 = vmul.f32 %v1729, %v1750
        %v1767 = vmul.f32 %v1730, %v1751
        %v1768 = vadd.f32 %v1699, %v1752
        %v1769 = vadd.f32 %v1700, %v1753
        %v1770 = vadd.f32 %v1701, %v1754
        %v1771 = vadd.f32 %v1702, %v1755
        %v1772 = vadd.f32 %v1703, %v1756
        %v1773 = vadd.f32 %v1704, %v1757
        %v1774 = vadd.f32 %v1705, %v1758
        %v1775 = vadd.f32 %v1706, %v1759
        %v1776 = vadd.f32 %v1707, %v1760
        %v1777 = vadd.f32 %v1708, %v1761
        %v1778 = vadd.f32 %v1709, %v1762
        %v1779 = vadd.f32 %v1710, %v1763
        %v1780 = vadd.f32 %v1711, %v1764
        %v1781 = vadd.f32 %v1712, %v1765
        %v1782 = vadd.f32 %v1713, %v1766
        %v1783 = vadd.f32 %v1714, %v1767
        %v1784 = vsub.f32 %v290, %v699
        %v1785 = vsub.f32 %v291, %v699
        %v1786 = vsub.f32 %v292, %v699
        %v1787 = vsub.f32 %v293, %v699
        %v1788 = vsub.f32 %v294, %v699
        %v1789 = vsub.f32 %v295, %v699
        %v1790 = vsub.f32 %v296, %v699
        %v1791 = vsub.f32 %v297, %v699
        %v1792 = vsub.f32 %v298, %v699
        %v1793 = vsub.f32 %v299, %v699
        %v1794 = vsub.f32 %v300, %v699
        %v1795 = vsub.f32 %v301, %v699
        %v1796 = vsub.f32 %v302, %v699
        %v1797 = vsub.f32 %v303, %v699
        %v1798 = vsub.f32 %v304, %v699
        %v1799 = vsub.f32 %v305, %v699
        %v1800 = vmul.f32 %v1784, %v1736
        %v1801 = vmul.f32 %v1785, %v1737
        %v1802 = vmul.f32 %v1786, %v1738
        %v1803 = vmul.f32 %v1787, %v1739
        %v1804 = vmul.f32 %v1788, %v1740
        %v1805 = vmul.f32 %v1789, %v1741
        %v1806 = vmul.f32 %v1790, %v1742
        %v1807 = vmul.f32 %v1791, %v1743
        %v1808 = vmul.f32 %v1792, %v1744
        %v1809 = vmul.f32 %v1793, %v1745
        %v1810 = vmul.f32 %v1794, %v1746
        %v1811 = vmul.f32 %v1795, %v1747
        %v1812 = vmul.f32 %v1796, %v1748
        %v1813 = vmul.f32 %v1797, %v1749
        %v1814 = vmul.f32 %v1798, %v1750
        %v1815 = vmul.f32 %v1799, %v1751
        %v1816 = vsub.f32 %v869, %v290
        %v1817 = vsub.f32 %v869, %v291
        %v1818 = vsub.f32 %v869, %v292
        %v1819 = vsub.f32 %v869, %v293
        %v1820 = vsub.f32 %v869, %v294
        %v1821 = vsub.f32 %v869, %v295
        %v1822 = vsub.f32 %v869, %v296
        %v1823 = vsub.f32 %v869, %v297
        %v1824 = vsub.f32 %v869, %v298
        %v1825 = vsub.f32 %v869, %v299
        %v1826 = vsub.f32 %v869, %v300
        %v1827 = vsub.f32 %v869, %v301
        %v1828 = vsub.f32 %v869, %v302
        %v1829 = vsub.f32 %v869, %v303
        %v1830 = vsub.f32 %v869, %v304
        %v1831 = vsub.f32 %v869, %v305
        %v1832 = vld [vmem:[#allocation7 + $0x5] sm:$0x1]
        %v1833 = vlaneseq
        %v1834 = vshrl.u32 %v1833, 7
        %v1835 = vsub.s32 0, %v1834
        %v1836 = vrot.slane %v1832, %v1835
        %v1837 = vmul.f32 %v1836, %v918
        %v1838 = vmul.f32 %v1836, %v919
        %v1839 = vmul.f32 %v1836, %v920
        %v1840 = vmul.f32 %v1836, %v921
        %v1841 = vmul.f32 %v1836, %v922
        %v1842 = vmul.f32 %v1836, %v923
        %v1843 = vmul.f32 %v1836, %v924
        %v1844 = vmul.f32 %v1836, %v925
        %v1845 = vmul.f32 %v1836, %v926
        %v1846 = vmul.f32 %v1836, %v927
        %v1847 = vmul.f32 %v1836, %v928
        %v1848 = vmul.f32 %v1836, %v929
        %v1849 = vmul.f32 %v1836, %v930
        %v1850 = vmul.f32 %v1836, %v931
        %v1851 = vmul.f32 %v1836, %v932
        %v1852 = vmul.f32 %v1836, %v933
        %v1853 = vmul.f32 %v1816, %v1837
        %v1854 = vmul.f32 %v1817, %v1838
        %v1855 = vmul.f32 %v1818, %v1839
        %v1856 = vmul.f32 %v1819, %v1840
        %v1857 = vmul.f32 %v1820, %v1841
        %v1858 = vmul.f32 %v1821, %v1842
        %v1859 = vmul.f32 %v1822, %v1843
        %v1860 = vmul.f32 %v1823, %v1844
        %v1861 = vmul.f32 %v1824, %v1845
        %v1862 = vmul.f32 %v1825, %v1846
        %v1863 = vmul.f32 %v1826, %v1847
        %v1864 = vmul.f32 %v1827, %v1848
        %v1865 = vmul.f32 %v1828, %v1849
        %v1866 = vmul.f32 %v1829, %v1850
        %v1867 = vmul.f32 %v1830, %v1851
        %v1868 = vmul.f32 %v1831, %v1852
        %v1869 = vadd.f32 %v1800, %v1853
        %v1870 = vadd.f32 %v1801, %v1854
        %v1871 = vadd.f32 %v1802, %v1855
        %v1872 = vadd.f32 %v1803, %v1856
        %v1873 = vadd.f32 %v1804, %v1857
        %v1874 = vadd.f32 %v1805, %v1858
        %v1875 = vadd.f32 %v1806, %v1859
        %v1876 = vadd.f32 %v1807, %v1860
        %v1877 = vadd.f32 %v1808, %v1861
        %v1878 = vadd.f32 %v1809, %v1862
        %v1879 = vadd.f32 %v1810, %v1863
        %v1880 = vadd.f32 %v1811, %v1864
        %v1881 = vadd.f32 %v1812, %v1865
        %v1882 = vadd.f32 %v1813, %v1866
        %v1883 = vadd.f32 %v1814, %v1867
        %v1884 = vadd.f32 %v1815, %v1868
        %v1885 = vsub.f32 %v290, %v784
        %v1886 = vsub.f32 %v291, %v784
        %v1887 = vsub.f32 %v292, %v784
        %v1888 = vsub.f32 %v293, %v784
        %v1889 = vsub.f32 %v294, %v784
        %v1890 = vsub.f32 %v295, %v784
        %v1891 = vsub.f32 %v296, %v784
        %v1892 = vsub.f32 %v297, %v784
        %v1893 = vsub.f32 %v298, %v784
        %v1894 = vsub.f32 %v299, %v784
        %v1895 = vsub.f32 %v300, %v784
        %v1896 = vsub.f32 %v301, %v784
        %v1897 = vsub.f32 %v302, %v784
        %v1898 = vsub.f32 %v303, %v784
        %v1899 = vsub.f32 %v304, %v784
        %v1900 = vsub.f32 %v305, %v784
        %v1901 = vmul.f32 %v1885, %v1837
        %v1902 = vmul.f32 %v1886, %v1838
        %v1903 = vmul.f32 %v1887, %v1839
        %v1904 = vmul.f32 %v1888, %v1840
        %v1905 = vmul.f32 %v1889, %v1841
        %v1906 = vmul.f32 %v1890, %v1842
        %v1907 = vmul.f32 %v1891, %v1843
        %v1908 = vmul.f32 %v1892, %v1844
        %v1909 = vmul.f32 %v1893, %v1845
        %v1910 = vmul.f32 %v1894, %v1846
        %v1911 = vmul.f32 %v1895, %v1847
        %v1912 = vmul.f32 %v1896, %v1848
        %v1913 = vmul.f32 %v1897, %v1849
        %v1914 = vmul.f32 %v1898, %v1850
        %v1915 = vmul.f32 %v1899, %v1851
        %v1916 = vmul.f32 %v1900, %v1852
        %v1917 = vsub.f32 %v954, %v290
        %v1918 = vsub.f32 %v954, %v291
        %v1919 = vsub.f32 %v954, %v292
        %v1920 = vsub.f32 %v954, %v293
        %v1921 = vsub.f32 %v954, %v294
        %v1922 = vsub.f32 %v954, %v295
        %v1923 = vsub.f32 %v954, %v296
        %v1924 = vsub.f32 %v954, %v297
        %v1925 = vsub.f32 %v954, %v298
        %v1926 = vsub.f32 %v954, %v299
        %v1927 = vsub.f32 %v954, %v300
        %v1928 = vsub.f32 %v954, %v301
        %v1929 = vsub.f32 %v954, %v302
        %v1930 = vsub.f32 %v954, %v303
        %v1931 = vsub.f32 %v954, %v304
        %v1932 = vsub.f32 %v954, %v305
        %v1933 = vld [vmem:[#allocation7 + $0x6] sm:$0x1]
        %v1934 = vlaneseq
        %v1935 = vshrl.u32 %v1934, 7
        %v1936 = vsub.s32 0, %v1935
        %v1937 = vrot.slane %v1933, %v1936
        %v1938 = vmul.f32 %v1937, %v1003
        %v1939 = vmul.f32 %v1937, %v1004
        %v1940 = vmul.f32 %v1937, %v1005
        %v1941 = vmul.f32 %v1937, %v1006
        %v1942 = vmul.f32 %v1937, %v1007
        %v1943 = vmul.f32 %v1937, %v1008
        %v1944 = vmul.f32 %v1937, %v1009
        %v1945 = vmul.f32 %v1937, %v1010
        %v1946 = vmul.f32 %v1937, %v1011
        %v1947 = vmul.f32 %v1937, %v1012
        %v1948 = vmul.f32 %v1937, %v1013
        %v1949 = vmul.f32 %v1937, %v1014
        %v1950 = vmul.f32 %v1937, %v1015
        %v1951 = vmul.f32 %v1937, %v1016
        %v1952 = vmul.f32 %v1937, %v1017
        %v1953 = vmul.f32 %v1937, %v1018
        %v1954 = vmul.f32 %v1917, %v1938
        %v1955 = vmul.f32 %v1918, %v1939
        %v1956 = vmul.f32 %v1919, %v1940
        %v1957 = vmul.f32 %v1920, %v1941
        %v1958 = vmul.f32 %v1921, %v1942
        %v1959 = vmul.f32 %v1922, %v1943
        %v1960 = vmul.f32 %v1923, %v1944
        %v1961 = vmul.f32 %v1924, %v1945
        %v1962 = vmul.f32 %v1925, %v1946
        %v1963 = vmul.f32 %v1926, %v1947
        %v1964 = vmul.f32 %v1927, %v1948
        %v1965 = vmul.f32 %v1928, %v1949
        %v1966 = vmul.f32 %v1929, %v1950
        %v1967 = vmul.f32 %v1930, %v1951
        %v1968 = vmul.f32 %v1931, %v1952
        %v1969 = vmul.f32 %v1932, %v1953
        %v1970 = vadd.f32 %v1901, %v1954
        %v1971 = vadd.f32 %v1902, %v1955
        %v1972 = vadd.f32 %v1903, %v1956
        %v1973 = vadd.f32 %v1904, %v1957
        %v1974 = vadd.f32 %v1905, %v1958
        %v1975 = vadd.f32 %v1906, %v1959
        %v1976 = vadd.f32 %v1907, %v1960
        %v1977 = vadd.f32 %v1908, %v1961
        %v1978 = vadd.f32 %v1909, %v1962
        %v1979 = vadd.f32 %v1910, %v1963
        %v1980 = vadd.f32 %v1911, %v1964
        %v1981 = vadd.f32 %v1912, %v1965
        %v1982 = vadd.f32 %v1913, %v1966
        %v1983 = vadd.f32 %v1914, %v1967
        %v1984 = vadd.f32 %v1915, %v1968
        %v1985 = vadd.f32 %v1916, %v1969
        %v1986 = vsub.f32 %v290, %v869
        %v1987 = vsub.f32 %v291, %v869
        %v1988 = vsub.f32 %v292, %v869
        %v1989 = vsub.f32 %v293, %v869
        %v1990 = vsub.f32 %v294, %v869
        %v1991 = vsub.f32 %v295, %v869
        %v1992 = vsub.f32 %v296, %v869
        %v1993 = vsub.f32 %v297, %v869
        %v1994 = vsub.f32 %v298, %v869
        %v1995 = vsub.f32 %v299, %v869
        %v1996 = vsub.f32 %v300, %v869
        %v1997 = vsub.f32 %v301, %v869
        %v1998 = vsub.f32 %v302, %v869
        %v1999 = vsub.f32 %v303, %v869
        %v2000 = vsub.f32 %v304, %v869
        %v2001 = vsub.f32 %v305, %v869
        %v2002 = vmul.f32 %v1986, %v1938
        %v2003 = vmul.f32 %v1987, %v1939
        %v2004 = vmul.f32 %v1988, %v1940
        %v2005 = vmul.f32 %v1989, %v1941
        %v2006 = vmul.f32 %v1990, %v1942
        %v2007 = vmul.f32 %v1991, %v1943
        %v2008 = vmul.f32 %v1992, %v1944
        %v2009 = vmul.f32 %v1993, %v1945
        %v2010 = vmul.f32 %v1994, %v1946
        %v2011 = vmul.f32 %v1995, %v1947
        %v2012 = vmul.f32 %v1996, %v1948
        %v2013 = vmul.f32 %v1997, %v1949
        %v2014 = vmul.f32 %v1998, %v1950
        %v2015 = vmul.f32 %v1999, %v1951
        %v2016 = vmul.f32 %v2000, %v1952
        %v2017 = vmul.f32 %v2001, %v1953
        %v2018 = vsub.f32 %v1039, %v290
        %v2019 = vsub.f32 %v1039, %v291
        %v2020 = vsub.f32 %v1039, %v292
        %v2021 = vsub.f32 %v1039, %v293
        %v2022 = vsub.f32 %v1039, %v294
        %v2023 = vsub.f32 %v1039, %v295
        %v2024 = vsub.f32 %v1039, %v296
        %v2025 = vsub.f32 %v1039, %v297
        %v2026 = vsub.f32 %v1039, %v298
        %v2027 = vsub.f32 %v1039, %v299
        %v2028 = vsub.f32 %v1039, %v300
        %v2029 = vsub.f32 %v1039, %v301
        %v2030 = vsub.f32 %v1039, %v302
        %v2031 = vsub.f32 %v1039, %v303
        %v2032 = vsub.f32 %v1039, %v304
        %v2033 = vsub.f32 %v1039, %v305
        %v2034 = vld [vmem:[#allocation7 + $0x7] sm:$0x1]
        %v2035 = vlaneseq
        %v2036 = vshrl.u32 %v2035, 7
        %v2037 = vsub.s32 0, %v2036
        %v2038 = vrot.slane %v2034, %v2037
        %v2039 = vmul.f32 %v2038, %v1088
        %v2040 = vmul.f32 %v2038, %v1089
        %v2041 = vmul.f32 %v2038, %v1090
        %v2042 = vmul.f32 %v2038, %v1091
        %v2043 = vmul.f32 %v2038, %v1092
        %v2044 = vmul.f32 %v2038, %v1093
        %v2045 = vmul.f32 %v2038, %v1094
        %v2046 = vmul.f32 %v2038, %v1095
        %v2047 = vmul.f32 %v2038, %v1096
        %v2048 = vmul.f32 %v2038, %v1097
        %v2049 = vmul.f32 %v2038, %v1098
        %v2050 = vmul.f32 %v2038, %v1099
        %v2051 = vmul.f32 %v2038, %v1100
        %v2052 = vmul.f32 %v2038, %v1101
        %v2053 = vmul.f32 %v2038, %v1102
        %v2054 = vmul.f32 %v2038, %v1103
        %v2055 = vmul.f32 %v2018, %v2039
        %v2056 = vmul.f32 %v2019, %v2040
        %v2057 = vmul.f32 %v2020, %v2041
        %v2058 = vmul.f32 %v2021, %v2042
        %v2059 = vmul.f32 %v2022, %v2043
        %v2060 = vmul.f32 %v2023, %v2044
        %v2061 = vmul.f32 %v2024, %v2045
        %v2062 = vmul.f32 %v2025, %v2046
        %v2063 = vmul.f32 %v2026, %v2047
        %v2064 = vmul.f32 %v2027, %v2048
        %v2065 = vmul.f32 %v2028, %v2049
        %v2066 = vmul.f32 %v2029, %v2050
        %v2067 = vmul.f32 %v2030, %v2051
        %v2068 = vmul.f32 %v2031, %v2052
        %v2069 = vmul.f32 %v2032, %v2053
        %v2070 = vmul.f32 %v2033, %v2054
        %v2071 = vadd.f32 %v2002, %v2055
        %v2072 = vadd.f32 %v2003, %v2056
        %v2073 = vadd.f32 %v2004, %v2057
        %v2074 = vadd.f32 %v2005, %v2058
        %v2075 = vadd.f32 %v2006, %v2059
        %v2076 = vadd.f32 %v2007, %v2060
        %v2077 = vadd.f32 %v2008, %v2061
        %v2078 = vadd.f32 %v2009, %v2062
        %v2079 = vadd.f32 %v2010, %v2063
        %v2080 = vadd.f32 %v2011, %v2064
        %v2081 = vadd.f32 %v2012, %v2065
        %v2082 = vadd.f32 %v2013, %v2066
        %v2083 = vadd.f32 %v2014, %v2067
        %v2084 = vadd.f32 %v2015, %v2068
        %v2085 = vadd.f32 %v2016, %v2069
        %v2086 = vadd.f32 %v2017, %v2070
        %v2087 = vsub.f32 %v290, %v954
        %v2088 = vsub.f32 %v291, %v954
        %v2089 = vsub.f32 %v292, %v954
        %v2090 = vsub.f32 %v293, %v954
        %v2091 = vsub.f32 %v294, %v954
        %v2092 = vsub.f32 %v295, %v954
        %v2093 = vsub.f32 %v296, %v954
        %v2094 = vsub.f32 %v297, %v954
        %v2095 = vsub.f32 %v298, %v954
        %v2096 = vsub.f32 %v299, %v954
        %v2097 = vsub.f32 %v300, %v954
        %v2098 = vsub.f32 %v301, %v954
        %v2099 = vsub.f32 %v302, %v954
        %v2100 = vsub.f32 %v303, %v954
        %v2101 = vsub.f32 %v304, %v954
        %v2102 = vsub.f32 %v305, %v954
        %v2103 = vmul.f32 %v2087, %v2039
        %v2104 = vmul.f32 %v2088, %v2040
        %v2105 = vmul.f32 %v2089, %v2041
        %v2106 = vmul.f32 %v2090, %v2042
        %v2107 = vmul.f32 %v2091, %v2043
        %v2108 = vmul.f32 %v2092, %v2044
        %v2109 = vmul.f32 %v2093, %v2045
        %v2110 = vmul.f32 %v2094, %v2046
        %v2111 = vmul.f32 %v2095, %v2047
        %v2112 = vmul.f32 %v2096, %v2048
        %v2113 = vmul.f32 %v2097, %v2049
        %v2114 = vmul.f32 %v2098, %v2050
        %v2115 = vmul.f32 %v2099, %v2051
        %v2116 = vmul.f32 %v2100, %v2052
        %v2117 = vmul.f32 %v2101, %v2053
        %v2118 = vmul.f32 %v2102, %v2054
        %v2119 = vsub.f32 %v1124, %v290
        %v2120 = vsub.f32 %v1124, %v291
        %v2121 = vsub.f32 %v1124, %v292
        %v2122 = vsub.f32 %v1124, %v293
        %v2123 = vsub.f32 %v1124, %v294
        %v2124 = vsub.f32 %v1124, %v295
        %v2125 = vsub.f32 %v1124, %v296
        %v2126 = vsub.f32 %v1124, %v297
        %v2127 = vsub.f32 %v1124, %v298
        %v2128 = vsub.f32 %v1124, %v299
        %v2129 = vsub.f32 %v1124, %v300
        %v2130 = vsub.f32 %v1124, %v301
        %v2131 = vsub.f32 %v1124, %v302
        %v2132 = vsub.f32 %v1124, %v303
        %v2133 = vsub.f32 %v1124, %v304
        %v2134 = vsub.f32 %v1124, %v305
        %v2135 = vld [vmem:[#allocation7 + $0x8] sm:$0x1]
        %v2136 = vlaneseq
        %v2137 = vshrl.u32 %v2136, 7
        %v2138 = vsub.s32 0, %v2137
        %v2139 = vrot.slane %v2135, %v2138
        %v2140 = vmul.f32 %v2139, %v1173
        %v2141 = vmul.f32 %v2139, %v1174
        %v2142 = vmul.f32 %v2139, %v1175
        %v2143 = vmul.f32 %v2139, %v1176
        %v2144 = vmul.f32 %v2139, %v1177
        %v2145 = vmul.f32 %v2139, %v1178
        %v2146 = vmul.f32 %v2139, %v1179
        %v2147 = vmul.f32 %v2139, %v1180
        %v2148 = vmul.f32 %v2139, %v1181
        %v2149 = vmul.f32 %v2139, %v1182
        %v2150 = vmul.f32 %v2139, %v1183
        %v2151 = vmul.f32 %v2139, %v1184
        %v2152 = vmul.f32 %v2139, %v1185
        %v2153 = vmul.f32 %v2139, %v1186
        %v2154 = vmul.f32 %v2139, %v1187
        %v2155 = vmul.f32 %v2139, %v1188
        %v2156 = vmul.f32 %v2119, %v2140
        %v2157 = vmul.f32 %v2120, %v2141
        %v2158 = vmul.f32 %v2121, %v2142
        %v2159 = vmul.f32 %v2122, %v2143
        %v2160 = vmul.f32 %v2123, %v2144
        %v2161 = vmul.f32 %v2124, %v2145
        %v2162 = vmul.f32 %v2125, %v2146
        %v2163 = vmul.f32 %v2126, %v2147
        %v2164 = vmul.f32 %v2127, %v2148
        %v2165 = vmul.f32 %v2128, %v2149
        %v2166 = vmul.f32 %v2129, %v2150
        %v2167 = vmul.f32 %v2130, %v2151
        %v2168 = vmul.f32 %v2131, %v2152
        %v2169 = vmul.f32 %v2132, %v2153
        %v2170 = vmul.f32 %v2133, %v2154
        %v2171 = vmul.f32 %v2134, %v2155
        %v2172 = vadd.f32 %v2103, %v2156
        %v2173 = vadd.f32 %v2104, %v2157
        %v2174 = vadd.f32 %v2105, %v2158
        %v2175 = vadd.f32 %v2106, %v2159
        %v2176 = vadd.f32 %v2107, %v2160
        %v2177 = vadd.f32 %v2108, %v2161
        %v2178 = vadd.f32 %v2109, %v2162
        %v2179 = vadd.f32 %v2110, %v2163
        %v2180 = vadd.f32 %v2111, %v2164
        %v2181 = vadd.f32 %v2112, %v2165
        %v2182 = vadd.f32 %v2113, %v2166
        %v2183 = vadd.f32 %v2114, %v2167
        %v2184 = vadd.f32 %v2115, %v2168
        %v2185 = vadd.f32 %v2116, %v2169
        %v2186 = vadd.f32 %v2117, %v2170
        %v2187 = vadd.f32 %v2118, %v2171
        %v2188 = vsub.f32 %v290, %v1039
        %v2189 = vsub.f32 %v291, %v1039
        %v2190 = vsub.f32 %v292, %v1039
        %v2191 = vsub.f32 %v293, %v1039
        %v2192 = vsub.f32 %v294, %v1039
        %v2193 = vsub.f32 %v295, %v1039
        %v2194 = vsub.f32 %v296, %v1039
        %v2195 = vsub.f32 %v297, %v1039
        %v2196 = vsub.f32 %v298, %v1039
        %v2197 = vsub.f32 %v299, %v1039
        %v2198 = vsub.f32 %v300, %v1039
        %v2199 = vsub.f32 %v301, %v1039
        %v2200 = vsub.f32 %v302, %v1039
        %v2201 = vsub.f32 %v303, %v1039
        %v2202 = vsub.f32 %v304, %v1039
        %v2203 = vsub.f32 %v305, %v1039
        %v2204 = vmul.f32 %v2188, %v2140
        %v2205 = vmul.f32 %v2189, %v2141
        %v2206 = vmul.f32 %v2190, %v2142
        %v2207 = vmul.f32 %v2191, %v2143
        %v2208 = vmul.f32 %v2192, %v2144
        %v2209 = vmul.f32 %v2193, %v2145
        %v2210 = vmul.f32 %v2194, %v2146
        %v2211 = vmul.f32 %v2195, %v2147
        %v2212 = vmul.f32 %v2196, %v2148
        %v2213 = vmul.f32 %v2197, %v2149
        %v2214 = vmul.f32 %v2198, %v2150
        %v2215 = vmul.f32 %v2199, %v2151
        %v2216 = vmul.f32 %v2200, %v2152
        %v2217 = vmul.f32 %v2201, %v2153
        %v2218 = vmul.f32 %v2202, %v2154
        %v2219 = vmul.f32 %v2203, %v2155
        %v2220 = vsub.f32 %v1209, %v290
        %v2221 = vsub.f32 %v1209, %v291
        %v2222 = vsub.f32 %v1209, %v292
        %v2223 = vsub.f32 %v1209, %v293
        %v2224 = vsub.f32 %v1209, %v294
        %v2225 = vsub.f32 %v1209, %v295
        %v2226 = vsub.f32 %v1209, %v296
        %v2227 = vsub.f32 %v1209, %v297
        %v2228 = vsub.f32 %v1209, %v298
        %v2229 = vsub.f32 %v1209, %v299
        %v2230 = vsub.f32 %v1209, %v300
        %v2231 = vsub.f32 %v1209, %v301
        %v2232 = vsub.f32 %v1209, %v302
        %v2233 = vsub.f32 %v1209, %v303
        %v2234 = vsub.f32 %v1209, %v304
        %v2235 = vsub.f32 %v1209, %v305
        %v2236 = vld [vmem:[#allocation7 + $0x9] sm:$0x1]
        %v2237 = vlaneseq
        %v2238 = vshrl.u32 %v2237, 7
        %v2239 = vsub.s32 0, %v2238
        %v2240 = vrot.slane %v2236, %v2239
        %v2241 = vmul.f32 %v2240, %v1258
        %v2242 = vmul.f32 %v2240, %v1259
        %v2243 = vmul.f32 %v2240, %v1260
        %v2244 = vmul.f32 %v2240, %v1261
        %v2245 = vmul.f32 %v2240, %v1262
        %v2246 = vmul.f32 %v2240, %v1263
        %v2247 = vmul.f32 %v2240, %v1264
        %v2248 = vmul.f32 %v2240, %v1265
        %v2249 = vmul.f32 %v2240, %v1266
        %v2250 = vmul.f32 %v2240, %v1267
        %v2251 = vmul.f32 %v2240, %v1268
        %v2252 = vmul.f32 %v2240, %v1269
        %v2253 = vmul.f32 %v2240, %v1270
        %v2254 = vmul.f32 %v2240, %v1271
        %v2255 = vmul.f32 %v2240, %v1272
        %v2256 = vmul.f32 %v2240, %v1273
        %v2257 = vmul.f32 %v2220, %v2241
        %v2258 = vmul.f32 %v2221, %v2242
        %v2259 = vmul.f32 %v2222, %v2243
        %v2260 = vmul.f32 %v2223, %v2244
        %v2261 = vmul.f32 %v2224, %v2245
        %v2262 = vmul.f32 %v2225, %v2246
        %v2263 = vmul.f32 %v2226, %v2247
        %v2264 = vmul.f32 %v2227, %v2248
        %v2265 = vmul.f32 %v2228, %v2249
        %v2266 = vmul.f32 %v2229, %v2250
        %v2267 = vmul.f32 %v2230, %v2251
        %v2268 = vmul.f32 %v2231, %v2252
        %v2269 = vmul.f32 %v2232, %v2253
        %v2270 = vmul.f32 %v2233, %v2254
        %v2271 = vmul.f32 %v2234, %v2255
        %v2272 = vmul.f32 %v2235, %v2256
        %v2273 = vadd.f32 %v2204, %v2257
        %v2274 = vadd.f32 %v2205, %v2258
        %v2275 = vadd.f32 %v2206, %v2259
        %v2276 = vadd.f32 %v2207, %v2260
        %v2277 = vadd.f32 %v2208, %v2261
        %v2278 = vadd.f32 %v2209, %v2262
        %v2279 = vadd.f32 %v2210, %v2263
        %v2280 = vadd.f32 %v2211, %v2264
        %v2281 = vadd.f32 %v2212, %v2265
        %v2282 = vadd.f32 %v2213, %v2266
        %v2283 = vadd.f32 %v2214, %v2267
        %v2284 = vadd.f32 %v2215, %v2268
        %v2285 = vadd.f32 %v2216, %v2269
        %v2286 = vadd.f32 %v2217, %v2270
        %v2287 = vadd.f32 %v2218, %v2271
        %v2288 = vadd.f32 %v2219, %v2272
        %v2289 = vsub.f32 %v290, %v1124
        %v2290 = vsub.f32 %v291, %v1124
        %v2291 = vsub.f32 %v292, %v1124
        %v2292 = vsub.f32 %v293, %v1124
        %v2293 = vsub.f32 %v294, %v1124
        %v2294 = vsub.f32 %v295, %v1124
        %v2295 = vsub.f32 %v296, %v1124
        %v2296 = vsub.f32 %v297, %v1124
        %v2297 = vsub.f32 %v298, %v1124
        %v2298 = vsub.f32 %v299, %v1124
        %v2299 = vsub.f32 %v300, %v1124
        %v2300 = vsub.f32 %v301, %v1124
        %v2301 = vsub.f32 %v302, %v1124
        %v2302 = vsub.f32 %v303, %v1124
        %v2303 = vsub.f32 %v304, %v1124
        %v2304 = vsub.f32 %v305, %v1124
        %v2305 = vmul.f32 %v2289, %v2241
        %v2306 = vmul.f32 %v2290, %v2242
        %v2307 = vmul.f32 %v2291, %v2243
        %v2308 = vmul.f32 %v2292, %v2244
        %v2309 = vmul.f32 %v2293, %v2245
        %v2310 = vmul.f32 %v2294, %v2246
        %v2311 = vmul.f32 %v2295, %v2247
        %v2312 = vmul.f32 %v2296, %v2248
        %v2313 = vmul.f32 %v2297, %v2249
        %v2314 = vmul.f32 %v2298, %v2250
        %v2315 = vmul.f32 %v2299, %v2251
        %v2316 = vmul.f32 %v2300, %v2252
        %v2317 = vmul.f32 %v2301, %v2253
        %v2318 = vmul.f32 %v2302, %v2254
        %v2319 = vmul.f32 %v2303, %v2255
        %v2320 = vmul.f32 %v2304, %v2256
        %v2321 = vsub.f32 %v1294, %v290
        %v2322 = vsub.f32 %v1294, %v291
        %v2323 = vsub.f32 %v1294, %v292
        %v2324 = vsub.f32 %v1294, %v293
        %v2325 = vsub.f32 %v1294, %v294
        %v2326 = vsub.f32 %v1294, %v295
        %v2327 = vsub.f32 %v1294, %v296
        %v2328 = vsub.f32 %v1294, %v297
        %v2329 = vsub.f32 %v1294, %v298
        %v2330 = vsub.f32 %v1294, %v299
        %v2331 = vsub.f32 %v1294, %v300
        %v2332 = vsub.f32 %v1294, %v301
        %v2333 = vsub.f32 %v1294, %v302
        %v2334 = vsub.f32 %v1294, %v303
        %v2335 = vsub.f32 %v1294, %v304
        %v2336 = vsub.f32 %v1294, %v305
        %v2337 = vld [vmem:[#allocation7 + $0xa] sm:$0x1]
        %v2338 = vlaneseq
        %v2339 = vshrl.u32 %v2338, 7
        %v2340 = vsub.s32 0, %v2339
        %v2341 = vrot.slane %v2337, %v2340
        %v2342 = vmul.f32 %v2341, %v1343
        %v2343 = vmul.f32 %v2341, %v1344
        %v2344 = vmul.f32 %v2341, %v1345
        %v2345 = vmul.f32 %v2341, %v1346
        %v2346 = vmul.f32 %v2341, %v1347
        %v2347 = vmul.f32 %v2341, %v1348
        %v2348 = vmul.f32 %v2341, %v1349
        %v2349 = vmul.f32 %v2341, %v1350
        %v2350 = vmul.f32 %v2341, %v1351
        %v2351 = vmul.f32 %v2341, %v1352
        %v2352 = vmul.f32 %v2341, %v1353
        %v2353 = vmul.f32 %v2341, %v1354
        %v2354 = vmul.f32 %v2341, %v1355
        %v2355 = vmul.f32 %v2341, %v1356
        %v2356 = vmul.f32 %v2341, %v1357
        %v2357 = vmul.f32 %v2341, %v1358
        %v2358 = vmul.f32 %v2321, %v2342
        %v2359 = vmul.f32 %v2322, %v2343
        %v2360 = vmul.f32 %v2323, %v2344
        %v2361 = vmul.f32 %v2324, %v2345
        %v2362 = vmul.f32 %v2325, %v2346
        %v2363 = vmul.f32 %v2326, %v2347
        %v2364 = vmul.f32 %v2327, %v2348
        %v2365 = vmul.f32 %v2328, %v2349
        %v2366 = vmul.f32 %v2329, %v2350
        %v2367 = vmul.f32 %v2330, %v2351
        %v2368 = vmul.f32 %v2331, %v2352
        %v2369 = vmul.f32 %v2332, %v2353
        %v2370 = vmul.f32 %v2333, %v2354
        %v2371 = vmul.f32 %v2334, %v2355
        %v2372 = vmul.f32 %v2335, %v2356
        %v2373 = vmul.f32 %v2336, %v2357
        %v2374 = vadd.f32 %v2305, %v2358
        %v2375 = vadd.f32 %v2306, %v2359
        %v2376 = vadd.f32 %v2307, %v2360
        %v2377 = vadd.f32 %v2308, %v2361
        %v2378 = vadd.f32 %v2309, %v2362
        %v2379 = vadd.f32 %v2310, %v2363
        %v2380 = vadd.f32 %v2311, %v2364
        %v2381 = vadd.f32 %v2312, %v2365
        %v2382 = vadd.f32 %v2313, %v2366
        %v2383 = vadd.f32 %v2314, %v2367
        %v2384 = vadd.f32 %v2315, %v2368
        %v2385 = vadd.f32 %v2316, %v2369
        %v2386 = vadd.f32 %v2317, %v2370
        %v2387 = vadd.f32 %v2318, %v2371
        %v2388 = vadd.f32 %v2319, %v2372
        %v2389 = vadd.f32 %v2320, %v2373
        %v2390 = vld [vmem:[#allocation7 + $0xc] sm:$0x1]
        %v2391 = vlaneseq
        %v2392 = vshrl.u32 %v2391, 7
        %v2393 = vsub.s32 0, %v2392
        %v2394 = vrot.slane %v2390, %v2393
        %v2395 = vmul.f32 %v2394, %v1465
        %v2396 = vmul.f32 %v2394, %v1466
        %v2397 = vmul.f32 %v2394, %v1467
        %v2398 = vmul.f32 %v2394, %v1468
        %v2399 = vmul.f32 %v2394, %v1469
        %v2400 = vmul.f32 %v2394, %v1470
        %v2401 = vmul.f32 %v2394, %v1471
        %v2402 = vmul.f32 %v2394, %v1472
        %v2403 = vmul.f32 %v2394, %v1473
        %v2404 = vmul.f32 %v2394, %v1474
        %v2405 = vmul.f32 %v2394, %v1475
        %v2406 = vmul.f32 %v2394, %v1476
        %v2407 = vmul.f32 %v2394, %v1477
        %v2408 = vmul.f32 %v2394, %v1478
        %v2409 = vmul.f32 %v2394, %v1479
        %v2410 = vmul.f32 %v2394, %v1480
        %v2411 = vmul.f32 %v1359, %v2395
        %v2412 = vmul.f32 %v1360, %v2396
        %v2413 = vmul.f32 %v1361, %v2397
        %v2414 = vmul.f32 %v1362, %v2398
        %v2415 = vmul.f32 %v1363, %v2399
        %v2416 = vmul.f32 %v1364, %v2400
        %v2417 = vmul.f32 %v1365, %v2401
        %v2418 = vmul.f32 %v1366, %v2402
        %v2419 = vmul.f32 %v1367, %v2403
        %v2420 = vmul.f32 %v1368, %v2404
        %v2421 = vmul.f32 %v1369, %v2405
        %v2422 = vmul.f32 %v1370, %v2406
        %v2423 = vmul.f32 %v1371, %v2407
        %v2424 = vmul.f32 %v1372, %v2408
        %v2425 = vmul.f32 %v1373, %v2409
        %v2426 = vmul.f32 %v1374, %v2410
        %v2427 = vld [vmem:[#allocation7 + $0xd] sm:$0x1]
        %v2428 = vlaneseq
        %v2429 = vshrl.u32 %v2428, 7
        %v2430 = vsub.s32 0, %v2429
        %v2431 = vrot.slane %v2427, %v2430
        %v2432 = vmul.f32 %v2431, %v1566
        %v2433 = vmul.f32 %v2431, %v1567
        %v2434 = vmul.f32 %v2431, %v1568
        %v2435 = vmul.f32 %v2431, %v1569
        %v2436 = vmul.f32 %v2431, %v1570
        %v2437 = vmul.f32 %v2431, %v1571
        %v2438 = vmul.f32 %v2431, %v1572
        %v2439 = vmul.f32 %v2431, %v1573
        %v2440 = vmul.f32 %v2431, %v1574
        %v2441 = vmul.f32 %v2431, %v1575
        %v2442 = vmul.f32 %v2431, %v1576
        %v2443 = vmul.f32 %v2431, %v1577
        %v2444 = vmul.f32 %v2431, %v1578
        %v2445 = vmul.f32 %v2431, %v1579
        %v2446 = vmul.f32 %v2431, %v1580
        %v2447 = vmul.f32 %v2431, %v1581
        %v2448 = vmul.f32 %v1513, %v2432
        %v2449 = vmul.f32 %v1514, %v2433
        %v2450 = vmul.f32 %v1515, %v2434
        %v2451 = vmul.f32 %v1516, %v2435
        %v2452 = vmul.f32 %v1517, %v2436
        %v2453 = vmul.f32 %v1518, %v2437
        %v2454 = vmul.f32 %v1519, %v2438
        %v2455 = vmul.f32 %v1520, %v2439
        %v2456 = vmul.f32 %v1521, %v2440
        %v2457 = vmul.f32 %v1522, %v2441
        %v2458 = vmul.f32 %v1523, %v2442
        %v2459 = vmul.f32 %v1524, %v2443
        %v2460 = vmul.f32 %v1525, %v2444
        %v2461 = vmul.f32 %v1526, %v2445
        %v2462 = vmul.f32 %v1527, %v2446
        %v2463 = vmul.f32 %v1528, %v2447
        %v2464 = vadd.f32 %v2411, %v2448
        %v2465 = vadd.f32 %v2412, %v2449
        %v2466 = vadd.f32 %v2413, %v2450
        %v2467 = vadd.f32 %v2414, %v2451
        %v2468 = vadd.f32 %v2415, %v2452
        %v2469 = vadd.f32 %v2416, %v2453
        %v2470 = vadd.f32 %v2417, %v2454
        %v2471 = vadd.f32 %v2418, %v2455
        %v2472 = vadd.f32 %v2419, %v2456
        %v2473 = vadd.f32 %v2420, %v2457
        %v2474 = vadd.f32 %v2421, %v2458
        %v2475 = vadd.f32 %v2422, %v2459
        %v2476 = vadd.f32 %v2423, %v2460
        %v2477 = vadd.f32 %v2424, %v2461
        %v2478 = vadd.f32 %v2425, %v2462
        %v2479 = vadd.f32 %v2426, %v2463
        %v2480 = vmul.f32 %v1481, %v2432
        %v2481 = vmul.f32 %v1482, %v2433
        %v2482 = vmul.f32 %v1483, %v2434
        %v2483 = vmul.f32 %v1484, %v2435
        %v2484 = vmul.f32 %v1485, %v2436
        %v2485 = vmul.f32 %v1486, %v2437
        %v2486 = vmul.f32 %v1487, %v2438
        %v2487 = vmul.f32 %v1488, %v2439
        %v2488 = vmul.f32 %v1489, %v2440
        %v2489 = vmul.f32 %v1490, %v2441
        %v2490 = vmul.f32 %v1491, %v2442
        %v2491 = vmul.f32 %v1492, %v2443
        %v2492 = vmul.f32 %v1493, %v2444
        %v2493 = vmul.f32 %v1494, %v2445
        %v2494 = vmul.f32 %v1495, %v2446
        %v2495 = vmul.f32 %v1496, %v2447
        %v2496 = vld [vmem:[#allocation7 + $0xe] sm:$0x1]
        %v2497 = vlaneseq
        %v2498 = vshrl.u32 %v2497, 7
        %v2499 = vsub.s32 0, %v2498
        %v2500 = vrot.slane %v2496, %v2499
        %v2501 = vmul.f32 %v2500, %v1667
        %v2502 = vmul.f32 %v2500, %v1668
        %v2503 = vmul.f32 %v2500, %v1669
        %v2504 = vmul.f32 %v2500, %v1670
        %v2505 = vmul.f32 %v2500, %v1671
        %v2506 = vmul.f32 %v2500, %v1672
        %v2507 = vmul.f32 %v2500, %v1673
        %v2508 = vmul.f32 %v2500, %v1674
        %v2509 = vmul.f32 %v2500, %v1675
        %v2510 = vmul.f32 %v2500, %v1676
        %v2511 = vmul.f32 %v2500, %v1677
        %v2512 = vmul.f32 %v2500, %v1678
        %v2513 = vmul.f32 %v2500, %v1679
        %v2514 = vmul.f32 %v2500, %v1680
        %v2515 = vmul.f32 %v2500, %v1681
        %v2516 = vmul.f32 %v2500, %v1682
        %v2517 = vmul.f32 %v1614, %v2501
        %v2518 = vmul.f32 %v1615, %v2502
        %v2519 = vmul.f32 %v1616, %v2503
        %v2520 = vmul.f32 %v1617, %v2504
        %v2521 = vmul.f32 %v1618, %v2505
        %v2522 = vmul.f32 %v1619, %v2506
        %v2523 = vmul.f32 %v1620, %v2507
        %v2524 = vmul.f32 %v1621, %v2508
        %v2525 = vmul.f32 %v1622, %v2509
        %v2526 = vmul.f32 %v1623, %v2510
        %v2527 = vmul.f32 %v1624, %v2511
        %v2528 = vmul.f32 %v1625, %v2512
        %v2529 = vmul.f32 %v1626, %v2513
        %v2530 = vmul.f32 %v1627, %v2514
        %v2531 = vmul.f32 %v1628, %v2515
        %v2532 = vmul.f32 %v1629, %v2516
        %v2533 = vadd.f32 %v2480, %v2517
        %v2534 = vadd.f32 %v2481, %v2518
        %v2535 = vadd.f32 %v2482, %v2519
        %v2536 = vadd.f32 %v2483, %v2520
        %v2537 = vadd.f32 %v2484, %v2521
        %v2538 = vadd.f32 %v2485, %v2522
        %v2539 = vadd.f32 %v2486, %v2523
        %v2540 = vadd.f32 %v2487, %v2524
        %v2541 = vadd.f32 %v2488, %v2525
        %v2542 = vadd.f32 %v2489, %v2526
        %v2543 = vadd.f32 %v2490, %v2527
        %v2544 = vadd.f32 %v2491, %v2528
        %v2545 = vadd.f32 %v2492, %v2529
        %v2546 = vadd.f32 %v2493, %v2530
        %v2547 = vadd.f32 %v2494, %v2531
        %v2548 = vadd.f32 %v2495, %v2532
        %v2549 = vmul.f32 %v1582, %v2501
        %v2550 = vmul.f32 %v1583, %v2502
        %v2551 = vmul.f32 %v1584, %v2503
        %v2552 = vmul.f32 %v1585, %v2504
        %v2553 = vmul.f32 %v1586, %v2505
        %v2554 = vmul.f32 %v1587, %v2506
        %v2555 = vmul.f32 %v1588, %v2507
        %v2556 = vmul.f32 %v1589, %v2508
        %v2557 = vmul.f32 %v1590, %v2509
        %v2558 = vmul.f32 %v1591, %v2510
        %v2559 = vmul.f32 %v1592, %v2511
        %v2560 = vmul.f32 %v1593, %v2512
        %v2561 = vmul.f32 %v1594, %v2513
        %v2562 = vmul.f32 %v1595, %v2514
        %v2563 = vmul.f32 %v1596, %v2515
        %v2564 = vmul.f32 %v1597, %v2516
        %v2565 = vld [vmem:[#allocation7 + $0xf] sm:$0x1]
        %v2566 = vlaneseq
        %v2567 = vshrl.u32 %v2566, 7
        %v2568 = vsub.s32 0, %v2567
        %v2569 = vrot.slane %v2565, %v2568
        %v2570 = vmul.f32 %v2569, %v1768
        %v2571 = vmul.f32 %v2569, %v1769
        %v2572 = vmul.f32 %v2569, %v1770
        %v2573 = vmul.f32 %v2569, %v1771
        %v2574 = vmul.f32 %v2569, %v1772
        %v2575 = vmul.f32 %v2569, %v1773
        %v2576 = vmul.f32 %v2569, %v1774
        %v2577 = vmul.f32 %v2569, %v1775
        %v2578 = vmul.f32 %v2569, %v1776
        %v2579 = vmul.f32 %v2569, %v1777
        %v2580 = vmul.f32 %v2569, %v1778
        %v2581 = vmul.f32 %v2569, %v1779
        %v2582 = vmul.f32 %v2569, %v1780
        %v2583 = vmul.f32 %v2569, %v1781
        %v2584 = vmul.f32 %v2569, %v1782
        %v2585 = vmul.f32 %v2569, %v1783
        %v2586 = vmul.f32 %v1715, %v2570
        %v2587 = vmul.f32 %v1716, %v2571
        %v2588 = vmul.f32 %v1717, %v2572
        %v2589 = vmul.f32 %v1718, %v2573
        %v2590 = vmul.f32 %v1719, %v2574
        %v2591 = vmul.f32 %v1720, %v2575
        %v2592 = vmul.f32 %v1721, %v2576
        %v2593 = vmul.f32 %v1722, %v2577
        %v2594 = vmul.f32 %v1723, %v2578
        %v2595 = vmul.f32 %v1724, %v2579
        %v2596 = vmul.f32 %v1725, %v2580
        %v2597 = vmul.f32 %v1726, %v2581
        %v2598 = vmul.f32 %v1727, %v2582
        %v2599 = vmul.f32 %v1728, %v2583
        %v2600 = vmul.f32 %v1729, %v2584
        %v2601 = vmul.f32 %v1730, %v2585
        %v2602 = vadd.f32 %v2549, %v2586
        %v2603 = vadd.f32 %v2550, %v2587
        %v2604 = vadd.f32 %v2551, %v2588
        %v2605 = vadd.f32 %v2552, %v2589
        %v2606 = vadd.f32 %v2553, %v2590
        %v2607 = vadd.f32 %v2554, %v2591
        %v2608 = vadd.f32 %v2555, %v2592
        %v2609 = vadd.f32 %v2556, %v2593
        %v2610 = vadd.f32 %v2557, %v2594
        %v2611 = vadd.f32 %v2558, %v2595
        %v2612 = vadd.f32 %v2559, %v2596
        %v2613 = vadd.f32 %v2560, %v2597
        %v2614 = vadd.f32 %v2561, %v2598
        %v2615 = vadd.f32 %v2562, %v2599
        %v2616 = vadd.f32 %v2563, %v2600
        %v2617 = vadd.f32 %v2564, %v2601
        %v2618 = vmul.f32 %v1683, %v2570
        %v2619 = vmul.f32 %v1684, %v2571
        %v2620 = vmul.f32 %v1685, %v2572
        %v2621 = vmul.f32 %v1686, %v2573
        %v2622 = vmul.f32 %v1687, %v2574
        %v2623 = vmul.f32 %v1688, %v2575
        %v2624 = vmul.f32 %v1689, %v2576
        %v2625 = vmul.f32 %v1690, %v2577
        %v2626 = vmul.f32 %v1691, %v2578
        %v2627 = vmul.f32 %v1692, %v2579
        %v2628 = vmul.f32 %v1693, %v2580
        %v2629 = vmul.f32 %v1694, %v2581
        %v2630 = vmul.f32 %v1695, %v2582
        %v2631 = vmul.f32 %v1696, %v2583
        %v2632 = vmul.f32 %v1697, %v2584
        %v2633 = vmul.f32 %v1698, %v2585
        %v2634 = vld [vmem:[#allocation7 + $0x10] sm:$0x1]
        %v2635 = vlaneseq
        %v2636 = vshrl.u32 %v2635, 7
        %v2637 = vsub.s32 0, %v2636
        %v2638 = vrot.slane %v2634, %v2637
        %v2639 = vmul.f32 %v2638, %v1869
        %v2640 = vmul.f32 %v2638, %v1870
        %v2641 = vmul.f32 %v2638, %v1871
        %v2642 = vmul.f32 %v2638, %v1872
        %v2643 = vmul.f32 %v2638, %v1873
        %v2644 = vmul.f32 %v2638, %v1874
        %v2645 = vmul.f32 %v2638, %v1875
        %v2646 = vmul.f32 %v2638, %v1876
        %v2647 = vmul.f32 %v2638, %v1877
        %v2648 = vmul.f32 %v2638, %v1878
        %v2649 = vmul.f32 %v2638, %v1879
        %v2650 = vmul.f32 %v2638, %v1880
        %v2651 = vmul.f32 %v2638, %v1881
        %v2652 = vmul.f32 %v2638, %v1882
        %v2653 = vmul.f32 %v2638, %v1883
        %v2654 = vmul.f32 %v2638, %v1884
        %v2655 = vmul.f32 %v1816, %v2639
        %v2656 = vmul.f32 %v1817, %v2640
        %v2657 = vmul.f32 %v1818, %v2641
        %v2658 = vmul.f32 %v1819, %v2642
        %v2659 = vmul.f32 %v1820, %v2643
        %v2660 = vmul.f32 %v1821, %v2644
        %v2661 = vmul.f32 %v1822, %v2645
        %v2662 = vmul.f32 %v1823, %v2646
        %v2663 = vmul.f32 %v1824, %v2647
        %v2664 = vmul.f32 %v1825, %v2648
        %v2665 = vmul.f32 %v1826, %v2649
        %v2666 = vmul.f32 %v1827, %v2650
        %v2667 = vmul.f32 %v1828, %v2651
        %v2668 = vmul.f32 %v1829, %v2652
        %v2669 = vmul.f32 %v1830, %v2653
        %v2670 = vmul.f32 %v1831, %v2654
        %v2671 = vadd.f32 %v2618, %v2655
        %v2672 = vadd.f32 %v2619, %v2656
        %v2673 = vadd.f32 %v2620, %v2657
        %v2674 = vadd.f32 %v2621, %v2658
        %v2675 = vadd.f32 %v2622, %v2659
        %v2676 = vadd.f32 %v2623, %v2660
        %v2677 = vadd.f32 %v2624, %v2661
        %v2678 = vadd.f32 %v2625, %v2662
        %v2679 = vadd.f32 %v2626, %v2663
        %v2680 = vadd.f32 %v2627, %v2664
        %v2681 = vadd.f32 %v2628, %v2665
        %v2682 = vadd.f32 %v2629, %v2666
        %v2683 = vadd.f32 %v2630, %v2667
        %v2684 = vadd.f32 %v2631, %v2668
        %v2685 = vadd.f32 %v2632, %v2669
        %v2686 = vadd.f32 %v2633, %v2670
        %v2687 = vmul.f32 %v1784, %v2639
        %v2688 = vmul.f32 %v1785, %v2640
        %v2689 = vmul.f32 %v1786, %v2641
        %v2690 = vmul.f32 %v1787, %v2642
        %v2691 = vmul.f32 %v1788, %v2643
        %v2692 = vmul.f32 %v1789, %v2644
        %v2693 = vmul.f32 %v1790, %v2645
        %v2694 = vmul.f32 %v1791, %v2646
        %v2695 = vmul.f32 %v1792, %v2647
        %v2696 = vmul.f32 %v1793, %v2648
        %v2697 = vmul.f32 %v1794, %v2649
        %v2698 = vmul.f32 %v1795, %v2650
        %v2699 = vmul.f32 %v1796, %v2651
        %v2700 = vmul.f32 %v1797, %v2652
        %v2701 = vmul.f32 %v1798, %v2653
        %v2702 = vmul.f32 %v1799, %v2654
        %v2703 = vld [vmem:[#allocation7 + $0x11] sm:$0x1]
        %v2704 = vlaneseq
        %v2705 = vshrl.u32 %v2704, 7
        %v2706 = vsub.s32 0, %v2705
        %v2707 = vrot.slane %v2703, %v2706
        %v2708 = vmul.f32 %v2707, %v1970
        %v2709 = vmul.f32 %v2707, %v1971
        %v2710 = vmul.f32 %v2707, %v1972
        %v2711 = vmul.f32 %v2707, %v1973
        %v2712 = vmul.f32 %v2707, %v1974
        %v2713 = vmul.f32 %v2707, %v1975
        %v2714 = vmul.f32 %v2707, %v1976
        %v2715 = vmul.f32 %v2707, %v1977
        %v2716 = vmul.f32 %v2707, %v1978
        %v2717 = vmul.f32 %v2707, %v1979
        %v2718 = vmul.f32 %v2707, %v1980
        %v2719 = vmul.f32 %v2707, %v1981
        %v2720 = vmul.f32 %v2707, %v1982
        %v2721 = vmul.f32 %v2707, %v1983
        %v2722 = vmul.f32 %v2707, %v1984
        %v2723 = vmul.f32 %v2707, %v1985
        %v2724 = vmul.f32 %v1917, %v2708
        %v2725 = vmul.f32 %v1918, %v2709
        %v2726 = vmul.f32 %v1919, %v2710
        %v2727 = vmul.f32 %v1920, %v2711
        %v2728 = vmul.f32 %v1921, %v2712
        %v2729 = vmul.f32 %v1922, %v2713
        %v2730 = vmul.f32 %v1923, %v2714
        %v2731 = vmul.f32 %v1924, %v2715
        %v2732 = vmul.f32 %v1925, %v2716
        %v2733 = vmul.f32 %v1926, %v2717
        %v2734 = vmul.f32 %v1927, %v2718
        %v2735 = vmul.f32 %v1928, %v2719
        %v2736 = vmul.f32 %v1929, %v2720
        %v2737 = vmul.f32 %v1930, %v2721
        %v2738 = vmul.f32 %v1931, %v2722
        %v2739 = vmul.f32 %v1932, %v2723
        %v2740 = vadd.f32 %v2687, %v2724
        %v2741 = vadd.f32 %v2688, %v2725
        %v2742 = vadd.f32 %v2689, %v2726
        %v2743 = vadd.f32 %v2690, %v2727
        %v2744 = vadd.f32 %v2691, %v2728
        %v2745 = vadd.f32 %v2692, %v2729
        %v2746 = vadd.f32 %v2693, %v2730
        %v2747 = vadd.f32 %v2694, %v2731
        %v2748 = vadd.f32 %v2695, %v2732
        %v2749 = vadd.f32 %v2696, %v2733
        %v2750 = vadd.f32 %v2697, %v2734
        %v2751 = vadd.f32 %v2698, %v2735
        %v2752 = vadd.f32 %v2699, %v2736
        %v2753 = vadd.f32 %v2700, %v2737
        %v2754 = vadd.f32 %v2701, %v2738
        %v2755 = vadd.f32 %v2702, %v2739
        %v2756 = vmul.f32 %v1885, %v2708
        %v2757 = vmul.f32 %v1886, %v2709
        %v2758 = vmul.f32 %v1887, %v2710
        %v2759 = vmul.f32 %v1888, %v2711
        %v2760 = vmul.f32 %v1889, %v2712
        %v2761 = vmul.f32 %v1890, %v2713
        %v2762 = vmul.f32 %v1891, %v2714
        %v2763 = vmul.f32 %v1892, %v2715
        %v2764 = vmul.f32 %v1893, %v2716
        %v2765 = vmul.f32 %v1894, %v2717
        %v2766 = vmul.f32 %v1895, %v2718
        %v2767 = vmul.f32 %v1896, %v2719
        %v2768 = vmul.f32 %v1897, %v2720
        %v2769 = vmul.f32 %v1898, %v2721
        %v2770 = vmul.f32 %v1899, %v2722
        %v2771 = vmul.f32 %v1900, %v2723
        %v2772 = vld [vmem:[#allocation7 + $0x12] sm:$0x1]
        %v2773 = vlaneseq
        %v2774 = vshrl.u32 %v2773, 7
        %v2775 = vsub.s32 0, %v2774
        %v2776 = vrot.slane %v2772, %v2775
        %v2777 = vmul.f32 %v2776, %v2071
        %v2778 = vmul.f32 %v2776, %v2072
        %v2779 = vmul.f32 %v2776, %v2073
        %v2780 = vmul.f32 %v2776, %v2074
        %v2781 = vmul.f32 %v2776, %v2075
        %v2782 = vmul.f32 %v2776, %v2076
        %v2783 = vmul.f32 %v2776, %v2077
        %v2784 = vmul.f32 %v2776, %v2078
        %v2785 = vmul.f32 %v2776, %v2079
        %v2786 = vmul.f32 %v2776, %v2080
        %v2787 = vmul.f32 %v2776, %v2081
        %v2788 = vmul.f32 %v2776, %v2082
        %v2789 = vmul.f32 %v2776, %v2083
        %v2790 = vmul.f32 %v2776, %v2084
        %v2791 = vmul.f32 %v2776, %v2085
        %v2792 = vmul.f32 %v2776, %v2086
        %v2793 = vmul.f32 %v2018, %v2777
        %v2794 = vmul.f32 %v2019, %v2778
        %v2795 = vmul.f32 %v2020, %v2779
        %v2796 = vmul.f32 %v2021, %v2780
        %v2797 = vmul.f32 %v2022, %v2781
        %v2798 = vmul.f32 %v2023, %v2782
        %v2799 = vmul.f32 %v2024, %v2783
        %v2800 = vmul.f32 %v2025, %v2784
        %v2801 = vmul.f32 %v2026, %v2785
        %v2802 = vmul.f32 %v2027, %v2786
        %v2803 = vmul.f32 %v2028, %v2787
        %v2804 = vmul.f32 %v2029, %v2788
        %v2805 = vmul.f32 %v2030, %v2789
        %v2806 = vmul.f32 %v2031, %v2790
        %v2807 = vmul.f32 %v2032, %v2791
        %v2808 = vmul.f32 %v2033, %v2792
        %v2809 = vadd.f32 %v2756, %v2793
        %v2810 = vadd.f32 %v2757, %v2794
        %v2811 = vadd.f32 %v2758, %v2795
        %v2812 = vadd.f32 %v2759, %v2796
        %v2813 = vadd.f32 %v2760, %v2797
        %v2814 = vadd.f32 %v2761, %v2798
        %v2815 = vadd.f32 %v2762, %v2799
        %v2816 = vadd.f32 %v2763, %v2800
        %v2817 = vadd.f32 %v2764, %v2801
        %v2818 = vadd.f32 %v2765, %v2802
        %v2819 = vadd.f32 %v2766, %v2803
        %v2820 = vadd.f32 %v2767, %v2804
        %v2821 = vadd.f32 %v2768, %v2805
        %v2822 = vadd.f32 %v2769, %v2806
        %v2823 = vadd.f32 %v2770, %v2807
        %v2824 = vadd.f32 %v2771, %v2808
        %v2825 = vmul.f32 %v1986, %v2777
        %v2826 = vmul.f32 %v1987, %v2778
        %v2827 = vmul.f32 %v1988, %v2779
        %v2828 = vmul.f32 %v1989, %v2780
        %v2829 = vmul.f32 %v1990, %v2781
        %v2830 = vmul.f32 %v1991, %v2782
        %v2831 = vmul.f32 %v1992, %v2783
        %v2832 = vmul.f32 %v1993, %v2784
        %v2833 = vmul.f32 %v1994, %v2785
        %v2834 = vmul.f32 %v1995, %v2786
        %v2835 = vmul.f32 %v1996, %v2787
        %v2836 = vmul.f32 %v1997, %v2788
        %v2837 = vmul.f32 %v1998, %v2789
        %v2838 = vmul.f32 %v1999, %v2790
        %v2839 = vmul.f32 %v2000, %v2791
        %v2840 = vmul.f32 %v2001, %v2792
        %v2841 = vld [vmem:[#allocation7 + $0x13] sm:$0x1]
        %v2842 = vlaneseq
        %v2843 = vshrl.u32 %v2842, 7
        %v2844 = vsub.s32 0, %v2843
        %v2845 = vrot.slane %v2841, %v2844
        %v2846 = vmul.f32 %v2845, %v2172
        %v2847 = vmul.f32 %v2845, %v2173
        %v2848 = vmul.f32 %v2845, %v2174
        %v2849 = vmul.f32 %v2845, %v2175
        %v2850 = vmul.f32 %v2845, %v2176
        %v2851 = vmul.f32 %v2845, %v2177
        %v2852 = vmul.f32 %v2845, %v2178
        %v2853 = vmul.f32 %v2845, %v2179
        %v2854 = vmul.f32 %v2845, %v2180
        %v2855 = vmul.f32 %v2845, %v2181
        %v2856 = vmul.f32 %v2845, %v2182
        %v2857 = vmul.f32 %v2845, %v2183
        %v2858 = vmul.f32 %v2845, %v2184
        %v2859 = vmul.f32 %v2845, %v2185
        %v2860 = vmul.f32 %v2845, %v2186
        %v2861 = vmul.f32 %v2845, %v2187
        %v2862 = vmul.f32 %v2119, %v2846
        %v2863 = vmul.f32 %v2120, %v2847
        %v2864 = vmul.f32 %v2121, %v2848
        %v2865 = vmul.f32 %v2122, %v2849
        %v2866 = vmul.f32 %v2123, %v2850
        %v2867 = vmul.f32 %v2124, %v2851
        %v2868 = vmul.f32 %v2125, %v2852
        %v2869 = vmul.f32 %v2126, %v2853
        %v2870 = vmul.f32 %v2127, %v2854
        %v2871 = vmul.f32 %v2128, %v2855
        %v2872 = vmul.f32 %v2129, %v2856
        %v2873 = vmul.f32 %v2130, %v2857
        %v2874 = vmul.f32 %v2131, %v2858
        %v2875 = vmul.f32 %v2132, %v2859
        %v2876 = vmul.f32 %v2133, %v2860
        %v2877 = vmul.f32 %v2134, %v2861
        %v2878 = vadd.f32 %v2825, %v2862
        %v2879 = vadd.f32 %v2826, %v2863
        %v2880 = vadd.f32 %v2827, %v2864
        %v2881 = vadd.f32 %v2828, %v2865
        %v2882 = vadd.f32 %v2829, %v2866
        %v2883 = vadd.f32 %v2830, %v2867
        %v2884 = vadd.f32 %v2831, %v2868
        %v2885 = vadd.f32 %v2832, %v2869
        %v2886 = vadd.f32 %v2833, %v2870
        %v2887 = vadd.f32 %v2834, %v2871
        %v2888 = vadd.f32 %v2835, %v2872
        %v2889 = vadd.f32 %v2836, %v2873
        %v2890 = vadd.f32 %v2837, %v2874
        %v2891 = vadd.f32 %v2838, %v2875
        %v2892 = vadd.f32 %v2839, %v2876
        %v2893 = vadd.f32 %v2840, %v2877
        %v2894 = vmul.f32 %v2087, %v2846
        %v2895 = vmul.f32 %v2088, %v2847
        %v2896 = vmul.f32 %v2089, %v2848
        %v2897 = vmul.f32 %v2090, %v2849
        %v2898 = vmul.f32 %v2091, %v2850
        %v2899 = vmul.f32 %v2092, %v2851
        %v2900 = vmul.f32 %v2093, %v2852
        %v2901 = vmul.f32 %v2094, %v2853
        %v2902 = vmul.f32 %v2095, %v2854
        %v2903 = vmul.f32 %v2096, %v2855
        %v2904 = vmul.f32 %v2097, %v2856
        %v2905 = vmul.f32 %v2098, %v2857
        %v2906 = vmul.f32 %v2099, %v2858
        %v2907 = vmul.f32 %v2100, %v2859
        %v2908 = vmul.f32 %v2101, %v2860
        %v2909 = vmul.f32 %v2102, %v2861
        %v2910 = vld [vmem:[#allocation7 + $0x14] sm:$0x1]
        %v2911 = vlaneseq
        %v2912 = vshrl.u32 %v2911, 7
        %v2913 = vsub.s32 0, %v2912
        %v2914 = vrot.slane %v2910, %v2913
        %v2915 = vmul.f32 %v2914, %v2273
        %v2916 = vmul.f32 %v2914, %v2274
        %v2917 = vmul.f32 %v2914, %v2275
        %v2918 = vmul.f32 %v2914, %v2276
        %v2919 = vmul.f32 %v2914, %v2277
        %v2920 = vmul.f32 %v2914, %v2278
        %v2921 = vmul.f32 %v2914, %v2279
        %v2922 = vmul.f32 %v2914, %v2280
        %v2923 = vmul.f32 %v2914, %v2281
        %v2924 = vmul.f32 %v2914, %v2282
        %v2925 = vmul.f32 %v2914, %v2283
        %v2926 = vmul.f32 %v2914, %v2284
        %v2927 = vmul.f32 %v2914, %v2285
        %v2928 = vmul.f32 %v2914, %v2286
        %v2929 = vmul.f32 %v2914, %v2287
        %v2930 = vmul.f32 %v2914, %v2288
        %v2931 = vmul.f32 %v2220, %v2915
        %v2932 = vmul.f32 %v2221, %v2916
        %v2933 = vmul.f32 %v2222, %v2917
        %v2934 = vmul.f32 %v2223, %v2918
        %v2935 = vmul.f32 %v2224, %v2919
        %v2936 = vmul.f32 %v2225, %v2920
        %v2937 = vmul.f32 %v2226, %v2921
        %v2938 = vmul.f32 %v2227, %v2922
        %v2939 = vmul.f32 %v2228, %v2923
        %v2940 = vmul.f32 %v2229, %v2924
        %v2941 = vmul.f32 %v2230, %v2925
        %v2942 = vmul.f32 %v2231, %v2926
        %v2943 = vmul.f32 %v2232, %v2927
        %v2944 = vmul.f32 %v2233, %v2928
        %v2945 = vmul.f32 %v2234, %v2929
        %v2946 = vmul.f32 %v2235, %v2930
        %v2947 = vadd.f32 %v2894, %v2931
        %v2948 = vadd.f32 %v2895, %v2932
        %v2949 = vadd.f32 %v2896, %v2933
        %v2950 = vadd.f32 %v2897, %v2934
        %v2951 = vadd.f32 %v2898, %v2935
        %v2952 = vadd.f32 %v2899, %v2936
        %v2953 = vadd.f32 %v2900, %v2937
        %v2954 = vadd.f32 %v2901, %v2938
        %v2955 = vadd.f32 %v2902, %v2939
        %v2956 = vadd.f32 %v2903, %v2940
        %v2957 = vadd.f32 %v2904, %v2941
        %v2958 = vadd.f32 %v2905, %v2942
        %v2959 = vadd.f32 %v2906, %v2943
        %v2960 = vadd.f32 %v2907, %v2944
        %v2961 = vadd.f32 %v2908, %v2945
        %v2962 = vadd.f32 %v2909, %v2946
        %v2963 = vmul.f32 %v2188, %v2915
        %v2964 = vmul.f32 %v2189, %v2916
        %v2965 = vmul.f32 %v2190, %v2917
        %v2966 = vmul.f32 %v2191, %v2918
        %v2967 = vmul.f32 %v2192, %v2919
        %v2968 = vmul.f32 %v2193, %v2920
        %v2969 = vmul.f32 %v2194, %v2921
        %v2970 = vmul.f32 %v2195, %v2922
        %v2971 = vmul.f32 %v2196, %v2923
        %v2972 = vmul.f32 %v2197, %v2924
        %v2973 = vmul.f32 %v2198, %v2925
        %v2974 = vmul.f32 %v2199, %v2926
        %v2975 = vmul.f32 %v2200, %v2927
        %v2976 = vmul.f32 %v2201, %v2928
        %v2977 = vmul.f32 %v2202, %v2929
        %v2978 = vmul.f32 %v2203, %v2930
        %v2979 = vld [vmem:[#allocation7 + $0x15] sm:$0x1]
        %v2980 = vlaneseq
        %v2981 = vshrl.u32 %v2980, 7
        %v2982 = vsub.s32 0, %v2981
        %v2983 = vrot.slane %v2979, %v2982
        %v2984 = vmul.f32 %v2983, %v2374
        %v2985 = vmul.f32 %v2983, %v2375
        %v2986 = vmul.f32 %v2983, %v2376
        %v2987 = vmul.f32 %v2983, %v2377
        %v2988 = vmul.f32 %v2983, %v2378
        %v2989 = vmul.f32 %v2983, %v2379
        %v2990 = vmul.f32 %v2983, %v2380
        %v2991 = vmul.f32 %v2983, %v2381
        %v2992 = vmul.f32 %v2983, %v2382
        %v2993 = vmul.f32 %v2983, %v2383
        %v2994 = vmul.f32 %v2983, %v2384
        %v2995 = vmul.f32 %v2983, %v2385
        %v2996 = vmul.f32 %v2983, %v2386
        %v2997 = vmul.f32 %v2983, %v2387
        %v2998 = vmul.f32 %v2983, %v2388
        %v2999 = vmul.f32 %v2983, %v2389
        %v3000 = vmul.f32 %v2321, %v2984
        %v3001 = vmul.f32 %v2322, %v2985
        %v3002 = vmul.f32 %v2323, %v2986
        %v3003 = vmul.f32 %v2324, %v2987
        %v3004 = vmul.f32 %v2325, %v2988
        %v3005 = vmul.f32 %v2326, %v2989
        %v3006 = vmul.f32 %v2327, %v2990
        %v3007 = vmul.f32 %v2328, %v2991
        %v3008 = vmul.f32 %v2329, %v2992
        %v3009 = vmul.f32 %v2330, %v2993
        %v3010 = vmul.f32 %v2331, %v2994
        %v3011 = vmul.f32 %v2332, %v2995
        %v3012 = vmul.f32 %v2333, %v2996
        %v3013 = vmul.f32 %v2334, %v2997
        %v3014 = vmul.f32 %v2335, %v2998
        %v3015 = vmul.f32 %v2336, %v2999
        %v3016 = vadd.f32 %v2963, %v3000
        %v3017 = vadd.f32 %v2964, %v3001
        %v3018 = vadd.f32 %v2965, %v3002
        %v3019 = vadd.f32 %v2966, %v3003
        %v3020 = vadd.f32 %v2967, %v3004
        %v3021 = vadd.f32 %v2968, %v3005
        %v3022 = vadd.f32 %v2969, %v3006
        %v3023 = vadd.f32 %v2970, %v3007
        %v3024 = vadd.f32 %v2971, %v3008
        %v3025 = vadd.f32 %v2972, %v3009
        %v3026 = vadd.f32 %v2973, %v3010
        %v3027 = vadd.f32 %v2974, %v3011
        %v3028 = vadd.f32 %v2975, %v3012
        %v3029 = vadd.f32 %v2976, %v3013
        %v3030 = vadd.f32 %v2977, %v3014
        %v3031 = vadd.f32 %v2978, %v3015
        %v3032 = vld [vmem:[#allocation7 + $0x18] sm:$0x1]
        %v3033 = vlaneseq
        %v3034 = vshrl.u32 %v3033, 7
        %v3035 = vsub.s32 0, %v3034
        %v3036 = vrot.slane %v3032, %v3035
        %v3037 = vmul.f32 %v3036, %v2464
        %v3038 = vmul.f32 %v3036, %v2465
        %v3039 = vmul.f32 %v3036, %v2466
        %v3040 = vmul.f32 %v3036, %v2467
        %v3041 = vmul.f32 %v3036, %v2468
        %v3042 = vmul.f32 %v3036, %v2469
        %v3043 = vmul.f32 %v3036, %v2470
        %v3044 = vmul.f32 %v3036, %v2471
        %v3045 = vmul.f32 %v3036, %v2472
        %v3046 = vmul.f32 %v3036, %v2473
        %v3047 = vmul.f32 %v3036, %v2474
        %v3048 = vmul.f32 %v3036, %v2475
        %v3049 = vmul.f32 %v3036, %v2476
        %v3050 = vmul.f32 %v3036, %v2477
        %v3051 = vmul.f32 %v3036, %v2478
        %v3052 = vmul.f32 %v3036, %v2479
        %v3053 = vmul.f32 %v1359, %v3037
        %v3054 = vmul.f32 %v1360, %v3038
        %v3055 = vmul.f32 %v1361, %v3039
        %v3056 = vmul.f32 %v1362, %v3040
        %v3057 = vmul.f32 %v1363, %v3041
        %v3058 = vmul.f32 %v1364, %v3042
        %v3059 = vmul.f32 %v1365, %v3043
        %v3060 = vmul.f32 %v1366, %v3044
        %v3061 = vmul.f32 %v1367, %v3045
        %v3062 = vmul.f32 %v1368, %v3046
        %v3063 = vmul.f32 %v1369, %v3047
        %v3064 = vmul.f32 %v1370, %v3048
        %v3065 = vmul.f32 %v1371, %v3049
        %v3066 = vmul.f32 %v1372, %v3050
        %v3067 = vmul.f32 %v1373, %v3051
        %v3068 = vmul.f32 %v1374, %v3052
        %v3069 = vld [vmem:[#allocation7 + $0x19] sm:$0x1]
        %v3070 = vlaneseq
        %v3071 = vshrl.u32 %v3070, 7
        %v3072 = vsub.s32 0, %v3071
        %v3073 = vrot.slane %v3069, %v3072
        %v3074 = vmul.f32 %v3073, %v2533
        %v3075 = vmul.f32 %v3073, %v2534
        %v3076 = vmul.f32 %v3073, %v2535
        %v3077 = vmul.f32 %v3073, %v2536
        %v3078 = vmul.f32 %v3073, %v2537
        %v3079 = vmul.f32 %v3073, %v2538
        %v3080 = vmul.f32 %v3073, %v2539
        %v3081 = vmul.f32 %v3073, %v2540
        %v3082 = vmul.f32 %v3073, %v2541
        %v3083 = vmul.f32 %v3073, %v2542
        %v3084 = vmul.f32 %v3073, %v2543
        %v3085 = vmul.f32 %v3073, %v2544
        %v3086 = vmul.f32 %v3073, %v2545
        %v3087 = vmul.f32 %v3073, %v2546
        %v3088 = vmul.f32 %v3073, %v2547
        %v3089 = vmul.f32 %v3073, %v2548
        %v3090 = vmul.f32 %v1614, %v3074
        %v3091 = vmul.f32 %v1615, %v3075
        %v3092 = vmul.f32 %v1616, %v3076
        %v3093 = vmul.f32 %v1617, %v3077
        %v3094 = vmul.f32 %v1618, %v3078
        %v3095 = vmul.f32 %v1619, %v3079
        %v3096 = vmul.f32 %v1620, %v3080
        %v3097 = vmul.f32 %v1621, %v3081
        %v3098 = vmul.f32 %v1622, %v3082
        %v3099 = vmul.f32 %v1623, %v3083
        %v3100 = vmul.f32 %v1624, %v3084
        %v3101 = vmul.f32 %v1625, %v3085
        %v3102 = vmul.f32 %v1626, %v3086
        %v3103 = vmul.f32 %v1627, %v3087
        %v3104 = vmul.f32 %v1628, %v3088
        %v3105 = vmul.f32 %v1629, %v3089
        %v3106 = vadd.f32 %v3053, %v3090
        %v3107 = vadd.f32 %v3054, %v3091
        %v3108 = vadd.f32 %v3055, %v3092
        %v3109 = vadd.f32 %v3056, %v3093
        %v3110 = vadd.f32 %v3057, %v3094
        %v3111 = vadd.f32 %v3058, %v3095
        %v3112 = vadd.f32 %v3059, %v3096
        %v3113 = vadd.f32 %v3060, %v3097
        %v3114 = vadd.f32 %v3061, %v3098
        %v3115 = vadd.f32 %v3062, %v3099
        %v3116 = vadd.f32 %v3063, %v3100
        %v3117 = vadd.f32 %v3064, %v3101
        %v3118 = vadd.f32 %v3065, %v3102
        %v3119 = vadd.f32 %v3066, %v3103
        %v3120 = vadd.f32 %v3067, %v3104
        %v3121 = vadd.f32 %v3068, %v3105
        %v3122 = vmul.f32 %v1481, %v3074
        %v3123 = vmul.f32 %v1482, %v3075
        %v3124 = vmul.f32 %v1483, %v3076
        %v3125 = vmul.f32 %v1484, %v3077
        %v3126 = vmul.f32 %v1485, %v3078
        %v3127 = vmul.f32 %v1486, %v3079
        %v3128 = vmul.f32 %v1487, %v3080
        %v3129 = vmul.f32 %v1488, %v3081
        %v3130 = vmul.f32 %v1489, %v3082
        %v3131 = vmul.f32 %v1490, %v3083
        %v3132 = vmul.f32 %v1491, %v3084
        %v3133 = vmul.f32 %v1492, %v3085
        %v3134 = vmul.f32 %v1493, %v3086
        %v3135 = vmul.f32 %v1494, %v3087
        %v3136 = vmul.f32 %v1495, %v3088
        %v3137 = vmul.f32 %v1496, %v3089
        %v3138 = vld [vmem:[#allocation7 + $0x1a] sm:$0x1]
        %v3139 = vlaneseq
        %v3140 = vshrl.u32 %v3139, 7
        %v3141 = vsub.s32 0, %v3140
        %v3142 = vrot.slane %v3138, %v3141
        %v3143 = vmul.f32 %v3142, %v2602
        %v3144 = vmul.f32 %v3142, %v2603
        %v3145 = vmul.f32 %v3142, %v2604
        %v3146 = vmul.f32 %v3142, %v2605
        %v3147 = vmul.f32 %v3142, %v2606
        %v3148 = vmul.f32 %v3142, %v2607
        %v3149 = vmul.f32 %v3142, %v2608
        %v3150 = vmul.f32 %v3142, %v2609
        %v3151 = vmul.f32 %v3142, %v2610
        %v3152 = vmul.f32 %v3142, %v2611
        %v3153 = vmul.f32 %v3142, %v2612
        %v3154 = vmul.f32 %v3142, %v2613
        %v3155 = vmul.f32 %v3142, %v2614
        %v3156 = vmul.f32 %v3142, %v2615
        %v3157 = vmul.f32 %v3142, %v2616
        %v3158 = vmul.f32 %v3142, %v2617
        %v3159 = vmul.f32 %v1715, %v3143
        %v3160 = vmul.f32 %v1716, %v3144
        %v3161 = vmul.f32 %v1717, %v3145
        %v3162 = vmul.f32 %v1718, %v3146
        %v3163 = vmul.f32 %v1719, %v3147
        %v3164 = vmul.f32 %v1720, %v3148
        %v3165 = vmul.f32 %v1721, %v3149
        %v3166 = vmul.f32 %v1722, %v3150
        %v3167 = vmul.f32 %v1723, %v3151
        %v3168 = vmul.f32 %v1724, %v3152
        %v3169 = vmul.f32 %v1725, %v3153
        %v3170 = vmul.f32 %v1726, %v3154
        %v3171 = vmul.f32 %v1727, %v3155
        %v3172 = vmul.f32 %v1728, %v3156
        %v3173 = vmul.f32 %v1729, %v3157
        %v3174 = vmul.f32 %v1730, %v3158
        %v3175 = vadd.f32 %v3122, %v3159
        %v3176 = vadd.f32 %v3123, %v3160
        %v3177 = vadd.f32 %v3124, %v3161
        %v3178 = vadd.f32 %v3125, %v3162
        %v3179 = vadd.f32 %v3126, %v3163
        %v3180 = vadd.f32 %v3127, %v3164
        %v3181 = vadd.f32 %v3128, %v3165
        %v3182 = vadd.f32 %v3129, %v3166
        %v3183 = vadd.f32 %v3130, %v3167
        %v3184 = vadd.f32 %v3131, %v3168
        %v3185 = vadd.f32 %v3132, %v3169
        %v3186 = vadd.f32 %v3133, %v3170
        %v3187 = vadd.f32 %v3134, %v3171
        %v3188 = vadd.f32 %v3135, %v3172
        %v3189 = vadd.f32 %v3136, %v3173
        %v3190 = vadd.f32 %v3137, %v3174
        %v3191 = vmul.f32 %v1582, %v3143
        %v3192 = vmul.f32 %v1583, %v3144
        %v3193 = vmul.f32 %v1584, %v3145
        %v3194 = vmul.f32 %v1585, %v3146
        %v3195 = vmul.f32 %v1586, %v3147
        %v3196 = vmul.f32 %v1587, %v3148
        %v3197 = vmul.f32 %v1588, %v3149
        %v3198 = vmul.f32 %v1589, %v3150
        %v3199 = vmul.f32 %v1590, %v3151
        %v3200 = vmul.f32 %v1591, %v3152
        %v3201 = vmul.f32 %v1592, %v3153
        %v3202 = vmul.f32 %v1593, %v3154
        %v3203 = vmul.f32 %v1594, %v3155
        %v3204 = vmul.f32 %v1595, %v3156
        %v3205 = vmul.f32 %v1596, %v3157
        %v3206 = vmul.f32 %v1597, %v3158
        %v3207 = vld [vmem:[#allocation7 + $0x1b] sm:$0x1]
        %v3208 = vlaneseq
        %v3209 = vshrl.u32 %v3208, 7
        %v3210 = vsub.s32 0, %v3209
        %v3211 = vrot.slane %v3207, %v3210
        %v3212 = vmul.f32 %v3211, %v2671
        %v3213 = vmul.f32 %v3211, %v2672
        %v3214 = vmul.f32 %v3211, %v2673
        %v3215 = vmul.f32 %v3211, %v2674
        %v3216 = vmul.f32 %v3211, %v2675
        %v3217 = vmul.f32 %v3211, %v2676
        %v3218 = vmul.f32 %v3211, %v2677
        %v3219 = vmul.f32 %v3211, %v2678
        %v3220 = vmul.f32 %v3211, %v2679
        %v3221 = vmul.f32 %v3211, %v2680
        %v3222 = vmul.f32 %v3211, %v2681
        %v3223 = vmul.f32 %v3211, %v2682
        %v3224 = vmul.f32 %v3211, %v2683
        %v3225 = vmul.f32 %v3211, %v2684
        %v3226 = vmul.f32 %v3211, %v2685
        %v3227 = vmul.f32 %v3211, %v2686
        %v3228 = vmul.f32 %v1816, %v3212
        %v3229 = vmul.f32 %v1817, %v3213
        %v3230 = vmul.f32 %v1818, %v3214
        %v3231 = vmul.f32 %v1819, %v3215
        %v3232 = vmul.f32 %v1820, %v3216
        %v3233 = vmul.f32 %v1821, %v3217
        %v3234 = vmul.f32 %v1822, %v3218
        %v3235 = vmul.f32 %v1823, %v3219
        %v3236 = vmul.f32 %v1824, %v3220
        %v3237 = vmul.f32 %v1825, %v3221
        %v3238 = vmul.f32 %v1826, %v3222
        %v3239 = vmul.f32 %v1827, %v3223
        %v3240 = vmul.f32 %v1828, %v3224
        %v3241 = vmul.f32 %v1829, %v3225
        %v3242 = vmul.f32 %v1830, %v3226
        %v3243 = vmul.f32 %v1831, %v3227
        %v3244 = vadd.f32 %v3191, %v3228
        %v3245 = vadd.f32 %v3192, %v3229
        %v3246 = vadd.f32 %v3193, %v3230
        %v3247 = vadd.f32 %v3194, %v3231
        %v3248 = vadd.f32 %v3195, %v3232
        %v3249 = vadd.f32 %v3196, %v3233
        %v3250 = vadd.f32 %v3197, %v3234
        %v3251 = vadd.f32 %v3198, %v3235
        %v3252 = vadd.f32 %v3199, %v3236
        %v3253 = vadd.f32 %v3200, %v3237
        %v3254 = vadd.f32 %v3201, %v3238
        %v3255 = vadd.f32 %v3202, %v3239
        %v3256 = vadd.f32 %v3203, %v3240
        %v3257 = vadd.f32 %v3204, %v3241
        %v3258 = vadd.f32 %v3205, %v3242
        %v3259 = vadd.f32 %v3206, %v3243
        %v3260 = vmul.f32 %v1683, %v3212
        %v3261 = vmul.f32 %v1684, %v3213
        %v3262 = vmul.f32 %v1685, %v3214
        %v3263 = vmul.f32 %v1686, %v3215
        %v3264 = vmul.f32 %v1687, %v3216
        %v3265 = vmul.f32 %v1688, %v3217
        %v3266 = vmul.f32 %v1689, %v3218
        %v3267 = vmul.f32 %v1690, %v3219
        %v3268 = vmul.f32 %v1691, %v3220
        %v3269 = vmul.f32 %v1692, %v3221
        %v3270 = vmul.f32 %v1693, %v3222
        %v3271 = vmul.f32 %v1694, %v3223
        %v3272 = vmul.f32 %v1695, %v3224
        %v3273 = vmul.f32 %v1696, %v3225
        %v3274 = vmul.f32 %v1697, %v3226
        %v3275 = vmul.f32 %v1698, %v3227
        %v3276 = vld [vmem:[#allocation7 + $0x1c] sm:$0x1]
        %v3277 = vlaneseq
        %v3278 = vshrl.u32 %v3277, 7
        %v3279 = vsub.s32 0, %v3278
        %v3280 = vrot.slane %v3276, %v3279
        %v3281 = vmul.f32 %v3280, %v2740
        %v3282 = vmul.f32 %v3280, %v2741
        %v3283 = vmul.f32 %v3280, %v2742
        %v3284 = vmul.f32 %v3280, %v2743
        %v3285 = vmul.f32 %v3280, %v2744
        %v3286 = vmul.f32 %v3280, %v2745
        %v3287 = vmul.f32 %v3280, %v2746
        %v3288 = vmul.f32 %v3280, %v2747
        %v3289 = vmul.f32 %v3280, %v2748
        %v3290 = vmul.f32 %v3280, %v2749
        %v3291 = vmul.f32 %v3280, %v2750
        %v3292 = vmul.f32 %v3280, %v2751
        %v3293 = vmul.f32 %v3280, %v2752
        %v3294 = vmul.f32 %v3280, %v2753
        %v3295 = vmul.f32 %v3280, %v2754
        %v3296 = vmul.f32 %v3280, %v2755
        %v3297 = vmul.f32 %v1917, %v3281
        %v3298 = vmul.f32 %v1918, %v3282
        %v3299 = vmul.f32 %v1919, %v3283
        %v3300 = vmul.f32 %v1920, %v3284
        %v3301 = vmul.f32 %v1921, %v3285
        %v3302 = vmul.f32 %v1922, %v3286
        %v3303 = vmul.f32 %v1923, %v3287
        %v3304 = vmul.f32 %v1924, %v3288
        %v3305 = vmul.f32 %v1925, %v3289
        %v3306 = vmul.f32 %v1926, %v3290
        %v3307 = vmul.f32 %v1927, %v3291
        %v3308 = vmul.f32 %v1928, %v3292
        %v3309 = vmul.f32 %v1929, %v3293
        %v3310 = vmul.f32 %v1930, %v3294
        %v3311 = vmul.f32 %v1931, %v3295
        %v3312 = vmul.f32 %v1932, %v3296
        %v3313 = vadd.f32 %v3260, %v3297
        %v3314 = vadd.f32 %v3261, %v3298
        %v3315 = vadd.f32 %v3262, %v3299
        %v3316 = vadd.f32 %v3263, %v3300
        %v3317 = vadd.f32 %v3264, %v3301
        %v3318 = vadd.f32 %v3265, %v3302
        %v3319 = vadd.f32 %v3266, %v3303
        %v3320 = vadd.f32 %v3267, %v3304
        %v3321 = vadd.f32 %v3268, %v3305
        %v3322 = vadd.f32 %v3269, %v3306
        %v3323 = vadd.f32 %v3270, %v3307
        %v3324 = vadd.f32 %v3271, %v3308
        %v3325 = vadd.f32 %v3272, %v3309
        %v3326 = vadd.f32 %v3273, %v3310
        %v3327 = vadd.f32 %v3274, %v3311
        %v3328 = vadd.f32 %v3275, %v3312
        %v3329 = vmul.f32 %v1784, %v3281
        %v3330 = vmul.f32 %v1785, %v3282
        %v3331 = vmul.f32 %v1786, %v3283
        %v3332 = vmul.f32 %v1787, %v3284
        %v3333 = vmul.f32 %v1788, %v3285
        %v3334 = vmul.f32 %v1789, %v3286
        %v3335 = vmul.f32 %v1790, %v3287
        %v3336 = vmul.f32 %v1791, %v3288
        %v3337 = vmul.f32 %v1792, %v3289
        %v3338 = vmul.f32 %v1793, %v3290
        %v3339 = vmul.f32 %v1794, %v3291
        %v3340 = vmul.f32 %v1795, %v3292
        %v3341 = vmul.f32 %v1796, %v3293
        %v3342 = vmul.f32 %v1797, %v3294
        %v3343 = vmul.f32 %v1798, %v3295
        %v3344 = vmul.f32 %v1799, %v3296
        %v3345 = vld [vmem:[#allocation7 + $0x1d] sm:$0x1]
        %v3346 = vlaneseq
        %v3347 = vshrl.u32 %v3346, 7
        %v3348 = vsub.s32 0, %v3347
        %v3349 = vrot.slane %v3345, %v3348
        %v3350 = vmul.f32 %v3349, %v2809
        %v3351 = vmul.f32 %v3349, %v2810
        %v3352 = vmul.f32 %v3349, %v2811
        %v3353 = vmul.f32 %v3349, %v2812
        %v3354 = vmul.f32 %v3349, %v2813
        %v3355 = vmul.f32 %v3349, %v2814
        %v3356 = vmul.f32 %v3349, %v2815
        %v3357 = vmul.f32 %v3349, %v2816
        %v3358 = vmul.f32 %v3349, %v2817
        %v3359 = vmul.f32 %v3349, %v2818
        %v3360 = vmul.f32 %v3349, %v2819
        %v3361 = vmul.f32 %v3349, %v2820
        %v3362 = vmul.f32 %v3349, %v2821
        %v3363 = vmul.f32 %v3349, %v2822
        %v3364 = vmul.f32 %v3349, %v2823
        %v3365 = vmul.f32 %v3349, %v2824
        %v3366 = vmul.f32 %v2018, %v3350
        %v3367 = vmul.f32 %v2019, %v3351
        %v3368 = vmul.f32 %v2020, %v3352
        %v3369 = vmul.f32 %v2021, %v3353
        %v3370 = vmul.f32 %v2022, %v3354
        %v3371 = vmul.f32 %v2023, %v3355
        %v3372 = vmul.f32 %v2024, %v3356
        %v3373 = vmul.f32 %v2025, %v3357
        %v3374 = vmul.f32 %v2026, %v3358
        %v3375 = vmul.f32 %v2027, %v3359
        %v3376 = vmul.f32 %v2028, %v3360
        %v3377 = vmul.f32 %v2029, %v3361
        %v3378 = vmul.f32 %v2030, %v3362
        %v3379 = vmul.f32 %v2031, %v3363
        %v3380 = vmul.f32 %v2032, %v3364
        %v3381 = vmul.f32 %v2033, %v3365
        %v3382 = vadd.f32 %v3329, %v3366
        %v3383 = vadd.f32 %v3330, %v3367
        %v3384 = vadd.f32 %v3331, %v3368
        %v3385 = vadd.f32 %v3332, %v3369
        %v3386 = vadd.f32 %v3333, %v3370
        %v3387 = vadd.f32 %v3334, %v3371
        %v3388 = vadd.f32 %v3335, %v3372
        %v3389 = vadd.f32 %v3336, %v3373
        %v3390 = vadd.f32 %v3337, %v3374
        %v3391 = vadd.f32 %v3338, %v3375
        %v3392 = vadd.f32 %v3339, %v3376
        %v3393 = vadd.f32 %v3340, %v3377
        %v3394 = vadd.f32 %v3341, %v3378
        %v3395 = vadd.f32 %v3342, %v3379
        %v3396 = vadd.f32 %v3343, %v3380
        %v3397 = vadd.f32 %v3344, %v3381
        %v3398 = vmul.f32 %v1885, %v3350
        %v3399 = vmul.f32 %v1886, %v3351
        %v3400 = vmul.f32 %v1887, %v3352
        %v3401 = vmul.f32 %v1888, %v3353
        %v3402 = vmul.f32 %v1889, %v3354
        %v3403 = vmul.f32 %v1890, %v3355
        %v3404 = vmul.f32 %v1891, %v3356
        %v3405 = vmul.f32 %v1892, %v3357
        %v3406 = vmul.f32 %v1893, %v3358
        %v3407 = vmul.f32 %v1894, %v3359
        %v3408 = vmul.f32 %v1895, %v3360
        %v3409 = vmul.f32 %v1896, %v3361
        %v3410 = vmul.f32 %v1897, %v3362
        %v3411 = vmul.f32 %v1898, %v3363
        %v3412 = vmul.f32 %v1899, %v3364
        %v3413 = vmul.f32 %v1900, %v3365
        %v3414 = vld [vmem:[#allocation7 + $0x1e] sm:$0x1]
        %v3415 = vlaneseq
        %v3416 = vshrl.u32 %v3415, 7
        %v3417 = vsub.s32 0, %v3416
        %v3418 = vrot.slane %v3414, %v3417
        %v3419 = vmul.f32 %v3418, %v2878
        %v3420 = vmul.f32 %v3418, %v2879
        %v3421 = vmul.f32 %v3418, %v2880
        %v3422 = vmul.f32 %v3418, %v2881
        %v3423 = vmul.f32 %v3418, %v2882
        %v3424 = vmul.f32 %v3418, %v2883
        %v3425 = vmul.f32 %v3418, %v2884
        %v3426 = vmul.f32 %v3418, %v2885
        %v3427 = vmul.f32 %v3418, %v2886
        %v3428 = vmul.f32 %v3418, %v2887
        %v3429 = vmul.f32 %v3418, %v2888
        %v3430 = vmul.f32 %v3418, %v2889
        %v3431 = vmul.f32 %v3418, %v2890
        %v3432 = vmul.f32 %v3418, %v2891
        %v3433 = vmul.f32 %v3418, %v2892
        %v3434 = vmul.f32 %v3418, %v2893
        %v3435 = vmul.f32 %v2119, %v3419
        %v3436 = vmul.f32 %v2120, %v3420
        %v3437 = vmul.f32 %v2121, %v3421
        %v3438 = vmul.f32 %v2122, %v3422
        %v3439 = vmul.f32 %v2123, %v3423
        %v3440 = vmul.f32 %v2124, %v3424
        %v3441 = vmul.f32 %v2125, %v3425
        %v3442 = vmul.f32 %v2126, %v3426
        %v3443 = vmul.f32 %v2127, %v3427
        %v3444 = vmul.f32 %v2128, %v3428
        %v3445 = vmul.f32 %v2129, %v3429
        %v3446 = vmul.f32 %v2130, %v3430
        %v3447 = vmul.f32 %v2131, %v3431
        %v3448 = vmul.f32 %v2132, %v3432
        %v3449 = vmul.f32 %v2133, %v3433
        %v3450 = vmul.f32 %v2134, %v3434
        %v3451 = vadd.f32 %v3398, %v3435
        %v3452 = vadd.f32 %v3399, %v3436
        %v3453 = vadd.f32 %v3400, %v3437
        %v3454 = vadd.f32 %v3401, %v3438
        %v3455 = vadd.f32 %v3402, %v3439
        %v3456 = vadd.f32 %v3403, %v3440
        %v3457 = vadd.f32 %v3404, %v3441
        %v3458 = vadd.f32 %v3405, %v3442
        %v3459 = vadd.f32 %v3406, %v3443
        %v3460 = vadd.f32 %v3407, %v3444
        %v3461 = vadd.f32 %v3408, %v3445
        %v3462 = vadd.f32 %v3409, %v3446
        %v3463 = vadd.f32 %v3410, %v3447
        %v3464 = vadd.f32 %v3411, %v3448
        %v3465 = vadd.f32 %v3412, %v3449
        %v3466 = vadd.f32 %v3413, %v3450
        %v3467 = vmul.f32 %v1986, %v3419
        %v3468 = vmul.f32 %v1987, %v3420
        %v3469 = vmul.f32 %v1988, %v3421
        %v3470 = vmul.f32 %v1989, %v3422
        %v3471 = vmul.f32 %v1990, %v3423
        %v3472 = vmul.f32 %v1991, %v3424
        %v3473 = vmul.f32 %v1992, %v3425
        %v3474 = vmul.f32 %v1993, %v3426
        %v3475 = vmul.f32 %v1994, %v3427
        %v3476 = vmul.f32 %v1995, %v3428
        %v3477 = vmul.f32 %v1996, %v3429
        %v3478 = vmul.f32 %v1997, %v3430
        %v3479 = vmul.f32 %v1998, %v3431
        %v3480 = vmul.f32 %v1999, %v3432
        %v3481 = vmul.f32 %v2000, %v3433
        %v3482 = vmul.f32 %v2001, %v3434
        %v3483 = vld [vmem:[#allocation7 + $0x1f] sm:$0x1]
        %v3484 = vlaneseq
        %v3485 = vshrl.u32 %v3484, 7
        %v3486 = vsub.s32 0, %v3485
        %v3487 = vrot.slane %v3483, %v3486
        %v3488 = vmul.f32 %v3487, %v2947
        %v3489 = vmul.f32 %v3487, %v2948
        %v3490 = vmul.f32 %v3487, %v2949
        %v3491 = vmul.f32 %v3487, %v2950
        %v3492 = vmul.f32 %v3487, %v2951
        %v3493 = vmul.f32 %v3487, %v2952
        %v3494 = vmul.f32 %v3487, %v2953
        %v3495 = vmul.f32 %v3487, %v2954
        %v3496 = vmul.f32 %v3487, %v2955
        %v3497 = vmul.f32 %v3487, %v2956
        %v3498 = vmul.f32 %v3487, %v2957
        %v3499 = vmul.f32 %v3487, %v2958
        %v3500 = vmul.f32 %v3487, %v2959
        %v3501 = vmul.f32 %v3487, %v2960
        %v3502 = vmul.f32 %v3487, %v2961
        %v3503 = vmul.f32 %v3487, %v2962
        %v3504 = vmul.f32 %v2220, %v3488
        %v3505 = vmul.f32 %v2221, %v3489
        %v3506 = vmul.f32 %v2222, %v3490
        %v3507 = vmul.f32 %v2223, %v3491
        %v3508 = vmul.f32 %v2224, %v3492
        %v3509 = vmul.f32 %v2225, %v3493
        %v3510 = vmul.f32 %v2226, %v3494
        %v3511 = vmul.f32 %v2227, %v3495
        %v3512 = vmul.f32 %v2228, %v3496
        %v3513 = vmul.f32 %v2229, %v3497
        %v3514 = vmul.f32 %v2230, %v3498
        %v3515 = vmul.f32 %v2231, %v3499
        %v3516 = vmul.f32 %v2232, %v3500
        %v3517 = vmul.f32 %v2233, %v3501
        %v3518 = vmul.f32 %v2234, %v3502
        %v3519 = vmul.f32 %v2235, %v3503
        %v3520 = vadd.f32 %v3467, %v3504
        %v3521 = vadd.f32 %v3468, %v3505
        %v3522 = vadd.f32 %v3469, %v3506
        %v3523 = vadd.f32 %v3470, %v3507
        %v3524 = vadd.f32 %v3471, %v3508
        %v3525 = vadd.f32 %v3472, %v3509
        %v3526 = vadd.f32 %v3473, %v3510
        %v3527 = vadd.f32 %v3474, %v3511
        %v3528 = vadd.f32 %v3475, %v3512
        %v3529 = vadd.f32 %v3476, %v3513
        %v3530 = vadd.f32 %v3477, %v3514
        %v3531 = vadd.f32 %v3478, %v3515
        %v3532 = vadd.f32 %v3479, %v3516
        %v3533 = vadd.f32 %v3480, %v3517
        %v3534 = vadd.f32 %v3481, %v3518
        %v3535 = vadd.f32 %v3482, %v3519
        %v3536 = vmul.f32 %v2087, %v3488
        %v3537 = vmul.f32 %v2088, %v3489
        %v3538 = vmul.f32 %v2089, %v3490
        %v3539 = vmul.f32 %v2090, %v3491
        %v3540 = vmul.f32 %v2091, %v3492
        %v3541 = vmul.f32 %v2092, %v3493
        %v3542 = vmul.f32 %v2093, %v3494
        %v3543 = vmul.f32 %v2094, %v3495
        %v3544 = vmul.f32 %v2095, %v3496
        %v3545 = vmul.f32 %v2096, %v3497
        %v3546 = vmul.f32 %v2097, %v3498
        %v3547 = vmul.f32 %v2098, %v3499
        %v3548 = vmul.f32 %v2099, %v3500
        %v3549 = vmul.f32 %v2100, %v3501
        %v3550 = vmul.f32 %v2101, %v3502
        %v3551 = vmul.f32 %v2102, %v3503
        %v3552 = vld [vmem:[#allocation7 + $0x20] sm:$0x1]
        %v3553 = vlaneseq
        %v3554 = vshrl.u32 %v3553, 7
        %v3555 = vsub.s32 0, %v3554
        %v3556 = vrot.slane %v3552, %v3555
        %v3557 = vmul.f32 %v3556, %v3016
        %v3558 = vmul.f32 %v3556, %v3017
        %v3559 = vmul.f32 %v3556, %v3018
        %v3560 = vmul.f32 %v3556, %v3019
        %v3561 = vmul.f32 %v3556, %v3020
        %v3562 = vmul.f32 %v3556, %v3021
        %v3563 = vmul.f32 %v3556, %v3022
        %v3564 = vmul.f32 %v3556, %v3023
        %v3565 = vmul.f32 %v3556, %v3024
        %v3566 = vmul.f32 %v3556, %v3025
        %v3567 = vmul.f32 %v3556, %v3026
        %v3568 = vmul.f32 %v3556, %v3027
        %v3569 = vmul.f32 %v3556, %v3028
        %v3570 = vmul.f32 %v3556, %v3029
        %v3571 = vmul.f32 %v3556, %v3030
        %v3572 = vmul.f32 %v3556, %v3031
        %v3573 = vmul.f32 %v2321, %v3557
        %v3574 = vmul.f32 %v2322, %v3558
        %v3575 = vmul.f32 %v2323, %v3559
        %v3576 = vmul.f32 %v2324, %v3560
        %v3577 = vmul.f32 %v2325, %v3561
        %v3578 = vmul.f32 %v2326, %v3562
        %v3579 = vmul.f32 %v2327, %v3563
        %v3580 = vmul.f32 %v2328, %v3564
        %v3581 = vmul.f32 %v2329, %v3565
        %v3582 = vmul.f32 %v2330, %v3566
        %v3583 = vmul.f32 %v2331, %v3567
        %v3584 = vmul.f32 %v2332, %v3568
        %v3585 = vmul.f32 %v2333, %v3569
        %v3586 = vmul.f32 %v2334, %v3570
        %v3587 = vmul.f32 %v2335, %v3571
        %v3588 = vmul.f32 %v2336, %v3572
        %v3589 = vadd.f32 %v3536, %v3573
        %v3590 = vadd.f32 %v3537, %v3574
        %v3591 = vadd.f32 %v3538, %v3575
        %v3592 = vadd.f32 %v3539, %v3576
        %v3593 = vadd.f32 %v3540, %v3577
        %v3594 = vadd.f32 %v3541, %v3578
        %v3595 = vadd.f32 %v3542, %v3579
        %v3596 = vadd.f32 %v3543, %v3580
        %v3597 = vadd.f32 %v3544, %v3581
        %v3598 = vadd.f32 %v3545, %v3582
        %v3599 = vadd.f32 %v3546, %v3583
        %v3600 = vadd.f32 %v3547, %v3584
        %v3601 = vadd.f32 %v3548, %v3585
        %v3602 = vadd.f32 %v3549, %v3586
        %v3603 = vadd.f32 %v3550, %v3587
        %v3604 = vadd.f32 %v3551, %v3588
        %v3606 = vlaneseq
        %v3607 = vshrl.u32 %v3606, 7
        %v3608 = vsub.s32 0, %v3607
        %v3609 = vrot.slane %v306, %v3608
        %v3611 = vmul.f32 %v3106, %v3609
        %v3612 = vmul.f32 %v3107, %v3609
        %v3613 = vmul.f32 %v3108, %v3609
        %v3614 = vmul.f32 %v3109, %v3609
        %v3615 = vmul.f32 %v3110, %v3609
        %v3616 = vmul.f32 %v3111, %v3609
        %v3617 = vmul.f32 %v3112, %v3609
        %v3618 = vmul.f32 %v3113, %v3609
        %v3619 = vmul.f32 %v3114, %v3609
        %v3620 = vmul.f32 %v3115, %v3609
        %v3621 = vmul.f32 %v3116, %v3609
        %v3622 = vmul.f32 %v3117, %v3609
        %v3623 = vmul.f32 %v3118, %v3609
        %v3624 = vmul.f32 %v3119, %v3609
        %v3625 = vmul.f32 %v3120, %v3609
        %v3626 = vmul.f32 %v3121, %v3609
        %v3627 = vmul.f32 %v3175, %v3609
        %v3628 = vmul.f32 %v3176, %v3609
        %v3629 = vmul.f32 %v3177, %v3609
        %v3630 = vmul.f32 %v3178, %v3609
        %v3631 = vmul.f32 %v3179, %v3609
        %v3632 = vmul.f32 %v3180, %v3609
        %v3633 = vmul.f32 %v3181, %v3609
        %v3634 = vmul.f32 %v3182, %v3609
        %v3635 = vmul.f32 %v3183, %v3609
        %v3636 = vmul.f32 %v3184, %v3609
        %v3637 = vmul.f32 %v3185, %v3609
        %v3638 = vmul.f32 %v3186, %v3609
        %v3639 = vmul.f32 %v3187, %v3609
        %v3640 = vmul.f32 %v3188, %v3609
        %v3641 = vmul.f32 %v3189, %v3609
        %v3642 = vmul.f32 %v3190, %v3609
        %v3643 = vmul.f32 %v3244, %v3609
        %v3644 = vmul.f32 %v3245, %v3609
        %v3645 = vmul.f32 %v3246, %v3609
        %v3646 = vmul.f32 %v3247, %v3609
        %v3647 = vmul.f32 %v3248, %v3609
        %v3648 = vmul.f32 %v3249, %v3609
        %v3649 = vmul.f32 %v3250, %v3609
        %v3650 = vmul.f32 %v3251, %v3609
        %v3651 = vmul.f32 %v3252, %v3609
        %v3652 = vmul.f32 %v3253, %v3609
        %v3653 = vmul.f32 %v3254, %v3609
        %v3654 = vmul.f32 %v3255, %v3609
        %v3655 = vmul.f32 %v3256, %v3609
        %v3656 = vmul.f32 %v3257, %v3609
        %v3657 = vmul.f32 %v3258, %v3609
        %v3658 = vmul.f32 %v3259, %v3609
        %v3659 = vmul.f32 %v3313, %v3609
        %v3660 = vmul.f32 %v3314, %v3609
        %v3661 = vmul.f32 %v3315, %v3609
        %v3662 = vmul.f32 %v3316, %v3609
        %v3663 = vmul.f32 %v3317, %v3609
        %v3664 = vmul.f32 %v3318, %v3609
        %v3665 = vmul.f32 %v3319, %v3609
        %v3666 = vmul.f32 %v3320, %v3609
        %v3667 = vmul.f32 %v3321, %v3609
        %v3668 = vmul.f32 %v3322, %v3609
        %v3669 = vmul.f32 %v3323, %v3609
        %v3670 = vmul.f32 %v3324, %v3609
        %v3671 = vmul.f32 %v3325, %v3609
        %v3672 = vmul.f32 %v3326, %v3609
        %v3673 = vmul.f32 %v3327, %v3609
        %v3674 = vmul.f32 %v3328, %v3609
        %v3675 = vmul.f32 %v3382, %v3609
        %v3676 = vmul.f32 %v3383, %v3609
        %v3677 = vmul.f32 %v3384, %v3609
        %v3678 = vmul.f32 %v3385, %v3609
        %v3679 = vmul.f32 %v3386, %v3609
        %v3680 = vmul.f32 %v3387, %v3609
        %v3681 = vmul.f32 %v3388, %v3609
        %v3682 = vmul.f32 %v3389, %v3609
        %v3683 = vmul.f32 %v3390, %v3609
        %v3684 = vmul.f32 %v3391, %v3609
        %v3685 = vmul.f32 %v3392, %v3609
        %v3686 = vmul.f32 %v3393, %v3609
        %v3687 = vmul.f32 %v3394, %v3609
        %v3688 = vmul.f32 %v3395, %v3609
        %v3689 = vmul.f32 %v3396, %v3609
        %v3690 = vmul.f32 %v3397, %v3609
        %v3691 = vmul.f32 %v3451, %v3609
        %v3692 = vmul.f32 %v3452, %v3609
        %v3693 = vmul.f32 %v3453, %v3609
        %v3694 = vmul.f32 %v3454, %v3609
        %v3695 = vmul.f32 %v3455, %v3609
        %v3696 = vmul.f32 %v3456, %v3609
        %v3697 = vmul.f32 %v3457, %v3609
        %v3698 = vmul.f32 %v3458, %v3609
        %v3699 = vmul.f32 %v3459, %v3609
        %v3700 = vmul.f32 %v3460, %v3609
        %v3701 = vmul.f32 %v3461, %v3609
        %v3702 = vmul.f32 %v3462, %v3609
        %v3703 = vmul.f32 %v3463, %v3609
        %v3704 = vmul.f32 %v3464, %v3609
        %v3705 = vmul.f32 %v3465, %v3609
        %v3706 = vmul.f32 %v3466, %v3609
        %v3707 = vmul.f32 %v3520, %v3609
        %v3708 = vmul.f32 %v3521, %v3609
        %v3709 = vmul.f32 %v3522, %v3609
        %v3710 = vmul.f32 %v3523, %v3609
        %v3711 = vmul.f32 %v3524, %v3609
        %v3712 = vmul.f32 %v3525, %v3609
        %v3713 = vmul.f32 %v3526, %v3609
        %v3714 = vmul.f32 %v3527, %v3609
        %v3715 = vmul.f32 %v3528, %v3609
        %v3716 = vmul.f32 %v3529, %v3609
        %v3717 = vmul.f32 %v3530, %v3609
        %v3718 = vmul.f32 %v3531, %v3609
        %v3719 = vmul.f32 %v3532, %v3609
        %v3720 = vmul.f32 %v3533, %v3609
        %v3721 = vmul.f32 %v3534, %v3609
        %v3722 = vmul.f32 %v3535, %v3609
        %v3723 = vmul.f32 %v3589, %v3609
        %v3724 = vmul.f32 %v3590, %v3609
        %v3725 = vmul.f32 %v3591, %v3609
        %v3726 = vmul.f32 %v3592, %v3609
        %v3727 = vmul.f32 %v3593, %v3609
        %v3728 = vmul.f32 %v3594, %v3609
        %v3729 = vmul.f32 %v3595, %v3609
        %v3730 = vmul.f32 %v3596, %v3609
        %v3731 = vmul.f32 %v3597, %v3609
        %v3732 = vmul.f32 %v3598, %v3609
        %v3733 = vmul.f32 %v3599, %v3609
        %v3734 = vmul.f32 %v3600, %v3609
        %v3735 = vmul.f32 %v3601, %v3609
        %v3736 = vmul.f32 %v3602, %v3609
        %v3737 = vmul.f32 %v3603, %v3609
        %v3738 = vmul.f32 %v3604, %v3609
        %v3739 = vpack.c.bf16 %v404, %v403
        %v3740 = vpack.c.bf16 %v406, %v405
        %v3741 = vpack.c.bf16 %v408, %v407
        %v3742 = vpack.c.bf16 %v410, %v409
        %v3743 = vpack.c.bf16 %v412, %v411
        %v3744 = vpack.c.bf16 %v414, %v413
        %v3745 = vpack.c.bf16 %v416, %v415
        %v3746 = vpack.c.bf16 %v418, %v417
        %v3747 = vld [vmem:[#allocation8] sm:$0xf]
        %v3748 = vld [vmem:[#allocation8 + $0x4] sm:$0xf]
        %v3749 = vld [vmem:[#allocation8 + $0x8] sm:$0xf]
        %v3750 = vld [vmem:[#allocation8 + $0xc] sm:$0xf]
        %v3751 = vld [vmem:[#allocation8 + $0x10] sm:$0xf]
        %v3752 = vld [vmem:[#allocation8 + $0x14] sm:$0xf]
        %v3753 = vld [vmem:[#allocation8 + $0x18] sm:$0xf]
        %v3754 = vld [vmem:[#allocation8 + $0x1c] sm:$0xf]
        %v3755 = vld [vmem:[#allocation8 + $0x20] sm:$0xf]
        %v3756 = vld [vmem:[#allocation8 + $0x24] sm:$0xf]
        %v3757 = vld [vmem:[#allocation8 + $0x28] sm:$0xf]
        %v3758 = vld [vmem:[#allocation8 + $0x2c] sm:$0xf]
        %v3759 = vld [vmem:[#allocation8 + $0x30] sm:$0xf]
        %v3760 = vld [vmem:[#allocation8 + $0x34] sm:$0xf]
        %v3761 = vld [vmem:[#allocation8 + $0x38] sm:$0xf]
        %v3762 = vld [vmem:[#allocation8 + $0x3c] sm:$0xf]
        %v3763 = vpack.c.bf16 %v3612, %v3611
        %v3764 = vpack.c.bf16 %v3614, %v3613
        %v3765 = vpack.c.bf16 %v3616, %v3615
        %v3766 = vpack.c.bf16 %v3618, %v3617
        %v3767 = vpack.c.bf16 %v3620, %v3619
        %v3768 = vpack.c.bf16 %v3622, %v3621
        %v3769 = vpack.c.bf16 %v3624, %v3623
        %v3770 = vpack.c.bf16 %v3626, %v3625
        %v3771 = vld [vmem:[#allocation8 + $0x40] sm:$0xf]
        %v3772 = vld [vmem:[#allocation8 + $0x44] sm:$0xf]
        %v3773 = vld [vmem:[#allocation8 + $0x48] sm:$0xf]
        %v3774 = vld [vmem:[#allocation8 + $0x4c] sm:$0xf]
        %v3775 = vld [vmem:[#allocation8 + $0x50] sm:$0xf]
        %v3776 = vld [vmem:[#allocation8 + $0x54] sm:$0xf]
        %v3777 = vld [vmem:[#allocation8 + $0x58] sm:$0xf]
        %v3778 = vld [vmem:[#allocation8 + $0x5c] sm:$0xf]
        %v3779 = vld [vmem:[#allocation8 + $0x60] sm:$0xf]
        %v3780 = vld [vmem:[#allocation8 + $0x64] sm:$0xf]
        %v3781 = vld [vmem:[#allocation8 + $0x68] sm:$0xf]
        %v3782 = vld [vmem:[#allocation8 + $0x6c] sm:$0xf]
        %v3783 = vld [vmem:[#allocation8 + $0x70] sm:$0xf]
        %v3784 = vld [vmem:[#allocation8 + $0x74] sm:$0xf]
        %v3785 = vld [vmem:[#allocation8 + $0x78] sm:$0xf]
        %v3786 = vld [vmem:[#allocation8 + $0x7c] sm:$0xf]
        %v3803 = vunpack.c.l.b16 %v3771
        %v3804 = vunpack.c.l.b16 %v3772
        %v3805 = vunpack.c.l.b16 %v3773
        %v3806 = vunpack.c.l.b16 %v3774
        %v3807 = vunpack.c.l.b16 %v3775
        %v3808 = vunpack.c.l.b16 %v3776
        %v3809 = vunpack.c.l.b16 %v3777
        %v3810 = vunpack.c.l.b16 %v3778
        %v3811 = vunpack.c.l.b16 %v3779
        %v3812 = vunpack.c.l.b16 %v3780
        %v3813 = vunpack.c.l.b16 %v3781
        %v3814 = vunpack.c.l.b16 %v3782
        %v3815 = vunpack.c.l.b16 %v3783
        %v3816 = vunpack.c.l.b16 %v3784
        %v3817 = vunpack.c.l.b16 %v3785
        %v3818 = vunpack.c.l.b16 %v3786
        %v3819 = vpack.c.b16 %v3804, %v3803
        %v3820 = vpack.c.b16 %v3806, %v3805
        %v3821 = vpack.c.b16 %v3808, %v3807
        %v3822 = vpack.c.b16 %v3810, %v3809
        %v3823 = vpack.c.b16 %v3812, %v3811
        %v3824 = vpack.c.b16 %v3814, %v3813
        %v3825 = vpack.c.b16 %v3816, %v3815
        %v3826 = vpack.c.b16 %v3818, %v3817
        %3835 = vmatprep.subr.bf16.mxu0 0
        %3836 = vmatpush1.bf16.msra.mxu0 %v3819
        %3837 = vmatprep.subr.bf16.mxu0 0
        %3838 = vmatpush1.bf16.msra.mxu0 %v3820
        %3839 = vmatprep.subr.bf16.mxu0 0
        %3840 = vmatpush1.bf16.msra.mxu0 %v3821
        %3841 = vmatprep.subr.bf16.mxu0 0
        %3842 = vmatpush1.bf16.msra.mxu0 %v3822
        %3843 = vmatprep.subr.bf16.mxu0 0
        %3844 = vmatpush1.bf16.msra.mxu0 %v3823
        %3845 = vmatprep.subr.bf16.mxu0 0
        %3846 = vmatpush1.bf16.msra.mxu0 %v3824
        %3847 = vmatprep.subr.bf16.mxu0 0
        %3848 = vmatpush1.bf16.msra.mxu0 %v3825
        %3849 = vmatprep.subr.bf16.mxu0 0
        %3850 = vmatpush1.bf16.msra.mxu0 %v3826
        %3851 = vmatprep.subr.bf16.mxu0 0
        %3852 = vmatpush1.bf16.msra.mxu0 0
        %3853 = vmatprep.subr.bf16.mxu0 0
        %3854 = vmatpush1.bf16.msra.mxu0 0
        %3855 = vmatprep.subr.bf16.mxu0 0
        %3856 = vmatpush1.bf16.msra.mxu0 0
        %3857 = vmatprep.subr.bf16.mxu0 0
        %3858 = vmatpush1.bf16.msra.mxu0 0
        %3859 = vmatprep.subr.bf16.mxu0 0
        %3860 = vmatpush1.bf16.msra.mxu0 0
        %3861 = vmatprep.subr.bf16.mxu0 0
        %3862 = vmatpush1.bf16.msra.mxu0 0
        %3863 = vmatprep.subr.bf16.mxu0 0
        %3864 = vmatpush1.bf16.msra.mxu0 0
        %3865 = vmatprep.subr.bf16.mxu0 0
        %3866 = vmatpush1.bf16.msra.mxu0 0
        %3867 = vmatprep.mubr.bf16.mxu0 0
        %3868 = vmatmul.mubr.bf16.gmra.mrb[0].mxu0 %v3763
        %v3869 = vpop.f32.mrb[0].mxu0
        %v3870 = vadd.f32 0.0, %v3869
        %v3871 = vpop.f32.mrb[0].mxu0
        %v3872 = vpop.f32.mrb[0].mxu0
        %v3873 = vadd.f32 0.0, %v3872
        %v3874 = vpop.f32.mrb[0].mxu0
        %3875 = vmatprep.mubr.bf16.mxu0 0
        %3876 = vmatmul.mubr.bf16.gmra.mrb[0].mxu0 %v3764
        %v3877 = vpop.f32.mrb[0].mxu0
        %v3878 = vadd.f32 0.0, %v3877
        %v3879 = vpop.f32.mrb[0].mxu0
        %v3880 = vpop.f32.mrb[0].mxu0
        %v3881 = vadd.f32 0.0, %v3880
        %v3882 = vpop.f32.mrb[0].mxu0
        %3883 = vmatprep.mubr.bf16.mxu0 0
        %3884 = vmatmul.mubr.bf16.gmra.mrb[0].mxu0 %v3765
        %v3885 = vpop.f32.mrb[0].mxu0
        %v3886 = vadd.f32 0.0, %v3885
        %v3887 = vpop.f32.mrb[0].mxu0
        %v3888 = vpop.f32.mrb[0].mxu0
        %v3889 = vadd.f32 0.0, %v3888
        %v3890 = vpop.f32.mrb[0].mxu0
        %3891 = vmatprep.mubr.bf16.mxu0 0
        %3892 = vmatmul.mubr.bf16.gmra.mrb[0].mxu0 %v3766
        %v3893 = vpop.f32.mrb[0].mxu0
        %v3894 = vadd.f32 0.0, %v3893
        %v3895 = vpop.f32.mrb[0].mxu0
        %v3896 = vpop.f32.mrb[0].mxu0
        %v3897 = vadd.f32 0.0, %v3896
        %v3898 = vpop.f32.mrb[0].mxu0
        %3899 = vmatprep.mubr.bf16.mxu0 0
        %3900 = vmatmul.mubr.bf16.gmra.mrb[0].mxu0 %v3767
        %v3901 = vpop.f32.mrb[0].mxu0
        %v3902 = vadd.f32 0.0, %v3901
        %v3903 = vpop.f32.mrb[0].mxu0
        %v3904 = vpop.f32.mrb[0].mxu0
        %v3905 = vadd.f32 0.0, %v3904
        %v3906 = vpop.f32.mrb[0].mxu0
        %3907 = vmatprep.mubr.bf16.mxu0 0
        %3908 = vmatmul.mubr.bf16.gmra.mrb[0].mxu0 %v3768
        %v3909 = vpop.f32.mrb[0].mxu0
        %v3910 = vadd.f32 0.0, %v3909
        %v3911 = vpop.f32.mrb[0].mxu0
        %v3912 = vpop.f32.mrb[0].mxu0
        %v3913 = vadd.f32 0.0, %v3912
        %v3914 = vpop.f32.mrb[0].mxu0
        %3915 = vmatprep.mubr.bf16.mxu0 0
        %3916 = vmatmul.mubr.bf16.gmra.mrb[0].mxu0 %v3769
        %v3917 = vpop.f32.mrb[0].mxu0
        %v3918 = vadd.f32 0.0, %v3917
        %v3919 = vpop.f32.mrb[0].mxu0
        %v3920 = vpop.f32.mrb[0].mxu0
        %v3921 = vadd.f32 0.0, %v3920
        %v3922 = vpop.f32.mrb[0].mxu0
        %3923 = vmatprep.mubr.bf16.mxu0 0
        %3924 = vmatmul.mubr.bf16.gmra.mrb[0].mxu0 %v3770
        %v3925 = vpop.f32.mrb[0].mxu0
        %v3926 = vadd.f32 0.0, %v3925
        %v3927 = vpop.f32.mrb[0].mxu0
        %v3928 = vpop.f32.mrb[0].mxu0
        %v3929 = vadd.f32 0.0, %v3928
        %v3930 = vpop.f32.mrb[0].mxu0
        %3931 = vdwg.mxu0
        %v3948 = vunpack.c.l.b16 %v3747
        %v3949 = vunpack.c.l.b16 %v3748
        %v3950 = vunpack.c.l.b16 %v3749
        %v3951 = vunpack.c.l.b16 %v3750
        %v3952 = vunpack.c.l.b16 %v3751
        %v3953 = vunpack.c.l.b16 %v3752
        %v3954 = vunpack.c.l.b16 %v3753
        %v3955 = vunpack.c.l.b16 %v3754
        %v3956 = vunpack.c.l.b16 %v3755
        %v3957 = vunpack.c.l.b16 %v3756
        %v3958 = vunpack.c.l.b16 %v3757
        %v3959 = vunpack.c.l.b16 %v3758
        %v3960 = vunpack.c.l.b16 %v3759
        %v3961 = vunpack.c.l.b16 %v3760
        %v3962 = vunpack.c.l.b16 %v3761
        %v3963 = vunpack.c.l.b16 %v3762
        %v3964 = vpack.c.b16 %v3949, %v3948
        %v3965 = vpack.c.b16 %v3951, %v3950
        %v3966 = vpack.c.b16 %v3953, %v3952
        %v3967 = vpack.c.b16 %v3955, %v3954
        %v3968 = vpack.c.b16 %v3957, %v3956
        %v3969 = vpack.c.b16 %v3959, %v3958
        %v3970 = vpack.c.b16 %v3961, %v3960
        %v3971 = vpack.c.b16 %v3963, %v3962
        %3980 = vmatprep.subr.bf16.mxu0 0
        %3981 = vmatpush1.bf16.msra.mxu0 %v3964
        %3982 = vmatprep.subr.bf16.mxu0 0
        %3983 = vmatpush1.bf16.msra.mxu0 %v3965
        %3984 = vmatprep.subr.bf16.mxu0 0
        %3985 = vmatpush1.bf16.msra.mxu0 %v3966
        %3986 = vmatprep.subr.bf16.mxu0 0
        %3987 = vmatpush1.bf16.msra.mxu0 %v3967
        %3988 = vmatprep.subr.bf16.mxu0 0
        %3989 = vmatpush1.bf16.msra.mxu0 %v3968
        %3990 = vmatprep.subr.bf16.mxu0 0
        %3991 = vmatpush1.bf16.msra.mxu0 %v3969
        %3992 = vmatprep.subr.bf16.mxu0 0
        %3993 = vmatpush1.bf16.msra.mxu0 %v3970
        %3994 = vmatprep.subr.bf16.mxu0 0
        %3995 = vmatpush1.bf16.msra.mxu0 %v3971
        %3996 = vmatprep.subr.bf16.mxu0 0
        %3997 = vmatpush1.bf16.msra.mxu0 0
        %3998 = vmatprep.subr.bf16.mxu0 0
        %3999 = vmatpush1.bf16.msra.mxu0 0
        %4000 = vmatprep.subr.bf16.mxu0 0
        %4001 = vmatpush1.bf16.msra.mxu0 0
        %4002 = vmatprep.subr.bf16.mxu0 0
        %4003 = vmatpush1.bf16.msra.mxu0 0
        %4004 = vmatprep.subr.bf16.mxu0 0
        %4005 = vmatpush1.bf16.msra.mxu0 0
        %4006 = vmatprep.subr.bf16.mxu0 0
        %4007 = vmatpush1.bf16.msra.mxu0 0
        %4008 = vmatprep.subr.bf16.mxu0 0
        %4009 = vmatpush1.bf16.msra.mxu0 0
        %4010 = vmatprep.subr.bf16.mxu0 0
        %4011 = vmatpush1.bf16.msra.mxu0 0
        %4012 = vmatprep.mubr.bf16.mxu0 0
        %4013 = vmatmul.mubr.bf16.gmra.mrb[0].mxu0 %v3739
        %v4014 = vpop.f32.mrb[0].mxu0
        %v4015 = vadd.f32 %v3870, %v4014
        %v4016 = vpop.f32.mrb[0].mxu0
        %v4017 = vpop.f32.mrb[0].mxu0
        %v4018 = vadd.f32 %v3873, %v4017
        %v4019 = vpop.f32.mrb[0].mxu0
        %4020 = vmatprep.mubr.bf16.mxu0 0
        %4021 = vmatmul.mubr.bf16.gmra.mrb[0].mxu0 %v3740
        %v4022 = vpop.f32.mrb[0].mxu0
        %v4023 = vadd.f32 %v3878, %v4022
        %v4024 = vpop.f32.mrb[0].mxu0
        %v4025 = vpop.f32.mrb[0].mxu0
        %v4026 = vadd.f32 %v3881, %v4025
        %v4027 = vpop.f32.mrb[0].mxu0
        %4028 = vmatprep.mubr.bf16.mxu0 0
        %4029 = vmatmul.mubr.bf16.gmra.mrb[0].mxu0 %v3741
        %v4030 = vpop.f32.mrb[0].mxu0
        %v4031 = vadd.f32 %v3886, %v4030
        %v4032 = vpop.f32.mrb[0].mxu0
        %v4033 = vpop.f32.mrb[0].mxu0
        %v4034 = vadd.f32 %v3889, %v4033
        %v4035 = vpop.f32.mrb[0].mxu0
        %4036 = vmatprep.mubr.bf16.mxu0 0
        %4037 = vmatmul.mubr.bf16.gmra.mrb[0].mxu0 %v3742
        %v4038 = vpop.f32.mrb[0].mxu0
        %v4039 = vadd.f32 %v3894, %v4038
        %v4040 = vpop.f32.mrb[0].mxu0
        %v4041 = vpop.f32.mrb[0].mxu0
        %v4042 = vadd.f32 %v3897, %v4041
        %v4043 = vpop.f32.mrb[0].mxu0
        %4044 = vmatprep.mubr.bf16.mxu0 0
        %4045 = vmatmul.mubr.bf16.gmra.mrb[0].mxu0 %v3743
        %v4046 = vpop.f32.mrb[0].mxu0
        %v4047 = vadd.f32 %v3902, %v4046
        %v4048 = vpop.f32.mrb[0].mxu0
        %v4049 = vpop.f32.mrb[0].mxu0
        %v4050 = vadd.f32 %v3905, %v4049
        %v4051 = vpop.f32.mrb[0].mxu0
        %4052 = vmatprep.mubr.bf16.mxu0 0
        %4053 = vmatmul.mubr.bf16.gmra.mrb[0].mxu0 %v3744
        %v4054 = vpop.f32.mrb[0].mxu0
        %v4055 = vadd.f32 %v3910, %v4054
        %v4056 = vpop.f32.mrb[0].mxu0
        %v4057 = vpop.f32.mrb[0].mxu0
        %v4058 = vadd.f32 %v3913, %v4057
        %v4059 = vpop.f32.mrb[0].mxu0
        %4060 = vmatprep.mubr.bf16.mxu0 0
        %4061 = vmatmul.mubr.bf16.gmra.mrb[0].mxu0 %v3745
        %v4062 = vpop.f32.mrb[0].mxu0
        %v4063 = vadd.f32 %v3918, %v4062
        %v4064 = vpop.f32.mrb[0].mxu0
        %v4065 = vpop.f32.mrb[0].mxu0
        %v4066 = vadd.f32 %v3921, %v4065
        %v4067 = vpop.f32.mrb[0].mxu0
        %4068 = vmatprep.mubr.bf16.mxu0 0
        %4069 = vmatmul.mubr.bf16.gmra.mrb[0].mxu0 %v3746
        %v4070 = vpop.f32.mrb[0].mxu0
        %v4071 = vadd.f32 %v3926, %v4070
        %v4072 = vpop.f32.mrb[0].mxu0
        %v4073 = vpop.f32.mrb[0].mxu0
        %v4074 = vadd.f32 %v3929, %v4073
        %v4075 = vpop.f32.mrb[0].mxu0
        %4076 = vdwg.mxu0
        %v4077 = vpack.c.bf16 %v3628, %v3627
        %v4078 = vpack.c.bf16 %v3630, %v3629
        %v4079 = vpack.c.bf16 %v3632, %v3631
        %v4080 = vpack.c.bf16 %v3634, %v3633
        %v4081 = vpack.c.bf16 %v3636, %v3635
        %v4082 = vpack.c.bf16 %v3638, %v3637
        %v4083 = vpack.c.bf16 %v3640, %v3639
        %v4084 = vpack.c.bf16 %v3642, %v3641
        %v4085 = vld [vmem:[#allocation8 + $0x80] sm:$0xf]
        %v4086 = vld [vmem:[#allocation8 + $0x84] sm:$0xf]
        %v4087 = vld [vmem:[#allocation8 + $0x88] sm:$0xf]
        %v4088 = vld [vmem:[#allocation8 + $0x8c] sm:$0xf]
        %v4089 = vld [vmem:[#allocation8 + $0x90] sm:$0xf]
        %v4090 = vld [vmem:[#allocation8 + $0x94] sm:$0xf]
        %v4091 = vld [vmem:[#allocation8 + $0x98] sm:$0xf]
        %v4092 = vld [vmem:[#allocation8 + $0x9c] sm:$0xf]
        %v4093 = vld [vmem:[#allocation8 + $0xa0] sm:$0xf]
        %v4094 = vld [vmem:[#allocation8 + $0xa4] sm:$0xf]
        %v4095 = vld [vmem:[#allocation8 + $0xa8] sm:$0xf]
        %v4096 = vld [vmem:[#allocation8 + $0xac] sm:$0xf]
        %v4097 = vld [vmem:[#allocation8 + $0xb0] sm:$0xf]
        %v4098 = vld [vmem:[#allocation8 + $0xb4] sm:$0xf]
        %v4099 = vld [vmem:[#allocation8 + $0xb8] sm:$0xf]
        %v4100 = vld [vmem:[#allocation8 + $0xbc] sm:$0xf]
        %v4117 = vunpack.c.l.b16 %v4085
        %v4118 = vunpack.c.l.b16 %v4086
        %v4119 = vunpack.c.l.b16 %v4087
        %v4120 = vunpack.c.l.b16 %v4088
        %v4121 = vunpack.c.l.b16 %v4089
        %v4122 = vunpack.c.l.b16 %v4090
        %v4123 = vunpack.c.l.b16 %v4091
        %v4124 = vunpack.c.l.b16 %v4092
        %v4125 = vunpack.c.l.b16 %v4093
        %v4126 = vunpack.c.l.b16 %v4094
        %v4127 = vunpack.c.l.b16 %v4095
        %v4128 = vunpack.c.l.b16 %v4096
        %v4129 = vunpack.c.l.b16 %v4097
        %v4130 = vunpack.c.l.b16 %v4098
        %v4131 = vunpack.c.l.b16 %v4099
        %v4132 = vunpack.c.l.b16 %v4100
        %v4133 = vpack.c.b16 %v4118, %v4117
        %v4134 = vpack.c.b16 %v4120, %v4119
        %v4135 = vpack.c.b16 %v4122, %v4121
        %v4136 = vpack.c.b16 %v4124, %v4123
        %v4137 = vpack.c.b16 %v4126, %v4125
        %v4138 = vpack.c.b16 %v4128, %v4127
        %v4139 = vpack.c.b16 %v4130, %v4129
        %v4140 = vpack.c.b16 %v4132, %v4131
        %4149 = vmatprep.subr.bf16.mxu0 0
        %4150 = vmatpush1.bf16.msra.mxu0 %v4133
        %4151 = vmatprep.subr.bf16.mxu0 0
        %4152 = vmatpush1.bf16.msra.mxu0 %v4134
        %4153 = vmatprep.subr.bf16.mxu0 0
        %4154 = vmatpush1.bf16.msra.mxu0 %v4135
        %4155 = vmatprep.subr.bf16.mxu0 0
        %4156 = vmatpush1.bf16.msra.mxu0 %v4136
        %4157 = vmatprep.subr.bf16.mxu0 0
        %4158 = vmatpush1.bf16.msra.mxu0 %v4137
        %4159 = vmatprep.subr.bf16.mxu0 0
        %4160 = vmatpush1.bf16.msra.mxu0 %v4138
        %4161 = vmatprep.subr.bf16.mxu0 0
        %4162 = vmatpush1.bf16.msra.mxu0 %v4139
        %4163 = vmatprep.subr.bf16.mxu0 0
        %4164 = vmatpush1.bf16.msra.mxu0 %v4140
        %4165 = vmatprep.subr.bf16.mxu0 0
        %4166 = vmatpush1.bf16.msra.mxu0 0
        %4167 = vmatprep.subr.bf16.mxu0 0
        %4168 = vmatpush1.bf16.msra.mxu0 0
        %4169 = vmatprep.subr.bf16.mxu0 0
        %4170 = vmatpush1.bf16.msra.mxu0 0
        %4171 = vmatprep.subr.bf16.mxu0 0
        %4172 = vmatpush1.bf16.msra.mxu0 0
        %4173 = vmatprep.subr.bf16.mxu0 0
        %4174 = vmatpush1.bf16.msra.mxu0 0
        %4175 = vmatprep.subr.bf16.mxu0 0
        %4176 = vmatpush1.bf16.msra.mxu0 0
        %4177 = vmatprep.subr.bf16.mxu0 0
        %4178 = vmatpush1.bf16.msra.mxu0 0
        %4179 = vmatprep.subr.bf16.mxu0 0
        %4180 = vmatpush1.bf16.msra.mxu0 0
        %4181 = vmatprep.mubr.bf16.mxu0 0
        %4182 = vmatmul.mubr.bf16.gmra.mrb[0].mxu0 %v4077
        %v4183 = vpop.f32.mrb[0].mxu0
        %v4184 = vadd.f32 0.0, %v4183
        %v4185 = vpop.f32.mrb[0].mxu0
        %v4186 = vpop.f32.mrb[0].mxu0
        %v4187 = vadd.f32 0.0, %v4186
        %v4188 = vpop.f32.mrb[0].mxu0
        %4189 = vmatprep.mubr.bf16.mxu0 0
        %4190 = vmatmul.mubr.bf16.gmra.mrb[0].mxu0 %v4078
        %v4191 = vpop.f32.mrb[0].mxu0
        %v4192 = vadd.f32 0.0, %v4191
        %v4193 = vpop.f32.mrb[0].mxu0
        %v4194 = vpop.f32.mrb[0].mxu0
        %v4195 = vadd.f32 0.0, %v4194
        %v4196 = vpop.f32.mrb[0].mxu0
        %4197 = vmatprep.mubr.bf16.mxu0 0
        %4198 = vmatmul.mubr.bf16.gmra.mrb[0].mxu0 %v4079
        %v4199 = vpop.f32.mrb[0].mxu0
        %v4200 = vadd.f32 0.0, %v4199
        %v4201 = vpop.f32.mrb[0].mxu0
        %v4202 = vpop.f32.mrb[0].mxu0
        %v4203 = vadd.f32 0.0, %v4202
        %v4204 = vpop.f32.mrb[0].mxu0
        %4205 = vmatprep.mubr.bf16.mxu0 0
        %4206 = vmatmul.mubr.bf16.gmra.mrb[0].mxu0 %v4080
        %v4207 = vpop.f32.mrb[0].mxu0
        %v4208 = vadd.f32 0.0, %v4207
        %v4209 = vpop.f32.mrb[0].mxu0
        %v4210 = vpop.f32.mrb[0].mxu0
        %v4211 = vadd.f32 0.0, %v4210
        %v4212 = vpop.f32.mrb[0].mxu0
        %4213 = vmatprep.mubr.bf16.mxu0 0
        %4214 = vmatmul.mubr.bf16.gmra.mrb[0].mxu0 %v4081
        %v4215 = vpop.f32.mrb[0].mxu0
        %v4216 = vadd.f32 0.0, %v4215
        %v4217 = vpop.f32.mrb[0].mxu0
        %v4218 = vpop.f32.mrb[0].mxu0
        %v4219 = vadd.f32 0.0, %v4218
        %v4220 = vpop.f32.mrb[0].mxu0
        %4221 = vmatprep.mubr.bf16.mxu0 0
        %4222 = vmatmul.mubr.bf16.gmra.mrb[0].mxu0 %v4082
        %v4223 = vpop.f32.mrb[0].mxu0
        %v4224 = vadd.f32 0.0, %v4223
        %v4225 = vpop.f32.mrb[0].mxu0
        %v4226 = vpop.f32.mrb[0].mxu0
        %v4227 = vadd.f32 0.0, %v4226
        %v4228 = vpop.f32.mrb[0].mxu0
        %4229 = vmatprep.mubr.bf16.mxu0 0
        %4230 = vmatmul.mubr.bf16.gmra.mrb[0].mxu0 %v4083
        %v4231 = vpop.f32.mrb[0].mxu0
        %v4232 = vadd.f32 0.0, %v4231
        %v4233 = vpop.f32.mrb[0].mxu0
        %v4234 = vpop.f32.mrb[0].mxu0
        %v4235 = vadd.f32 0.0, %v4234
        %v4236 = vpop.f32.mrb[0].mxu0
        %4237 = vmatprep.mubr.bf16.mxu0 0
        %4238 = vmatmul.mubr.bf16.gmra.mrb[0].mxu0 %v4084
        %v4239 = vpop.f32.mrb[0].mxu0
        %v4240 = vadd.f32 0.0, %v4239
        %v4241 = vpop.f32.mrb[0].mxu0
        %v4242 = vpop.f32.mrb[0].mxu0
        %v4243 = vadd.f32 0.0, %v4242
        %v4244 = vpop.f32.mrb[0].mxu0
        %4245 = vdwg.mxu0
        %v4246 = vadd.f32 %v4015, %v4184
        %v4247 = vadd.f32 %v4018, %v4187
        %v4248 = vadd.f32 %v4023, %v4192
        %v4249 = vadd.f32 %v4026, %v4195
        %v4250 = vadd.f32 %v4031, %v4200
        %v4251 = vadd.f32 %v4034, %v4203
        %v4252 = vadd.f32 %v4039, %v4208
        %v4253 = vadd.f32 %v4042, %v4211
        %v4254 = vadd.f32 %v4047, %v4216
        %v4255 = vadd.f32 %v4050, %v4219
        %v4256 = vadd.f32 %v4055, %v4224
        %v4257 = vadd.f32 %v4058, %v4227
        %v4258 = vadd.f32 %v4063, %v4232
        %v4259 = vadd.f32 %v4066, %v4235
        %v4260 = vadd.f32 %v4071, %v4240
        %v4261 = vadd.f32 %v4074, %v4243
        %v4262 = vpack.c.bf16 %v3644, %v3643
        %v4263 = vpack.c.bf16 %v3646, %v3645
        %v4264 = vpack.c.bf16 %v3648, %v3647
        %v4265 = vpack.c.bf16 %v3650, %v3649
        %v4266 = vpack.c.bf16 %v3652, %v3651
        %v4267 = vpack.c.bf16 %v3654, %v3653
        %v4268 = vpack.c.bf16 %v3656, %v3655
        %v4269 = vpack.c.bf16 %v3658, %v3657
        %v4270 = vld [vmem:[#allocation8 + $0xc0] sm:$0xf]
        %v4271 = vld [vmem:[#allocation8 + $0xc4] sm:$0xf]
        %v4272 = vld [vmem:[#allocation8 + $0xc8] sm:$0xf]
        %v4273 = vld [vmem:[#allocation8 + $0xcc] sm:$0xf]
        %v4274 = vld [vmem:[#allocation8 + $0xd0] sm:$0xf]
        %v4275 = vld [vmem:[#allocation8 + $0xd4] sm:$0xf]
        %v4276 = vld [vmem:[#allocation8 + $0xd8] sm:$0xf]
        %v4277 = vld [vmem:[#allocation8 + $0xdc] sm:$0xf]
        %v4278 = vld [vmem:[#allocation8 + $0xe0] sm:$0xf]
        %v4279 = vld [vmem:[#allocation8 + $0xe4] sm:$0xf]
        %v4280 = vld [vmem:[#allocation8 + $0xe8] sm:$0xf]
        %v4281 = vld [vmem:[#allocation8 + $0xec] sm:$0xf]
        %v4282 = vld [vmem:[#allocation8 + $0xf0] sm:$0xf]
        %v4283 = vld [vmem:[#allocation8 + $0xf4] sm:$0xf]
        %v4284 = vld [vmem:[#allocation8 + $0xf8] sm:$0xf]
        %v4285 = vld [vmem:[#allocation8 + $0xfc] sm:$0xf]
        %v4302 = vunpack.c.l.b16 %v4270
        %v4303 = vunpack.c.l.b16 %v4271
        %v4304 = vunpack.c.l.b16 %v4272
        %v4305 = vunpack.c.l.b16 %v4273
        %v4306 = vunpack.c.l.b16 %v4274
        %v4307 = vunpack.c.l.b16 %v4275
        %v4308 = vunpack.c.l.b16 %v4276
        %v4309 = vunpack.c.l.b16 %v4277
        %v4310 = vunpack.c.l.b16 %v4278
        %v4311 = vunpack.c.l.b16 %v4279
        %v4312 = vunpack.c.l.b16 %v4280
        %v4313 = vunpack.c.l.b16 %v4281
        %v4314 = vunpack.c.l.b16 %v4282
        %v4315 = vunpack.c.l.b16 %v4283
        %v4316 = vunpack.c.l.b16 %v4284
        %v4317 = vunpack.c.l.b16 %v4285
        %v4318 = vpack.c.b16 %v4303, %v4302
        %v4319 = vpack.c.b16 %v4305, %v4304
        %v4320 = vpack.c.b16 %v4307, %v4306
        %v4321 = vpack.c.b16 %v4309, %v4308
        %v4322 = vpack.c.b16 %v4311, %v4310
        %v4323 = vpack.c.b16 %v4313, %v4312
        %v4324 = vpack.c.b16 %v4315, %v4314
        %v4325 = vpack.c.b16 %v4317, %v4316
        %4334 = vmatprep.subr.bf16.mxu0 0
        %4335 = vmatpush1.bf16.msra.mxu0 %v4318
        %4336 = vmatprep.subr.bf16.mxu0 0
        %4337 = vmatpush1.bf16.msra.mxu0 %v4319
        %4338 = vmatprep.subr.bf16.mxu0 0
        %4339 = vmatpush1.bf16.msra.mxu0 %v4320
        %4340 = vmatprep.subr.bf16.mxu0 0
        %4341 = vmatpush1.bf16.msra.mxu0 %v4321
        %4342 = vmatprep.subr.bf16.mxu0 0
        %4343 = vmatpush1.bf16.msra.mxu0 %v4322
        %4344 = vmatprep.subr.bf16.mxu0 0
        %4345 = vmatpush1.bf16.msra.mxu0 %v4323
        %4346 = vmatprep.subr.bf16.mxu0 0
        %4347 = vmatpush1.bf16.msra.mxu0 %v4324
        %4348 = vmatprep.subr.bf16.mxu0 0
        %4349 = vmatpush1.bf16.msra.mxu0 %v4325
        %4350 = vmatprep.subr.bf16.mxu0 0
        %4351 = vmatpush1.bf16.msra.mxu0 0
        %4352 = vmatprep.subr.bf16.mxu0 0
        %4353 = vmatpush1.bf16.msra.mxu0 0
        %4354 = vmatprep.subr.bf16.mxu0 0
        %4355 = vmatpush1.bf16.msra.mxu0 0
        %4356 = vmatprep.subr.bf16.mxu0 0
        %4357 = vmatpush1.bf16.msra.mxu0 0
        %4358 = vmatprep.subr.bf16.mxu0 0
        %4359 = vmatpush1.bf16.msra.mxu0 0
        %4360 = vmatprep.subr.bf16.mxu0 0
        %4361 = vmatpush1.bf16.msra.mxu0 0
        %4362 = vmatprep.subr.bf16.mxu0 0
        %4363 = vmatpush1.bf16.msra.mxu0 0
        %4364 = vmatprep.subr.bf16.mxu0 0
        %4365 = vmatpush1.bf16.msra.mxu0 0
        %4366 = vmatprep.mubr.bf16.mxu0 0
        %4367 = vmatmul.mubr.bf16.gmra.mrb[0].mxu0 %v4262
        %v4368 = vpop.f32.mrb[0].mxu0
        %v4369 = vadd.f32 0.0, %v4368
        %v4370 = vpop.f32.mrb[0].mxu0
        %v4371 = vpop.f32.mrb[0].mxu0
        %v4372 = vadd.f32 0.0, %v4371
        %v4373 = vpop.f32.mrb[0].mxu0
        %4374 = vmatprep.mubr.bf16.mxu0 0
        %4375 = vmatmul.mubr.bf16.gmra.mrb[0].mxu0 %v4263
        %v4376 = vpop.f32.mrb[0].mxu0
        %v4377 = vadd.f32 0.0, %v4376
        %v4378 = vpop.f32.mrb[0].mxu0
        %v4379 = vpop.f32.mrb[0].mxu0
        %v4380 = vadd.f32 0.0, %v4379
        %v4381 = vpop.f32.mrb[0].mxu0
        %4382 = vmatprep.mubr.bf16.mxu0 0
        %4383 = vmatmul.mubr.bf16.gmra.mrb[0].mxu0 %v4264
        %v4384 = vpop.f32.mrb[0].mxu0
        %v4385 = vadd.f32 0.0, %v4384
        %v4386 = vpop.f32.mrb[0].mxu0
        %v4387 = vpop.f32.mrb[0].mxu0
        %v4388 = vadd.f32 0.0, %v4387
        %v4389 = vpop.f32.mrb[0].mxu0
        %4390 = vmatprep.mubr.bf16.mxu0 0
        %4391 = vmatmul.mubr.bf16.gmra.mrb[0].mxu0 %v4265
        %v4392 = vpop.f32.mrb[0].mxu0
        %v4393 = vadd.f32 0.0, %v4392
        %v4394 = vpop.f32.mrb[0].mxu0
        %v4395 = vpop.f32.mrb[0].mxu0
        %v4396 = vadd.f32 0.0, %v4395
        %v4397 = vpop.f32.mrb[0].mxu0
        %4398 = vmatprep.mubr.bf16.mxu0 0
        %4399 = vmatmul.mubr.bf16.gmra.mrb[0].mxu0 %v4266
        %v4400 = vpop.f32.mrb[0].mxu0
        %v4401 = vadd.f32 0.0, %v4400
        %v4402 = vpop.f32.mrb[0].mxu0
        %v4403 = vpop.f32.mrb[0].mxu0
        %v4404 = vadd.f32 0.0, %v4403
        %v4405 = vpop.f32.mrb[0].mxu0
        %4406 = vmatprep.mubr.bf16.mxu0 0
        %4407 = vmatmul.mubr.bf16.gmra.mrb[0].mxu0 %v4267
        %v4408 = vpop.f32.mrb[0].mxu0
        %v4409 = vadd.f32 0.0, %v4408
        %v4410 = vpop.f32.mrb[0].mxu0
        %v4411 = vpop.f32.mrb[0].mxu0
        %v4412 = vadd.f32 0.0, %v4411
        %v4413 = vpop.f32.mrb[0].mxu0
        %4414 = vmatprep.mubr.bf16.mxu0 0
        %4415 = vmatmul.mubr.bf16.gmra.mrb[0].mxu0 %v4268
        %v4416 = vpop.f32.mrb[0].mxu0
        %v4417 = vadd.f32 0.0, %v4416
        %v4418 = vpop.f32.mrb[0].mxu0
        %v4419 = vpop.f32.mrb[0].mxu0
        %v4420 = vadd.f32 0.0, %v4419
        %v4421 = vpop.f32.mrb[0].mxu0
        %4422 = vmatprep.mubr.bf16.mxu0 0
        %4423 = vmatmul.mubr.bf16.gmra.mrb[0].mxu0 %v4269
        %v4424 = vpop.f32.mrb[0].mxu0
        %v4425 = vadd.f32 0.0, %v4424
        %v4426 = vpop.f32.mrb[0].mxu0
        %v4427 = vpop.f32.mrb[0].mxu0
        %v4428 = vadd.f32 0.0, %v4427
        %v4429 = vpop.f32.mrb[0].mxu0
        %4430 = vdwg.mxu0
        %v4431 = vadd.f32 %v4246, %v4369
        %v4432 = vadd.f32 %v4247, %v4372
        %v4433 = vadd.f32 %v4248, %v4377
        %v4434 = vadd.f32 %v4249, %v4380
        %v4435 = vadd.f32 %v4250, %v4385
        %v4436 = vadd.f32 %v4251, %v4388
        %v4437 = vadd.f32 %v4252, %v4393
        %v4438 = vadd.f32 %v4253, %v4396
        %v4439 = vadd.f32 %v4254, %v4401
        %v4440 = vadd.f32 %v4255, %v4404
        %v4441 = vadd.f32 %v4256, %v4409
        %v4442 = vadd.f32 %v4257, %v4412
        %v4443 = vadd.f32 %v4258, %v4417
        %v4444 = vadd.f32 %v4259, %v4420
        %v4445 = vadd.f32 %v4260, %v4425
        %v4446 = vadd.f32 %v4261, %v4428
        %v4447 = vpack.c.bf16 %v3660, %v3659
        %v4448 = vpack.c.bf16 %v3662, %v3661
        %v4449 = vpack.c.bf16 %v3664, %v3663
        %v4450 = vpack.c.bf16 %v3666, %v3665
        %v4451 = vpack.c.bf16 %v3668, %v3667
        %v4452 = vpack.c.bf16 %v3670, %v3669
        %v4453 = vpack.c.bf16 %v3672, %v3671
        %v4454 = vpack.c.bf16 %v3674, %v3673
        %v4455 = vld [vmem:[#allocation8 + $0x100] sm:$0xf]
        %v4456 = vld [vmem:[#allocation8 + $0x104] sm:$0xf]
        %v4457 = vld [vmem:[#allocation8 + $0x108] sm:$0xf]
        %v4458 = vld [vmem:[#allocation8 + $0x10c] sm:$0xf]
        %v4459 = vld [vmem:[#allocation8 + $0x110] sm:$0xf]
        %v4460 = vld [vmem:[#allocation8 + $0x114] sm:$0xf]
        %v4461 = vld [vmem:[#allocation8 + $0x118] sm:$0xf]
        %v4462 = vld [vmem:[#allocation8 + $0x11c] sm:$0xf]
        %v4463 = vld [vmem:[#allocation8 + $0x120] sm:$0xf]
        %v4464 = vld [vmem:[#allocation8 + $0x124] sm:$0xf]
        %v4465 = vld [vmem:[#allocation8 + $0x128] sm:$0xf]
        %v4466 = vld [vmem:[#allocation8 + $0x12c] sm:$0xf]
        %v4467 = vld [vmem:[#allocation8 + $0x130] sm:$0xf]
        %v4468 = vld [vmem:[#allocation8 + $0x134] sm:$0xf]
        %v4469 = vld [vmem:[#allocation8 + $0x138] sm:$0xf]
        %v4470 = vld [vmem:[#allocation8 + $0x13c] sm:$0xf]
        %v4487 = vunpack.c.l.b16 %v4455
        %v4488 = vunpack.c.l.b16 %v4456
        %v4489 = vunpack.c.l.b16 %v4457
        %v4490 = vunpack.c.l.b16 %v4458
        %v4491 = vunpack.c.l.b16 %v4459
        %v4492 = vunpack.c.l.b16 %v4460
        %v4493 = vunpack.c.l.b16 %v4461
        %v4494 = vunpack.c.l.b16 %v4462
        %v4495 = vunpack.c.l.b16 %v4463
        %v4496 = vunpack.c.l.b16 %v4464
        %v4497 = vunpack.c.l.b16 %v4465
        %v4498 = vunpack.c.l.b16 %v4466
        %v4499 = vunpack.c.l.b16 %v4467
        %v4500 = vunpack.c.l.b16 %v4468
        %v4501 = vunpack.c.l.b16 %v4469
        %v4502 = vunpack.c.l.b16 %v4470
        %v4503 = vpack.c.b16 %v4488, %v4487
        %v4504 = vpack.c.b16 %v4490, %v4489
        %v4505 = vpack.c.b16 %v4492, %v4491
        %v4506 = vpack.c.b16 %v4494, %v4493
        %v4507 = vpack.c.b16 %v4496, %v4495
        %v4508 = vpack.c.b16 %v4498, %v4497
        %v4509 = vpack.c.b16 %v4500, %v4499
        %v4510 = vpack.c.b16 %v4502, %v4501
        %4519 = vmatprep.subr.bf16.mxu0 0
        %4520 = vmatpush1.bf16.msra.mxu0 %v4503
        %4521 = vmatprep.subr.bf16.mxu0 0
        %4522 = vmatpush1.bf16.msra.mxu0 %v4504
        %4523 = vmatprep.subr.bf16.mxu0 0
        %4524 = vmatpush1.bf16.msra.mxu0 %v4505
        %4525 = vmatprep.subr.bf16.mxu0 0
        %4526 = vmatpush1.bf16.msra.mxu0 %v4506
        %4527 = vmatprep.subr.bf16.mxu0 0
        %4528 = vmatpush1.bf16.msra.mxu0 %v4507
        %4529 = vmatprep.subr.bf16.mxu0 0
        %4530 = vmatpush1.bf16.msra.mxu0 %v4508
        %4531 = vmatprep.subr.bf16.mxu0 0
        %4532 = vmatpush1.bf16.msra.mxu0 %v4509
        %4533 = vmatprep.subr.bf16.mxu0 0
        %4534 = vmatpush1.bf16.msra.mxu0 %v4510
        %4535 = vmatprep.subr.bf16.mxu0 0
        %4536 = vmatpush1.bf16.msra.mxu0 0
        %4537 = vmatprep.subr.bf16.mxu0 0
        %4538 = vmatpush1.bf16.msra.mxu0 0
        %4539 = vmatprep.subr.bf16.mxu0 0
        %4540 = vmatpush1.bf16.msra.mxu0 0
        %4541 = vmatprep.subr.bf16.mxu0 0
        %4542 = vmatpush1.bf16.msra.mxu0 0
        %4543 = vmatprep.subr.bf16.mxu0 0
        %4544 = vmatpush1.bf16.msra.mxu0 0
        %4545 = vmatprep.subr.bf16.mxu0 0
        %4546 = vmatpush1.bf16.msra.mxu0 0
        %4547 = vmatprep.subr.bf16.mxu0 0
        %4548 = vmatpush1.bf16.msra.mxu0 0
        %4549 = vmatprep.subr.bf16.mxu0 0
        %4550 = vmatpush1.bf16.msra.mxu0 0
        %4551 = vmatprep.mubr.bf16.mxu0 0
        %4552 = vmatmul.mubr.bf16.gmra.mrb[0].mxu0 %v4447
        %v4553 = vpop.f32.mrb[0].mxu0
        %v4554 = vadd.f32 0.0, %v4553
        %v4555 = vpop.f32.mrb[0].mxu0
        %v4556 = vpop.f32.mrb[0].mxu0
        %v4557 = vadd.f32 0.0, %v4556
        %v4558 = vpop.f32.mrb[0].mxu0
        %4559 = vmatprep.mubr.bf16.mxu0 0
        %4560 = vmatmul.mubr.bf16.gmra.mrb[0].mxu0 %v4448
        %v4561 = vpop.f32.mrb[0].mxu0
        %v4562 = vadd.f32 0.0, %v4561
        %v4563 = vpop.f32.mrb[0].mxu0
        %v4564 = vpop.f32.mrb[0].mxu0
        %v4565 = vadd.f32 0.0, %v4564
        %v4566 = vpop.f32.mrb[0].mxu0
        %4567 = vmatprep.mubr.bf16.mxu0 0
        %4568 = vmatmul.mubr.bf16.gmra.mrb[0].mxu0 %v4449
        %v4569 = vpop.f32.mrb[0].mxu0
        %v4570 = vadd.f32 0.0, %v4569
        %v4571 = vpop.f32.mrb[0].mxu0
        %v4572 = vpop.f32.mrb[0].mxu0
        %v4573 = vadd.f32 0.0, %v4572
        %v4574 = vpop.f32.mrb[0].mxu0
        %4575 = vmatprep.mubr.bf16.mxu0 0
        %4576 = vmatmul.mubr.bf16.gmra.mrb[0].mxu0 %v4450
        %v4577 = vpop.f32.mrb[0].mxu0
        %v4578 = vadd.f32 0.0, %v4577
        %v4579 = vpop.f32.mrb[0].mxu0
        %v4580 = vpop.f32.mrb[0].mxu0
        %v4581 = vadd.f32 0.0, %v4580
        %v4582 = vpop.f32.mrb[0].mxu0
        %4583 = vmatprep.mubr.bf16.mxu0 0
        %4584 = vmatmul.mubr.bf16.gmra.mrb[0].mxu0 %v4451
        %v4585 = vpop.f32.mrb[0].mxu0
        %v4586 = vadd.f32 0.0, %v4585
        %v4587 = vpop.f32.mrb[0].mxu0
        %v4588 = vpop.f32.mrb[0].mxu0
        %v4589 = vadd.f32 0.0, %v4588
        %v4590 = vpop.f32.mrb[0].mxu0
        %4591 = vmatprep.mubr.bf16.mxu0 0
        %4592 = vmatmul.mubr.bf16.gmra.mrb[0].mxu0 %v4452
        %v4593 = vpop.f32.mrb[0].mxu0
        %v4594 = vadd.f32 0.0, %v4593
        %v4595 = vpop.f32.mrb[0].mxu0
        %v4596 = vpop.f32.mrb[0].mxu0
        %v4597 = vadd.f32 0.0, %v4596
        %v4598 = vpop.f32.mrb[0].mxu0
        %4599 = vmatprep.mubr.bf16.mxu0 0
        %4600 = vmatmul.mubr.bf16.gmra.mrb[0].mxu0 %v4453
        %v4601 = vpop.f32.mrb[0].mxu0
        %v4602 = vadd.f32 0.0, %v4601
        %v4603 = vpop.f32.mrb[0].mxu0
        %v4604 = vpop.f32.mrb[0].mxu0
        %v4605 = vadd.f32 0.0, %v4604
        %v4606 = vpop.f32.mrb[0].mxu0
        %4607 = vmatprep.mubr.bf16.mxu0 0
        %4608 = vmatmul.mubr.bf16.gmra.mrb[0].mxu0 %v4454
        %v4609 = vpop.f32.mrb[0].mxu0
        %v4610 = vadd.f32 0.0, %v4609
        %v4611 = vpop.f32.mrb[0].mxu0
        %v4612 = vpop.f32.mrb[0].mxu0
        %v4613 = vadd.f32 0.0, %v4612
        %v4614 = vpop.f32.mrb[0].mxu0
        %4615 = vdwg.mxu0
        %v4616 = vadd.f32 %v4431, %v4554
        %v4617 = vadd.f32 %v4432, %v4557
        %v4618 = vadd.f32 %v4433, %v4562
        %v4619 = vadd.f32 %v4434, %v4565
        %v4620 = vadd.f32 %v4435, %v4570
        %v4621 = vadd.f32 %v4436, %v4573
        %v4622 = vadd.f32 %v4437, %v4578
        %v4623 = vadd.f32 %v4438, %v4581
        %v4624 = vadd.f32 %v4439, %v4586
        %v4625 = vadd.f32 %v4440, %v4589
        %v4626 = vadd.f32 %v4441, %v4594
        %v4627 = vadd.f32 %v4442, %v4597
        %v4628 = vadd.f32 %v4443, %v4602
        %v4629 = vadd.f32 %v4444, %v4605
        %v4630 = vadd.f32 %v4445, %v4610
        %v4631 = vadd.f32 %v4446, %v4613
        %v4632 = vpack.c.bf16 %v3676, %v3675
        %v4633 = vpack.c.bf16 %v3678, %v3677
        %v4634 = vpack.c.bf16 %v3680, %v3679
        %v4635 = vpack.c.bf16 %v3682, %v3681
        %v4636 = vpack.c.bf16 %v3684, %v3683
        %v4637 = vpack.c.bf16 %v3686, %v3685
        %v4638 = vpack.c.bf16 %v3688, %v3687
        %v4639 = vpack.c.bf16 %v3690, %v3689
        %v4640 = vld [vmem:[#allocation8 + $0x140] sm:$0xf]
        %v4641 = vld [vmem:[#allocation8 + $0x144] sm:$0xf]
        %v4642 = vld [vmem:[#allocation8 + $0x148] sm:$0xf]
        %v4643 = vld [vmem:[#allocation8 + $0x14c] sm:$0xf]
        %v4644 = vld [vmem:[#allocation8 + $0x150] sm:$0xf]
        %v4645 = vld [vmem:[#allocation8 + $0x154] sm:$0xf]
        %v4646 = vld [vmem:[#allocation8 + $0x158] sm:$0xf]
        %v4647 = vld [vmem:[#allocation8 + $0x15c] sm:$0xf]
        %v4648 = vld [vmem:[#allocation8 + $0x160] sm:$0xf]
        %v4649 = vld [vmem:[#allocation8 + $0x164] sm:$0xf]
        %v4650 = vld [vmem:[#allocation8 + $0x168] sm:$0xf]
        %v4651 = vld [vmem:[#allocation8 + $0x16c] sm:$0xf]
        %v4652 = vld [vmem:[#allocation8 + $0x170] sm:$0xf]
        %v4653 = vld [vmem:[#allocation8 + $0x174] sm:$0xf]
        %v4654 = vld [vmem:[#allocation8 + $0x178] sm:$0xf]
        %v4655 = vld [vmem:[#allocation8 + $0x17c] sm:$0xf]
        %v4672 = vunpack.c.l.b16 %v4640
        %v4673 = vunpack.c.l.b16 %v4641
        %v4674 = vunpack.c.l.b16 %v4642
        %v4675 = vunpack.c.l.b16 %v4643
        %v4676 = vunpack.c.l.b16 %v4644
        %v4677 = vunpack.c.l.b16 %v4645
        %v4678 = vunpack.c.l.b16 %v4646
        %v4679 = vunpack.c.l.b16 %v4647
        %v4680 = vunpack.c.l.b16 %v4648
        %v4681 = vunpack.c.l.b16 %v4649
        %v4682 = vunpack.c.l.b16 %v4650
        %v4683 = vunpack.c.l.b16 %v4651
        %v4684 = vunpack.c.l.b16 %v4652
        %v4685 = vunpack.c.l.b16 %v4653
        %v4686 = vunpack.c.l.b16 %v4654
        %v4687 = vunpack.c.l.b16 %v4655
        %v4688 = vpack.c.b16 %v4673, %v4672
        %v4689 = vpack.c.b16 %v4675, %v4674
        %v4690 = vpack.c.b16 %v4677, %v4676
        %v4691 = vpack.c.b16 %v4679, %v4678
        %v4692 = vpack.c.b16 %v4681, %v4680
        %v4693 = vpack.c.b16 %v4683, %v4682
        %v4694 = vpack.c.b16 %v4685, %v4684
        %v4695 = vpack.c.b16 %v4687, %v4686
        %4704 = vmatprep.subr.bf16.mxu0 0
        %4705 = vmatpush1.bf16.msra.mxu0 %v4688
        %4706 = vmatprep.subr.bf16.mxu0 0
        %4707 = vmatpush1.bf16.msra.mxu0 %v4689
        %4708 = vmatprep.subr.bf16.mxu0 0
        %4709 = vmatpush1.bf16.msra.mxu0 %v4690
        %4710 = vmatprep.subr.bf16.mxu0 0
        %4711 = vmatpush1.bf16.msra.mxu0 %v4691
        %4712 = vmatprep.subr.bf16.mxu0 0
        %4713 = vmatpush1.bf16.msra.mxu0 %v4692
        %4714 = vmatprep.subr.bf16.mxu0 0
        %4715 = vmatpush1.bf16.msra.mxu0 %v4693
        %4716 = vmatprep.subr.bf16.mxu0 0
        %4717 = vmatpush1.bf16.msra.mxu0 %v4694
        %4718 = vmatprep.subr.bf16.mxu0 0
        %4719 = vmatpush1.bf16.msra.mxu0 %v4695
        %4720 = vmatprep.subr.bf16.mxu0 0
        %4721 = vmatpush1.bf16.msra.mxu0 0
        %4722 = vmatprep.subr.bf16.mxu0 0
        %4723 = vmatpush1.bf16.msra.mxu0 0
        %4724 = vmatprep.subr.bf16.mxu0 0
        %4725 = vmatpush1.bf16.msra.mxu0 0
        %4726 = vmatprep.subr.bf16.mxu0 0
        %4727 = vmatpush1.bf16.msra.mxu0 0
        %4728 = vmatprep.subr.bf16.mxu0 0
        %4729 = vmatpush1.bf16.msra.mxu0 0
        %4730 = vmatprep.subr.bf16.mxu0 0
        %4731 = vmatpush1.bf16.msra.mxu0 0
        %4732 = vmatprep.subr.bf16.mxu0 0
        %4733 = vmatpush1.bf16.msra.mxu0 0
        %4734 = vmatprep.subr.bf16.mxu0 0
        %4735 = vmatpush1.bf16.msra.mxu0 0
        %4736 = vmatprep.mubr.bf16.mxu0 0
        %4737 = vmatmul.mubr.bf16.gmra.mrb[0].mxu0 %v4632
        %v4738 = vpop.f32.mrb[0].mxu0
        %v4739 = vadd.f32 0.0, %v4738
        %v4740 = vpop.f32.mrb[0].mxu0
        %v4741 = vpop.f32.mrb[0].mxu0
        %v4742 = vadd.f32 0.0, %v4741
        %v4743 = vpop.f32.mrb[0].mxu0
        %4744 = vmatprep.mubr.bf16.mxu0 0
        %4745 = vmatmul.mubr.bf16.gmra.mrb[0].mxu0 %v4633
        %v4746 = vpop.f32.mrb[0].mxu0
        %v4747 = vadd.f32 0.0, %v4746
        %v4748 = vpop.f32.mrb[0].mxu0
        %v4749 = vpop.f32.mrb[0].mxu0
        %v4750 = vadd.f32 0.0, %v4749
        %v4751 = vpop.f32.mrb[0].mxu0
        %4752 = vmatprep.mubr.bf16.mxu0 0
        %4753 = vmatmul.mubr.bf16.gmra.mrb[0].mxu0 %v4634
        %v4754 = vpop.f32.mrb[0].mxu0
        %v4755 = vadd.f32 0.0, %v4754
        %v4756 = vpop.f32.mrb[0].mxu0
        %v4757 = vpop.f32.mrb[0].mxu0
        %v4758 = vadd.f32 0.0, %v4757
        %v4759 = vpop.f32.mrb[0].mxu0
        %4760 = vmatprep.mubr.bf16.mxu0 0
        %4761 = vmatmul.mubr.bf16.gmra.mrb[0].mxu0 %v4635
        %v4762 = vpop.f32.mrb[0].mxu0
        %v4763 = vadd.f32 0.0, %v4762
        %v4764 = vpop.f32.mrb[0].mxu0
        %v4765 = vpop.f32.mrb[0].mxu0
        %v4766 = vadd.f32 0.0, %v4765
        %v4767 = vpop.f32.mrb[0].mxu0
        %4768 = vmatprep.mubr.bf16.mxu0 0
        %4769 = vmatmul.mubr.bf16.gmra.mrb[0].mxu0 %v4636
        %v4770 = vpop.f32.mrb[0].mxu0
        %v4771 = vadd.f32 0.0, %v4770
        %v4772 = vpop.f32.mrb[0].mxu0
        %v4773 = vpop.f32.mrb[0].mxu0
        %v4774 = vadd.f32 0.0, %v4773
        %v4775 = vpop.f32.mrb[0].mxu0
        %4776 = vmatprep.mubr.bf16.mxu0 0
        %4777 = vmatmul.mubr.bf16.gmra.mrb[0].mxu0 %v4637
        %v4778 = vpop.f32.mrb[0].mxu0
        %v4779 = vadd.f32 0.0, %v4778
        %v4780 = vpop.f32.mrb[0].mxu0
        %v4781 = vpop.f32.mrb[0].mxu0
        %v4782 = vadd.f32 0.0, %v4781
        %v4783 = vpop.f32.mrb[0].mxu0
        %4784 = vmatprep.mubr.bf16.mxu0 0
        %4785 = vmatmul.mubr.bf16.gmra.mrb[0].mxu0 %v4638
        %v4786 = vpop.f32.mrb[0].mxu0
        %v4787 = vadd.f32 0.0, %v4786
        %v4788 = vpop.f32.mrb[0].mxu0
        %v4789 = vpop.f32.mrb[0].mxu0
        %v4790 = vadd.f32 0.0, %v4789
        %v4791 = vpop.f32.mrb[0].mxu0
        %4792 = vmatprep.mubr.bf16.mxu0 0
        %4793 = vmatmul.mubr.bf16.gmra.mrb[0].mxu0 %v4639
        %v4794 = vpop.f32.mrb[0].mxu0
        %v4795 = vadd.f32 0.0, %v4794
        %v4796 = vpop.f32.mrb[0].mxu0
        %v4797 = vpop.f32.mrb[0].mxu0
        %v4798 = vadd.f32 0.0, %v4797
        %v4799 = vpop.f32.mrb[0].mxu0
        %4800 = vdwg.mxu0
        %v4801 = vadd.f32 %v4616, %v4739
        %v4802 = vadd.f32 %v4617, %v4742
        %v4803 = vadd.f32 %v4618, %v4747
        %v4804 = vadd.f32 %v4619, %v4750
        %v4805 = vadd.f32 %v4620, %v4755
        %v4806 = vadd.f32 %v4621, %v4758
        %v4807 = vadd.f32 %v4622, %v4763
        %v4808 = vadd.f32 %v4623, %v4766
        %v4809 = vadd.f32 %v4624, %v4771
        %v4810 = vadd.f32 %v4625, %v4774
        %v4811 = vadd.f32 %v4626, %v4779
        %v4812 = vadd.f32 %v4627, %v4782
        %v4813 = vadd.f32 %v4628, %v4787
        %v4814 = vadd.f32 %v4629, %v4790
        %v4815 = vadd.f32 %v4630, %v4795
        %v4816 = vadd.f32 %v4631, %v4798
        %v4817 = vpack.c.bf16 %v3692, %v3691
        %v4818 = vpack.c.bf16 %v3694, %v3693
        %v4819 = vpack.c.bf16 %v3696, %v3695
        %v4820 = vpack.c.bf16 %v3698, %v3697
        %v4821 = vpack.c.bf16 %v3700, %v3699
        %v4822 = vpack.c.bf16 %v3702, %v3701
        %v4823 = vpack.c.bf16 %v3704, %v3703
        %v4824 = vpack.c.bf16 %v3706, %v3705
        %v4825 = vld [vmem:[#allocation8 + $0x180] sm:$0xf]
        %v4826 = vld [vmem:[#allocation8 + $0x184] sm:$0xf]
        %v4827 = vld [vmem:[#allocation8 + $0x188] sm:$0xf]
        %v4828 = vld [vmem:[#allocation8 + $0x18c] sm:$0xf]
        %v4829 = vld [vmem:[#allocation8 + $0x190] sm:$0xf]
        %v4830 = vld [vmem:[#allocation8 + $0x194] sm:$0xf]
        %v4831 = vld [vmem:[#allocation8 + $0x198] sm:$0xf]
        %v4832 = vld [vmem:[#allocation8 + $0x19c] sm:$0xf]
        %v4833 = vld [vmem:[#allocation8 + $0x1a0] sm:$0xf]
        %v4834 = vld [vmem:[#allocation8 + $0x1a4] sm:$0xf]
        %v4835 = vld [vmem:[#allocation8 + $0x1a8] sm:$0xf]
        %v4836 = vld [vmem:[#allocation8 + $0x1ac] sm:$0xf]
        %v4837 = vld [vmem:[#allocation8 + $0x1b0] sm:$0xf]
        %v4838 = vld [vmem:[#allocation8 + $0x1b4] sm:$0xf]
        %v4839 = vld [vmem:[#allocation8 + $0x1b8] sm:$0xf]
        %v4840 = vld [vmem:[#allocation8 + $0x1bc] sm:$0xf]
        %v4857 = vunpack.c.l.b16 %v4825
        %v4858 = vunpack.c.l.b16 %v4826
        %v4859 = vunpack.c.l.b16 %v4827
        %v4860 = vunpack.c.l.b16 %v4828
        %v4861 = vunpack.c.l.b16 %v4829
        %v4862 = vunpack.c.l.b16 %v4830
        %v4863 = vunpack.c.l.b16 %v4831
        %v4864 = vunpack.c.l.b16 %v4832
        %v4865 = vunpack.c.l.b16 %v4833
        %v4866 = vunpack.c.l.b16 %v4834
        %v4867 = vunpack.c.l.b16 %v4835
        %v4868 = vunpack.c.l.b16 %v4836
        %v4869 = vunpack.c.l.b16 %v4837
        %v4870 = vunpack.c.l.b16 %v4838
        %v4871 = vunpack.c.l.b16 %v4839
        %v4872 = vunpack.c.l.b16 %v4840
        %v4873 = vpack.c.b16 %v4858, %v4857
        %v4874 = vpack.c.b16 %v4860, %v4859
        %v4875 = vpack.c.b16 %v4862, %v4861
        %v4876 = vpack.c.b16 %v4864, %v4863
        %v4877 = vpack.c.b16 %v4866, %v4865
        %v4878 = vpack.c.b16 %v4868, %v4867
        %v4879 = vpack.c.b16 %v4870, %v4869
        %v4880 = vpack.c.b16 %v4872, %v4871
        %4889 = vmatprep.subr.bf16.mxu0 0
        %4890 = vmatpush1.bf16.msra.mxu0 %v4873
        %4891 = vmatprep.subr.bf16.mxu0 0
        %4892 = vmatpush1.bf16.msra.mxu0 %v4874
        %4893 = vmatprep.subr.bf16.mxu0 0
        %4894 = vmatpush1.bf16.msra.mxu0 %v4875
        %4895 = vmatprep.subr.bf16.mxu0 0
        %4896 = vmatpush1.bf16.msra.mxu0 %v4876
        %4897 = vmatprep.subr.bf16.mxu0 0
        %4898 = vmatpush1.bf16.msra.mxu0 %v4877
        %4899 = vmatprep.subr.bf16.mxu0 0
        %4900 = vmatpush1.bf16.msra.mxu0 %v4878
        %4901 = vmatprep.subr.bf16.mxu0 0
        %4902 = vmatpush1.bf16.msra.mxu0 %v4879
        %4903 = vmatprep.subr.bf16.mxu0 0
        %4904 = vmatpush1.bf16.msra.mxu0 %v4880
        %4905 = vmatprep.subr.bf16.mxu0 0
        %4906 = vmatpush1.bf16.msra.mxu0 0
        %4907 = vmatprep.subr.bf16.mxu0 0
        %4908 = vmatpush1.bf16.msra.mxu0 0
        %4909 = vmatprep.subr.bf16.mxu0 0
        %4910 = vmatpush1.bf16.msra.mxu0 0
        %4911 = vmatprep.subr.bf16.mxu0 0
        %4912 = vmatpush1.bf16.msra.mxu0 0
        %4913 = vmatprep.subr.bf16.mxu0 0
        %4914 = vmatpush1.bf16.msra.mxu0 0
        %4915 = vmatprep.subr.bf16.mxu0 0
        %4916 = vmatpush1.bf16.msra.mxu0 0
        %4917 = vmatprep.subr.bf16.mxu0 0
        %4918 = vmatpush1.bf16.msra.mxu0 0
        %4919 = vmatprep.subr.bf16.mxu0 0
        %4920 = vmatpush1.bf16.msra.mxu0 0
        %4921 = vmatprep.mubr.bf16.mxu0 0
        %4922 = vmatmul.mubr.bf16.gmra.mrb[0].mxu0 %v4817
        %v4923 = vpop.f32.mrb[0].mxu0
        %v4924 = vadd.f32 0.0, %v4923
        %v4925 = vpop.f32.mrb[0].mxu0
        %v4926 = vpop.f32.mrb[0].mxu0
        %v4927 = vadd.f32 0.0, %v4926
        %v4928 = vpop.f32.mrb[0].mxu0
        %4929 = vmatprep.mubr.bf16.mxu0 0
        %4930 = vmatmul.mubr.bf16.gmra.mrb[0].mxu0 %v4818
        %v4931 = vpop.f32.mrb[0].mxu0
        %v4932 = vadd.f32 0.0, %v4931
        %v4933 = vpop.f32.mrb[0].mxu0
        %v4934 = vpop.f32.mrb[0].mxu0
        %v4935 = vadd.f32 0.0, %v4934
        %v4936 = vpop.f32.mrb[0].mxu0
        %4937 = vmatprep.mubr.bf16.mxu0 0
        %4938 = vmatmul.mubr.bf16.gmra.mrb[0].mxu0 %v4819
        %v4939 = vpop.f32.mrb[0].mxu0
        %v4940 = vadd.f32 0.0, %v4939
        %v4941 = vpop.f32.mrb[0].mxu0
        %v4942 = vpop.f32.mrb[0].mxu0
        %v4943 = vadd.f32 0.0, %v4942
        %v4944 = vpop.f32.mrb[0].mxu0
        %4945 = vmatprep.mubr.bf16.mxu0 0
        %4946 = vmatmul.mubr.bf16.gmra.mrb[0].mxu0 %v4820
        %v4947 = vpop.f32.mrb[0].mxu0
        %v4948 = vadd.f32 0.0, %v4947
        %v4949 = vpop.f32.mrb[0].mxu0
        %v4950 = vpop.f32.mrb[0].mxu0
        %v4951 = vadd.f32 0.0, %v4950
        %v4952 = vpop.f32.mrb[0].mxu0
        %4953 = vmatprep.mubr.bf16.mxu0 0
        %4954 = vmatmul.mubr.bf16.gmra.mrb[0].mxu0 %v4821
        %v4955 = vpop.f32.mrb[0].mxu0
        %v4956 = vadd.f32 0.0, %v4955
        %v4957 = vpop.f32.mrb[0].mxu0
        %v4958 = vpop.f32.mrb[0].mxu0
        %v4959 = vadd.f32 0.0, %v4958
        %v4960 = vpop.f32.mrb[0].mxu0
        %4961 = vmatprep.mubr.bf16.mxu0 0
        %4962 = vmatmul.mubr.bf16.gmra.mrb[0].mxu0 %v4822
        %v4963 = vpop.f32.mrb[0].mxu0
        %v4964 = vadd.f32 0.0, %v4963
        %v4965 = vpop.f32.mrb[0].mxu0
        %v4966 = vpop.f32.mrb[0].mxu0
        %v4967 = vadd.f32 0.0, %v4966
        %v4968 = vpop.f32.mrb[0].mxu0
        %4969 = vmatprep.mubr.bf16.mxu0 0
        %4970 = vmatmul.mubr.bf16.gmra.mrb[0].mxu0 %v4823
        %v4971 = vpop.f32.mrb[0].mxu0
        %v4972 = vadd.f32 0.0, %v4971
        %v4973 = vpop.f32.mrb[0].mxu0
        %v4974 = vpop.f32.mrb[0].mxu0
        %v4975 = vadd.f32 0.0, %v4974
        %v4976 = vpop.f32.mrb[0].mxu0
        %4977 = vmatprep.mubr.bf16.mxu0 0
        %4978 = vmatmul.mubr.bf16.gmra.mrb[0].mxu0 %v4824
        %v4979 = vpop.f32.mrb[0].mxu0
        %v4980 = vadd.f32 0.0, %v4979
        %v4981 = vpop.f32.mrb[0].mxu0
        %v4982 = vpop.f32.mrb[0].mxu0
        %v4983 = vadd.f32 0.0, %v4982
        %v4984 = vpop.f32.mrb[0].mxu0
        %4985 = vdwg.mxu0
        %v4986 = vadd.f32 %v4801, %v4924
        %v4987 = vadd.f32 %v4802, %v4927
        %v4988 = vadd.f32 %v4803, %v4932
        %v4989 = vadd.f32 %v4804, %v4935
        %v4990 = vadd.f32 %v4805, %v4940
        %v4991 = vadd.f32 %v4806, %v4943
        %v4992 = vadd.f32 %v4807, %v4948
        %v4993 = vadd.f32 %v4808, %v4951
        %v4994 = vadd.f32 %v4809, %v4956
        %v4995 = vadd.f32 %v4810, %v4959
        %v4996 = vadd.f32 %v4811, %v4964
        %v4997 = vadd.f32 %v4812, %v4967
        %v4998 = vadd.f32 %v4813, %v4972
        %v4999 = vadd.f32 %v4814, %v4975
        %v5000 = vadd.f32 %v4815, %v4980
        %v5001 = vadd.f32 %v4816, %v4983
        %v5002 = vpack.c.bf16 %v3708, %v3707
        %v5003 = vpack.c.bf16 %v3710, %v3709
        %v5004 = vpack.c.bf16 %v3712, %v3711
        %v5005 = vpack.c.bf16 %v3714, %v3713
        %v5006 = vpack.c.bf16 %v3716, %v3715
        %v5007 = vpack.c.bf16 %v3718, %v3717
        %v5008 = vpack.c.bf16 %v3720, %v3719
        %v5009 = vpack.c.bf16 %v3722, %v3721
        %v5010 = vld [vmem:[#allocation8 + $0x1c0] sm:$0xf]
        %v5011 = vld [vmem:[#allocation8 + $0x1c4] sm:$0xf]
        %v5012 = vld [vmem:[#allocation8 + $0x1c8] sm:$0xf]
        %v5013 = vld [vmem:[#allocation8 + $0x1cc] sm:$0xf]
        %v5014 = vld [vmem:[#allocation8 + $0x1d0] sm:$0xf]
        %v5015 = vld [vmem:[#allocation8 + $0x1d4] sm:$0xf]
        %v5016 = vld [vmem:[#allocation8 + $0x1d8] sm:$0xf]
        %v5017 = vld [vmem:[#allocation8 + $0x1dc] sm:$0xf]
        %v5018 = vld [vmem:[#allocation8 + $0x1e0] sm:$0xf]
        %v5019 = vld [vmem:[#allocation8 + $0x1e4] sm:$0xf]
        %v5020 = vld [vmem:[#allocation8 + $0x1e8] sm:$0xf]
        %v5021 = vld [vmem:[#allocation8 + $0x1ec] sm:$0xf]
        %v5022 = vld [vmem:[#allocation8 + $0x1f0] sm:$0xf]
        %v5023 = vld [vmem:[#allocation8 + $0x1f4] sm:$0xf]
        %v5024 = vld [vmem:[#allocation8 + $0x1f8] sm:$0xf]
        %v5025 = vld [vmem:[#allocation8 + $0x1fc] sm:$0xf]
        %v5042 = vunpack.c.l.b16 %v5010
        %v5043 = vunpack.c.l.b16 %v5011
        %v5044 = vunpack.c.l.b16 %v5012
        %v5045 = vunpack.c.l.b16 %v5013
        %v5046 = vunpack.c.l.b16 %v5014
        %v5047 = vunpack.c.l.b16 %v5015
        %v5048 = vunpack.c.l.b16 %v5016
        %v5049 = vunpack.c.l.b16 %v5017
        %v5050 = vunpack.c.l.b16 %v5018
        %v5051 = vunpack.c.l.b16 %v5019
        %v5052 = vunpack.c.l.b16 %v5020
        %v5053 = vunpack.c.l.b16 %v5021
        %v5054 = vunpack.c.l.b16 %v5022
        %v5055 = vunpack.c.l.b16 %v5023
        %v5056 = vunpack.c.l.b16 %v5024
        %v5057 = vunpack.c.l.b16 %v5025
        %v5058 = vpack.c.b16 %v5043, %v5042
        %v5059 = vpack.c.b16 %v5045, %v5044
        %v5060 = vpack.c.b16 %v5047, %v5046
        %v5061 = vpack.c.b16 %v5049, %v5048
        %v5062 = vpack.c.b16 %v5051, %v5050
        %v5063 = vpack.c.b16 %v5053, %v5052
        %v5064 = vpack.c.b16 %v5055, %v5054
        %v5065 = vpack.c.b16 %v5057, %v5056
        %5074 = vmatprep.subr.bf16.mxu0 0
        %5075 = vmatpush1.bf16.msra.mxu0 %v5058
        %5076 = vmatprep.subr.bf16.mxu0 0
        %5077 = vmatpush1.bf16.msra.mxu0 %v5059
        %5078 = vmatprep.subr.bf16.mxu0 0
        %5079 = vmatpush1.bf16.msra.mxu0 %v5060
        %5080 = vmatprep.subr.bf16.mxu0 0
        %5081 = vmatpush1.bf16.msra.mxu0 %v5061
        %5082 = vmatprep.subr.bf16.mxu0 0
        %5083 = vmatpush1.bf16.msra.mxu0 %v5062
        %5084 = vmatprep.subr.bf16.mxu0 0
        %5085 = vmatpush1.bf16.msra.mxu0 %v5063
        %5086 = vmatprep.subr.bf16.mxu0 0
        %5087 = vmatpush1.bf16.msra.mxu0 %v5064
        %5088 = vmatprep.subr.bf16.mxu0 0
        %5089 = vmatpush1.bf16.msra.mxu0 %v5065
        %5090 = vmatprep.subr.bf16.mxu0 0
        %5091 = vmatpush1.bf16.msra.mxu0 0
        %5092 = vmatprep.subr.bf16.mxu0 0
        %5093 = vmatpush1.bf16.msra.mxu0 0
        %5094 = vmatprep.subr.bf16.mxu0 0
        %5095 = vmatpush1.bf16.msra.mxu0 0
        %5096 = vmatprep.subr.bf16.mxu0 0
        %5097 = vmatpush1.bf16.msra.mxu0 0
        %5098 = vmatprep.subr.bf16.mxu0 0
        %5099 = vmatpush1.bf16.msra.mxu0 0
        %5100 = vmatprep.subr.bf16.mxu0 0
        %5101 = vmatpush1.bf16.msra.mxu0 0
        %5102 = vmatprep.subr.bf16.mxu0 0
        %5103 = vmatpush1.bf16.msra.mxu0 0
        %5104 = vmatprep.subr.bf16.mxu0 0
        %5105 = vmatpush1.bf16.msra.mxu0 0
        %5106 = vmatprep.mubr.bf16.mxu0 0
        %5107 = vmatmul.mubr.bf16.gmra.mrb[0].mxu0 %v5002
        %v5108 = vpop.f32.mrb[0].mxu0
        %v5109 = vadd.f32 0.0, %v5108
        %v5110 = vpop.f32.mrb[0].mxu0
        %v5111 = vpop.f32.mrb[0].mxu0
        %v5112 = vadd.f32 0.0, %v5111
        %v5113 = vpop.f32.mrb[0].mxu0
        %5114 = vmatprep.mubr.bf16.mxu0 0
        %5115 = vmatmul.mubr.bf16.gmra.mrb[0].mxu0 %v5003
        %v5116 = vpop.f32.mrb[0].mxu0
        %v5117 = vadd.f32 0.0, %v5116
        %v5118 = vpop.f32.mrb[0].mxu0
        %v5119 = vpop.f32.mrb[0].mxu0
        %v5120 = vadd.f32 0.0, %v5119
        %v5121 = vpop.f32.mrb[0].mxu0
        %5122 = vmatprep.mubr.bf16.mxu0 0
        %5123 = vmatmul.mubr.bf16.gmra.mrb[0].mxu0 %v5004
        %v5124 = vpop.f32.mrb[0].mxu0
        %v5125 = vadd.f32 0.0, %v5124
        %v5126 = vpop.f32.mrb[0].mxu0
        %v5127 = vpop.f32.mrb[0].mxu0
        %v5128 = vadd.f32 0.0, %v5127
        %v5129 = vpop.f32.mrb[0].mxu0
        %5130 = vmatprep.mubr.bf16.mxu0 0
        %5131 = vmatmul.mubr.bf16.gmra.mrb[0].mxu0 %v5005
        %v5132 = vpop.f32.mrb[0].mxu0
        %v5133 = vadd.f32 0.0, %v5132
        %v5134 = vpop.f32.mrb[0].mxu0
        %v5135 = vpop.f32.mrb[0].mxu0
        %v5136 = vadd.f32 0.0, %v5135
        %v5137 = vpop.f32.mrb[0].mxu0
        %5138 = vmatprep.mubr.bf16.mxu0 0
        %5139 = vmatmul.mubr.bf16.gmra.mrb[0].mxu0 %v5006
        %v5140 = vpop.f32.mrb[0].mxu0
        %v5141 = vadd.f32 0.0, %v5140
        %v5142 = vpop.f32.mrb[0].mxu0
        %v5143 = vpop.f32.mrb[0].mxu0
        %v5144 = vadd.f32 0.0, %v5143
        %v5145 = vpop.f32.mrb[0].mxu0
        %5146 = vmatprep.mubr.bf16.mxu0 0
        %5147 = vmatmul.mubr.bf16.gmra.mrb[0].mxu0 %v5007
        %v5148 = vpop.f32.mrb[0].mxu0
        %v5149 = vadd.f32 0.0, %v5148
        %v5150 = vpop.f32.mrb[0].mxu0
        %v5151 = vpop.f32.mrb[0].mxu0
        %v5152 = vadd.f32 0.0, %v5151
        %v5153 = vpop.f32.mrb[0].mxu0
        %5154 = vmatprep.mubr.bf16.mxu0 0
        %5155 = vmatmul.mubr.bf16.gmra.mrb[0].mxu0 %v5008
        %v5156 = vpop.f32.mrb[0].mxu0
        %v5157 = vadd.f32 0.0, %v5156
        %v5158 = vpop.f32.mrb[0].mxu0
        %v5159 = vpop.f32.mrb[0].mxu0
        %v5160 = vadd.f32 0.0, %v5159
        %v5161 = vpop.f32.mrb[0].mxu0
        %5162 = vmatprep.mubr.bf16.mxu0 0
        %5163 = vmatmul.mubr.bf16.gmra.mrb[0].mxu0 %v5009
        %v5164 = vpop.f32.mrb[0].mxu0
        %v5165 = vadd.f32 0.0, %v5164
        %v5166 = vpop.f32.mrb[0].mxu0
        %v5167 = vpop.f32.mrb[0].mxu0
        %v5168 = vadd.f32 0.0, %v5167
        %v5169 = vpop.f32.mrb[0].mxu0
        %5170 = vdwg.mxu0
        %v5171 = vadd.f32 %v4986, %v5109
        %v5172 = vadd.f32 %v4987, %v5112
        %v5173 = vadd.f32 %v4988, %v5117
        %v5174 = vadd.f32 %v4989, %v5120
        %v5175 = vadd.f32 %v4990, %v5125
        %v5176 = vadd.f32 %v4991, %v5128
        %v5177 = vadd.f32 %v4992, %v5133
        %v5178 = vadd.f32 %v4993, %v5136
        %v5179 = vadd.f32 %v4994, %v5141
        %v5180 = vadd.f32 %v4995, %v5144
        %v5181 = vadd.f32 %v4996, %v5149
        %v5182 = vadd.f32 %v4997, %v5152
        %v5183 = vadd.f32 %v4998, %v5157
        %v5184 = vadd.f32 %v4999, %v5160
        %v5185 = vadd.f32 %v5000, %v5165
        %v5186 = vadd.f32 %v5001, %v5168
        %v5187 = vpack.c.bf16 %v3724, %v3723
        %v5188 = vpack.c.bf16 %v3726, %v3725
        %v5189 = vpack.c.bf16 %v3728, %v3727
        %v5190 = vpack.c.bf16 %v3730, %v3729
        %v5191 = vpack.c.bf16 %v3732, %v3731
        %v5192 = vpack.c.bf16 %v3734, %v3733
        %v5193 = vpack.c.bf16 %v3736, %v3735
        %v5194 = vpack.c.bf16 %v3738, %v3737
        %v5195 = vld [vmem:[#allocation8 + $0x200] sm:$0xf]
        %v5196 = vld [vmem:[#allocation8 + $0x204] sm:$0xf]
        %v5197 = vld [vmem:[#allocation8 + $0x208] sm:$0xf]
        %v5198 = vld [vmem:[#allocation8 + $0x20c] sm:$0xf]
        %v5199 = vld [vmem:[#allocation8 + $0x210] sm:$0xf]
        %v5200 = vld [vmem:[#allocation8 + $0x214] sm:$0xf]
        %v5201 = vld [vmem:[#allocation8 + $0x218] sm:$0xf]
        %v5202 = vld [vmem:[#allocation8 + $0x21c] sm:$0xf]
        %v5203 = vld [vmem:[#allocation8 + $0x220] sm:$0xf]
        %v5204 = vld [vmem:[#allocation8 + $0x224] sm:$0xf]
        %v5205 = vld [vmem:[#allocation8 + $0x228] sm:$0xf]
        %v5206 = vld [vmem:[#allocation8 + $0x22c] sm:$0xf]
        %v5207 = vld [vmem:[#allocation8 + $0x230] sm:$0xf]
        %v5208 = vld [vmem:[#allocation8 + $0x234] sm:$0xf]
        %v5209 = vld [vmem:[#allocation8 + $0x238] sm:$0xf]
        %v5210 = vld [vmem:[#allocation8 + $0x23c] sm:$0xf]
        %v5227 = vunpack.c.l.b16 %v5195
        %v5228 = vunpack.c.l.b16 %v5196
        %v5229 = vunpack.c.l.b16 %v5197
        %v5230 = vunpack.c.l.b16 %v5198
        %v5231 = vunpack.c.l.b16 %v5199
        %v5232 = vunpack.c.l.b16 %v5200
        %v5233 = vunpack.c.l.b16 %v5201
        %v5234 = vunpack.c.l.b16 %v5202
        %v5235 = vunpack.c.l.b16 %v5203
        %v5236 = vunpack.c.l.b16 %v5204
        %v5237 = vunpack.c.l.b16 %v5205
        %v5238 = vunpack.c.l.b16 %v5206
        %v5239 = vunpack.c.l.b16 %v5207
        %v5240 = vunpack.c.l.b16 %v5208
        %v5241 = vunpack.c.l.b16 %v5209
        %v5242 = vunpack.c.l.b16 %v5210
        %v5243 = vpack.c.b16 %v5228, %v5227
        %v5244 = vpack.c.b16 %v5230, %v5229
        %v5245 = vpack.c.b16 %v5232, %v5231
        %v5246 = vpack.c.b16 %v5234, %v5233
        %v5247 = vpack.c.b16 %v5236, %v5235
        %v5248 = vpack.c.b16 %v5238, %v5237
        %v5249 = vpack.c.b16 %v5240, %v5239
        %v5250 = vpack.c.b16 %v5242, %v5241
        %5259 = vmatprep.subr.bf16.mxu0 0
        %5260 = vmatpush1.bf16.msra.mxu0 %v5243
        %5261 = vmatprep.subr.bf16.mxu0 0
        %5262 = vmatpush1.bf16.msra.mxu0 %v5244
        %5263 = vmatprep.subr.bf16.mxu0 0
        %5264 = vmatpush1.bf16.msra.mxu0 %v5245
        %5265 = vmatprep.subr.bf16.mxu0 0
        %5266 = vmatpush1.bf16.msra.mxu0 %v5246
        %5267 = vmatprep.subr.bf16.mxu0 0
        %5268 = vmatpush1.bf16.msra.mxu0 %v5247
        %5269 = vmatprep.subr.bf16.mxu0 0
        %5270 = vmatpush1.bf16.msra.mxu0 %v5248
        %5271 = vmatprep.subr.bf16.mxu0 0
        %5272 = vmatpush1.bf16.msra.mxu0 %v5249
        %5273 = vmatprep.subr.bf16.mxu0 0
        %5274 = vmatpush1.bf16.msra.mxu0 %v5250
        %5275 = vmatprep.subr.bf16.mxu0 0
        %5276 = vmatpush1.bf16.msra.mxu0 0
        %5277 = vmatprep.subr.bf16.mxu0 0
        %5278 = vmatpush1.bf16.msra.mxu0 0
        %5279 = vmatprep.subr.bf16.mxu0 0
        %5280 = vmatpush1.bf16.msra.mxu0 0
        %5281 = vmatprep.subr.bf16.mxu0 0
        %5282 = vmatpush1.bf16.msra.mxu0 0
        %5283 = vmatprep.subr.bf16.mxu0 0
        %5284 = vmatpush1.bf16.msra.mxu0 0
        %5285 = vmatprep.subr.bf16.mxu0 0
        %5286 = vmatpush1.bf16.msra.mxu0 0
        %5287 = vmatprep.subr.bf16.mxu0 0
        %5288 = vmatpush1.bf16.msra.mxu0 0
        %5289 = vmatprep.subr.bf16.mxu0 0
        %5290 = vmatpush1.bf16.msra.mxu0 0
        %5291 = vmatprep.mubr.bf16.mxu0 0
        %5292 = vmatmul.mubr.bf16.gmra.mrb[0].mxu0 %v5187
        %v5293 = vpop.f32.mrb[0].mxu0
        %v5294 = vadd.f32 0.0, %v5293
        %v5295 = vpop.f32.mrb[0].mxu0
        %v5296 = vpop.f32.mrb[0].mxu0
        %v5297 = vadd.f32 0.0, %v5296
        %v5298 = vpop.f32.mrb[0].mxu0
        %5299 = vmatprep.mubr.bf16.mxu0 0
        %5300 = vmatmul.mubr.bf16.gmra.mrb[0].mxu0 %v5188
        %v5301 = vpop.f32.mrb[0].mxu0
        %v5302 = vadd.f32 0.0, %v5301
        %v5303 = vpop.f32.mrb[0].mxu0
        %v5304 = vpop.f32.mrb[0].mxu0
        %v5305 = vadd.f32 0.0, %v5304
        %v5306 = vpop.f32.mrb[0].mxu0
        %5307 = vmatprep.mubr.bf16.mxu0 0
        %5308 = vmatmul.mubr.bf16.gmra.mrb[0].mxu0 %v5189
        %v5309 = vpop.f32.mrb[0].mxu0
        %v5310 = vadd.f32 0.0, %v5309
        %v5311 = vpop.f32.mrb[0].mxu0
        %v5312 = vpop.f32.mrb[0].mxu0
        %v5313 = vadd.f32 0.0, %v5312
        %v5314 = vpop.f32.mrb[0].mxu0
        %5315 = vmatprep.mubr.bf16.mxu0 0
        %5316 = vmatmul.mubr.bf16.gmra.mrb[0].mxu0 %v5190
        %v5317 = vpop.f32.mrb[0].mxu0
        %v5318 = vadd.f32 0.0, %v5317
        %v5319 = vpop.f32.mrb[0].mxu0
        %v5320 = vpop.f32.mrb[0].mxu0
        %v5321 = vadd.f32 0.0, %v5320
        %v5322 = vpop.f32.mrb[0].mxu0
        %5323 = vmatprep.mubr.bf16.mxu0 0
        %5324 = vmatmul.mubr.bf16.gmra.mrb[0].mxu0 %v5191
        %v5325 = vpop.f32.mrb[0].mxu0
        %v5326 = vadd.f32 0.0, %v5325
        %v5327 = vpop.f32.mrb[0].mxu0
        %v5328 = vpop.f32.mrb[0].mxu0
        %v5329 = vadd.f32 0.0, %v5328
        %v5330 = vpop.f32.mrb[0].mxu0
        %5331 = vmatprep.mubr.bf16.mxu0 0
        %5332 = vmatmul.mubr.bf16.gmra.mrb[0].mxu0 %v5192
        %v5333 = vpop.f32.mrb[0].mxu0
        %v5334 = vadd.f32 0.0, %v5333
        %v5335 = vpop.f32.mrb[0].mxu0
        %v5336 = vpop.f32.mrb[0].mxu0
        %v5337 = vadd.f32 0.0, %v5336
        %v5338 = vpop.f32.mrb[0].mxu0
        %5339 = vmatprep.mubr.bf16.mxu0 0
        %5340 = vmatmul.mubr.bf16.gmra.mrb[0].mxu0 %v5193
        %v5341 = vpop.f32.mrb[0].mxu0
        %v5342 = vadd.f32 0.0, %v5341
        %v5343 = vpop.f32.mrb[0].mxu0
        %v5344 = vpop.f32.mrb[0].mxu0
        %v5345 = vadd.f32 0.0, %v5344
        %v5346 = vpop.f32.mrb[0].mxu0
        %5347 = vmatprep.mubr.bf16.mxu0 0
        %5348 = vmatmul.mubr.bf16.gmra.mrb[0].mxu0 %v5194
        %v5349 = vpop.f32.mrb[0].mxu0
        %v5350 = vadd.f32 0.0, %v5349
        %v5351 = vpop.f32.mrb[0].mxu0
        %v5352 = vpop.f32.mrb[0].mxu0
        %v5353 = vadd.f32 0.0, %v5352
        %v5354 = vpop.f32.mrb[0].mxu0
        %5355 = vdwg.mxu0
        %v5356 = vadd.f32 %v5171, %v5294
        %v5357 = vadd.f32 %v5172, %v5297
        %v5358 = vadd.f32 %v5173, %v5302
        %v5359 = vadd.f32 %v5174, %v5305
        %v5360 = vadd.f32 %v5175, %v5310
        %v5361 = vadd.f32 %v5176, %v5313
        %v5362 = vadd.f32 %v5177, %v5318
        %v5363 = vadd.f32 %v5178, %v5321
        %v5364 = vadd.f32 %v5179, %v5326
        %v5365 = vadd.f32 %v5180, %v5329
        %v5366 = vadd.f32 %v5181, %v5334
        %v5367 = vadd.f32 %v5182, %v5337
        %v5368 = vadd.f32 %v5183, %v5342
        %v5369 = vadd.f32 %v5184, %v5345
        %v5370 = vadd.f32 %v5185, %v5350
        %v5371 = vadd.f32 %v5186, %v5353
        %5372 = vst [vmem:[%s286] sm:$0xff] %v5356
        %5373 = vst [vmem:[%s286 + $0x8] sm:$0xff] %v5357
        %5374 = vst [vmem:[%s286 + $0x10] sm:$0xff] %v5358
        %5375 = vst [vmem:[%s286 + $0x18] sm:$0xff] %v5359
        %5376 = vst [vmem:[%s286 + $0x20] sm:$0xff] %v5360
        %5377 = vst [vmem:[%s286 + $0x28] sm:$0xff] %v5361
        %5378 = vst [vmem:[%s286 + $0x30] sm:$0xff] %v5362
        %5379 = vst [vmem:[%s286 + $0x38] sm:$0xff] %v5363
        %5380 = vst [vmem:[%s286 + $0x40] sm:$0xff] %v5364
        %5381 = vst [vmem:[%s286 + $0x48] sm:$0xff] %v5365
        %5382 = vst [vmem:[%s286 + $0x50] sm:$0xff] %v5366
        %5383 = vst [vmem:[%s286 + $0x58] sm:$0xff] %v5367
        %5384 = vst [vmem:[%s286 + $0x60] sm:$0xff] %v5368
        %5385 = vst [vmem:[%s286 + $0x68] sm:$0xff] %v5369
        %5386 = vst [vmem:[%s286 + $0x70] sm:$0xff] %v5370
        %5387 = vst [vmem:[%s286 + $0x78] sm:$0xff] %v5371
        %s5388 = sand.u32 %s142, 1
        %s5389 = scalar_lea.sflag [#allocation4], %s5388
        %s5390 = sand.u32 %s142, 1
        %s5391 = smul.addr %s5390, 128
        %s5392 = scalar_lea.vmem [#allocation10], %s5391
        // Predicated region
        $region57: #{tpu_custom_call.1} parent=39 // pred_check
          %p5393 = pneg %p152
        $region58: #{tpu_custom_call.1} parent=39 // pred_check_branch
          %5395 = sbr.rel (%p5393) target = $region60
        $region59: #{tpu_custom_call.1} parent=39 // pred_region
          %s5396 = smul.u32 16, %s24
          %s5398 = ssub.s32 2048, 2048
          %5399 = vsyncadd %s5389, %s5398
          %s5400 = smul.addr %s5396, 128
          %s5401 = scalar_lea.hbm %s5, %s5400
          %s5402 = sshll.u32 %s5392, 4
          %s5403 = int_to_ptr.vmem [resolvable:$true] %s5402
          %5408 = dma.vmem_to_hbm [thread:$0]  %s5403, 2048, %s5401, %s5389, 128, 128, 8
        $region60: #{tpu_custom_call.1} parent=39 // pred_fallthru
          _
      $region40: #{tpu_custom_call.1} parent=5 // pred_fallthru
        _
      %p5409 = scmp.le.s32.totalorder 2, %s19
      // Predicated region
      $region61: #{tpu_custom_call.1} parent=5 // pred_check
        %p5410 = pneg %p5409
      $region62: #{tpu_custom_call.1} parent=5 // pred_check_branch
        %5412 = sbr.rel (%p5410) target = $region64
      $region63: #{tpu_custom_call.1} parent=5 // pred_region
        %s5413 = ssub.s32 %s19, 2
        // Predicated region
        $region65: #{tpu_custom_call.1} parent=63 // pred_check
          %p5414 = pneg %p158
        $region66: #{tpu_custom_call.1} parent=63 // pred_check_branch
          %5416 = sbr.rel (%p5414) target = $region68
        $region67: #{tpu_custom_call.1} parent=63 // pred_region
          %s5417 = sand.u32 %s143, 1
          %s5418 = scalar_lea.sflag [#allocation4], %s5417
          %s5419 = sand.u32 %s143, 1
          %s5420 = smul.addr %s5419, 128
          %s5421 = scalar_lea.vmem [#allocation10], %s5420
          %5422 = dma.done %s5418, 2048
        $region68: #{tpu_custom_call.1} parent=63 // pred_fallthru
          _
      $region64: #{tpu_custom_call.1} parent=5 // pred_fallthru
        _
    $region6: #{tpu_custom_call.1} parent=1 // loop_footer
      %s23 = sadd.s32 1, %s19
    $region7: #{tpu_custom_call.1} parent=1 // loop_footer_branch
      %18 = sbr.rel target = $region3
    $region8: #{tpu_custom_call.1} parent=1 // loop_exit
      _
    %5423 = vsyncpa [#allocation3], 1
    %s5424 = scalar_lea.sflag [#allocation3], 1
    %5425 = vsyncpa %s5424, 1
    %5426 = vsyncpa [#allocation6], 1
    %5427 = vsyncpa [#allocation9], 1
    %5428 = vsyncpa [#allocation4], 1
    %s5429 = scalar_lea.sflag [#allocation4], 1
    %5430 = vsyncpa %s5429, 1

</llo_original>
